<compile_context>
chip_gen: v7x
topology: tpu7x:2x2x1
jax: 0.10.0
libtpu: 0.0.40
codegen_flags: <defaults>
</compile_context>

<pallas_src>
import functools

import jax
import jax.numpy as jnp
from jax.experimental import pallas as pl
from jax.experimental.pallas import tpu as pltpu

HID = 320   # nn.RNN hidden_size
FC1 = 80
FC2 = 20


def rnn_kernel(x_ref, wih_ref, whh_ref, brnn_ref,
               w1_ref, b1_ref, w2_ref, b2_ref, w3_ref, b3_ref,
               out_ref, h_ref, *, seq_len, s_chunk, unroll, mask_tail):
    """Grid = (batch_tiles ["parallel"], time_chunks ["arbitrary", innermost]).

    x_ref : (s_chunk, TB, H) time-major activation chunk.
    h_ref : (TB, HID) f32 scratch carrying the hidden state across chunks.
    """
    c = pl.program_id(1)

    # --- init: zero the carried hidden state at the first time chunk. -------
    @pl.when(c == 0)
    def _():
        h_ref[...] = jnp.zeros_like(h_ref)

    bias = brnn_ref[...].astype(jnp.float32)          # (1, HID), hoisted

    # --- recurrence: h_t = tanh(x_t W_ih + b + h_{t-1} W_hh). ---------------
    # x_t @ W_ih is independent of h_{t-1}; with the loop unrolled the
    # scheduler overlaps step t+1's projection matmul with step t's recurrence
    # matmul + tanh, filling otherwise-idle MXU slots.
    def step(t, h):
        xw = jnp.dot(x_ref[t], wih_ref[...], preferred_element_type=jnp.float32)
        hw = jnp.dot(h, whh_ref[...], preferred_element_type=jnp.float32)
        h_new = jnp.tanh(xw + hw + bias)
        if mask_tail:
            # Padded timesteps (global index >= seq_len) carry h unchanged.
            valid = (c * s_chunk + t < seq_len).astype(jnp.float32)
            h_new = valid * h_new + (1.0 - valid) * h
        return h_new

    h = jax.lax.fori_loop(0, s_chunk, step, h_ref[...], unroll=unroll)
    h_ref[...] = h

    # --- finalize: fc head (Dropout == identity in eval) + softmax. ---------
    @pl.when(c == pl.num_programs(1) - 1)
    def _():
        z = jnp.dot(h, w1_ref[...], preferred_element_type=jnp.float32)
        z = z + b1_ref[...].astype(jnp.float32)
        z = jnp.dot(z, w2_ref[...], preferred_element_type=jnp.float32)
        z = z + b2_ref[...].astype(jnp.float32)
        logits = jnp.dot(z, w3_ref[...], preferred_element_type=jnp.float32)
        logits = logits + b3_ref[...].astype(jnp.float32)

        logits = logits - jnp.max(logits, axis=1, keepdims=True)
        e = jnp.exp(logits)
        d = jnp.sum(e, axis=1, keepdims=True)
        r = pl.reciprocal(d, approx=True)             # EUP slot
        r = r * (2.0 - d * r)                         # one Newton step -> ~f32 exact
        out_ref[...] = (e * r).astype(out_ref.dtype)


def _round_up(x, m):
    return ((x + m - 1) // m) * m


def _weight_spec(shape):
    """Grid-invariant operand: constant index map; single-buffered if supported."""
    idx = lambda b, c: (0,) * len(shape)
    try:
        return pl.BlockSpec(shape, idx, pipeline_mode=pl.Buffered(1))
    except (TypeError, AttributeError):               # older BlockSpec signature
        return pl.BlockSpec(shape, idx)


def _plan(B, S, H, x_dtype):
    """Pick batch tile / time chunk / VMEM limit from shapes + TPU generation."""
    mib = 1024 * 1024
    try:
        cap = pltpu.get_tpu_info().vmem_capacity_bytes
    except Exception:
        cap = 64 * mib                                # conservative (v7x per-core)
    vmem_limit = int(max(min(cap - 8 * mib, 100 * mib), 16 * mib))

    # Batch tile: fill the MXU M dimension, but keep >= 2 batch tiles when the
    # batch allows it so dimension_semantics="parallel" can shard across both
    # v7x TensorCores.
    b8 = _round_up(B, 8)
    tb = min(128, b8)
    if b8 >= 16 and b8 // tb < 2:
        tb = _round_up(-(-b8 // 2), 8)

    # Time chunk: bound resident VMEM (double-buffered activation block +
    # single-buffered weights), independent of total sequence length.
    dt_bytes = jnp.dtype(x_dtype).itemsize
    weight_bytes = 4 * (H * HID + HID * HID + HID * FC1 + FC1 * FC2 + FC2 * 16)
    budget = max(vmem_limit - weight_bytes - 4 * mib, 1 * mib)
    per_t = tb * H * dt_bytes * 2                     # x2: double buffering
    s_chunk = int(max(1, min(S, budget // per_t, 512)))
    unroll = True if s_chunk <= 32 else 8
    return dict(tb=int(tb), s_chunk=s_chunk, unroll=unroll, vmem_limit=vmem_limit)


@functools.partial(jax.jit,
                   static_argnames=("tb", "s_chunk", "unroll", "vmem_limit"))
def _rnn_forward_impl(hidden, w_ih, w_hh, b_rnn, w1, b1, w2, b2, w3, b3,
                      *, tb, s_chunk, unroll, vmem_limit):
    B, S, H = hidden.shape
    C = w3.shape[1]
    nb, nc = pl.cdiv(B, tb), pl.cdiv(S, s_chunk)
    B_pad, S_pad = nb * tb, nc * s_chunk

    # TODO(synk): this transpose is one extra HBM pass over the activations;
    # have the base model emit time-major (S, B, H) to remove it.
    x = jnp.transpose(hidden, (1, 0, 2))              # (S, B, H)
    if (S_pad, B_pad) != (S, B):
        x = jnp.pad(x, ((0, S_pad - S), (0, B_pad - B), (0, 0)))

    kernel = functools.partial(rnn_kernel, seq_len=S, s_chunk=s_chunk,
                               unroll=unroll, mask_tail=(S_pad != S))

    grid_spec = pltpu.PrefetchScalarGridSpec(
        num_scalar_prefetch=0,
        grid=(nb, nc),                                # time-chunk axis innermost
        in_specs=[
            pl.BlockSpec((s_chunk, tb, H), lambda b, c: (c, b, 0)),  # activations
            _weight_spec((H, HID)),                   # W_ih^T
            _weight_spec((HID, HID)),                 # W_hh^T
            _weight_spec((1, HID)),                   # b_ih + b_hh
            _weight_spec((HID, FC1)), _weight_spec((1, FC1)),        # fc1
            _weight_spec((FC1, FC2)), _weight_spec((1, FC2)),        # fc2
            _weight_spec((FC2, C)), _weight_spec((1, C)),            # fc3
        ],
        out_specs=pl.BlockSpec((tb, C), lambda b, c: (b, 0)),
        scratch_shapes=[pltpu.VMEM((tb, HID), jnp.float32)],         # carried h
    )

    out = pl.pallas_call(
        kernel,
        out_shape=jax.ShapeDtypeStruct((B_pad, C), jnp.float32),
        grid_spec=grid_spec,
        compiler_params=pltpu.CompilerParams(
            dimension_semantics=("parallel", "arbitrary"),
            vmem_limit_bytes=vmem_limit),
    )(x, w_ih, w_hh, b_rnn, w1, b1, w2, b2, w3, b3)
    return out


def rnn_forward(hidden, params, **overrides):
    """hidden: (B, S, H) last_hidden_state.  Returns softmax probs (B, C)."""
    B, S, H = hidden.shape
    cfg = _plan(B, S, H, hidden.dtype)
    cfg.update(overrides)
    out = _rnn_forward_impl(
        hidden,
        params["w_ih"], params["w_hh"], params["b_rnn"],
        params["w1"], params["b1"], params["w2"], params["b2"],
        params["w3"], params["b3"], **cfg)
    return out[:B]


def ref_forward(hidden, params):
    # Pure-JAX reference mirroring the PyTorch semantics (eval mode).
    B, S, H = hidden.shape
    h = jnp.zeros((B, HID), jnp.float32)
    for t in range(S):
        h = jnp.tanh(hidden[:, t, :].astype(jnp.float32) @ params["w_ih"]
                     + params["b_rnn"] + h @ params["w_hh"])
    z = h @ params["w1"] + params["b1"]
    z = z @ params["w2"] + params["b2"]
    logits = z @ params["w3"] + params["b3"]
    return jax.nn.softmax(logits, axis=1)


def _make_params(key, H, num_classes):
    ks = jax.random.split(key, 10)
    # PyTorch stores RNN/Linear weights as (out, in); here pre-transposed to
    # (in, out).  b_rnn = b_ih + b_hh folded together.
    s_rnn = 1.0 / jnp.sqrt(jnp.float32(HID))
    return {
        "w_ih": s_rnn * jax.random.normal(ks[0], (H, HID), jnp.float32),
        "w_hh": s_rnn * jax.random.normal(ks[1], (HID, HID), jnp.float32),
        "b_rnn": s_rnn * jax.random.normal(ks[2], (1, HID), jnp.float32),
        "w1": 0.1 * jax.random.normal(ks[3], (HID, FC1), jnp.float32),
        "b1": 0.1 * jax.random.normal(ks[4], (1, FC1), jnp.float32),
        "w2": 0.1 * jax.random.normal(ks[5], (FC1, FC2), jnp.float32),
        "b2": 0.1 * jax.random.normal(ks[6], (1, FC2), jnp.float32),
        "w3": 0.1 * jax.random.normal(ks[7], (FC2, num_classes), jnp.float32),
        "b3": 0.1 * jax.random.normal(ks[8], (1, num_classes), jnp.float32),
    }


if __name__ == "__main__":
    num_classes = 2              # IMDB sentiment
    key = jax.random.PRNGKey(0)
    kp, kx1, kx2 = jax.random.split(key, 3)

    # --- run 1: default plan (single time chunk at this toy size). ----------
    B, S, H = 2, 8, 32           # batch, seq_len, hidden_size of base_model
    params = _make_params(kp, H, num_classes)
    hidden = jax.random.normal(kx1, (B, S, H), jnp.float32)

    out = rnn_forward(hidden, params)
    jax.block_until_ready(out)
    ref = ref_forward(hidden, params)
    assert out.shape == (B, num_classes)
    assert jnp.allclose(out, ref, atol=1e-4, rtol=1e-4), (out, ref)
    assert jnp.allclose(jnp.sum(out, axis=1), 1.0, atol=1e-5)

    # --- run 2: force multiple time chunks + ragged tail + batch padding, ---
    # exercising the carried-h grid axis and the tail mask.
    B2, S2 = 3, 10
    hidden2 = jax.random.normal(kx2, (B2, S2, H), jnp.float32)
    out2 = rnn_forward(hidden2, params, s_chunk=4)
    jax.block_until_ready(out2)
    ref2 = ref_forward(hidden2, params)
    assert out2.shape == (B2, num_classes)
    assert jnp.allclose(out2, ref2, atol=1e-4, rtol=1e-4), (out2, ref2)
    assert jnp.allclose(jnp.sum(out2, axis=1), 1.0, atol=1e-5)

    print("KERNEL_OK")
</pallas_src>

<mosaic_0001>
module attributes {stable_mosaic.version = 11 : i64} {
  func.func @rnn_kernel(%arg0: i32, %arg1: i32, %arg2: memref<8x8x32xf32, #tpu.memory_space<vmem>>, %arg3: memref<32x320xf32, #tpu.memory_space<vmem>>, %arg4: memref<320x320xf32, #tpu.memory_space<vmem>>, %arg5: memref<1x320xf32, #tpu.memory_space<vmem>>, %arg6: memref<320x80xf32, #tpu.memory_space<vmem>>, %arg7: memref<1x80xf32, #tpu.memory_space<vmem>>, %arg8: memref<80x20xf32, #tpu.memory_space<vmem>>, %arg9: memref<1x20xf32, #tpu.memory_space<vmem>>, %arg10: memref<20x2xf32, #tpu.memory_space<vmem>>, %arg11: memref<1x2xf32, #tpu.memory_space<vmem>>, %arg12: memref<8x2xf32, #tpu.memory_space<vmem>>, %arg13: memref<8x320xf32, #tpu.memory_space<vmem>>) attributes {dimension_semantics = [#tpu.dimension_semantics<parallel>, #tpu.dimension_semantics<arbitrary>], iteration_bounds = array<i64: 1, 1>, scalar_prefetch = 0 : i64, scratch_operands = 1 : i64, tpu.core_type = #tpu.core_type<tc>, window_params = [{transform_indices = @transform_0, window_bounds = array<i64: 8, 8, 32>}, {pipeline_mode = #tpu.pipeline_mode<synchronous>, transform_indices = @transform_1, window_bounds = array<i64: 32, 320>}, {pipeline_mode = #tpu.pipeline_mode<synchronous>, transform_indices = @transform_2, window_bounds = array<i64: 320, 320>}, {pipeline_mode = #tpu.pipeline_mode<synchronous>, transform_indices = @transform_3, window_bounds = array<i64: 1, 320>}, {pipeline_mode = #tpu.pipeline_mode<synchronous>, transform_indices = @transform_4, window_bounds = array<i64: 320, 80>}, {pipeline_mode = #tpu.pipeline_mode<synchronous>, transform_indices = @transform_5, window_bounds = array<i64: 1, 80>}, {pipeline_mode = #tpu.pipeline_mode<synchronous>, transform_indices = @transform_6, window_bounds = array<i64: 80, 20>}, {pipeline_mode = #tpu.pipeline_mode<synchronous>, transform_indices = @transform_7, window_bounds = array<i64: 1, 20>}, {pipeline_mode = #tpu.pipeline_mode<synchronous>, transform_indices = @transform_8, window_bounds = array<i64: 20, 2>}, {pipeline_mode = #tpu.pipeline_mode<synchronous>, transform_indices = @transform_9, window_bounds = array<i64: 1, 2>}, {transform_indices = @transform_10, window_bounds = array<i64: 8, 2>}]} {
    %c0_i32 = arith.constant 0 : i32
    %0 = arith.cmpi eq, %arg1, %c0_i32 : i32
    %1 = arith.extui %0 : i1 to i32
    %c0_i32_0 = arith.constant 0 : i32
    %2 = arith.cmpi ne, %1, %c0_i32_0 : i32
    scf.if %2 {
      %cst_72 = arith.constant 0.000000e+00 : f32
      %97 = vector.broadcast %cst_72 : f32 to vector<8x320xf32>
      %c0_73 = arith.constant 0 : index
      %c0_74 = arith.constant 0 : index
      %98 = vector.load %arg13[%c0_73, %c0_74] : memref<8x320xf32, #tpu.memory_space<vmem>>, vector<8x320xf32>
      tpu.vector_store %arg13[%c0_73, %c0_74], %97 {strides = array<i32>} : memref<8x320xf32, #tpu.memory_space<vmem>>, vector<8x320xf32>,
    } else {
    }
    %c0 = arith.constant 0 : index
    %c0_1 = arith.constant 0 : index
    %3 = vector.load %arg5[%c0, %c0_1] : memref<1x320xf32, #tpu.memory_space<vmem>>, vector<1x320xf32>
    %c0_2 = arith.constant 0 : index
    %c0_3 = arith.constant 0 : index
    %4 = vector.load %arg13[%c0_2, %c0_3] : memref<8x320xf32, #tpu.memory_space<vmem>>, vector<8x320xf32>
    %c0_i32_4 = arith.constant 0 : i32
    %5 = arith.index_cast %c0_i32_4 : i32 to index
    %c0_5 = arith.constant 0 : index
    %c0_6 = arith.constant 0 : index
    %6 = vector.load %arg2[%5, %c0_5, %c0_6] : memref<8x8x32xf32, #tpu.memory_space<vmem>>, vector<1x8x32xf32>
    %7 = vector.shape_cast %6 : vector<1x8x32xf32> to vector<8x32xf32>
    %c0_7 = arith.constant 0 : index
    %c0_8 = arith.constant 0 : index
    %8 = vector.load %arg3[%c0_7, %c0_8] : memref<32x320xf32, #tpu.memory_space<vmem>>, vector<32x320xf32>
    %cst = arith.constant dense<0.000000e+00> : vector<8x320xf32>
    %9 = tpu.matmul %7, %8, %cst {dimension_numbers = #tpu.dot_dimension_numbers<[1], [0], [0], [1], [0, 0, 1, 1], [], []>} : vector<8x32xf32>, vector<32x320xf32>, vector<8x320xf32> -> vector<8x320xf32>
    %c0_9 = arith.constant 0 : index
    %c0_10 = arith.constant 0 : index
    %10 = vector.load %arg4[%c0_9, %c0_10] : memref<320x320xf32, #tpu.memory_space<vmem>>, vector<320x320xf32>
    %cst_11 = arith.constant dense<0.000000e+00> : vector<8x320xf32>
    %11 = tpu.matmul %4, %10, %cst_11 {dimension_numbers = #tpu.dot_dimension_numbers<[1], [0], [0], [1], [0, 0, 1, 1], [], []>} : vector<8x320xf32>, vector<320x320xf32>, vector<8x320xf32> -> vector<8x320xf32>
    %12 = arith.addf %9, %11 : vector<8x320xf32>
    %13 = vector.broadcast %3 : vector<1x320xf32> to vector<8x320xf32>
    %14 = arith.addf %12, %13 : vector<8x320xf32>
    %15 = math.tanh %14 : vector<8x320xf32>
    %c1_i32 = arith.constant 1 : i32
    %16 = arith.index_cast %c1_i32 : i32 to index
    %c0_12 = arith.constant 0 : index
    %c0_13 = arith.constant 0 : index
    %17 = vector.load %arg2[%16, %c0_12, %c0_13] : memref<8x8x32xf32, #tpu.memory_space<vmem>>, vector<1x8x32xf32>
    %18 = vector.shape_cast %17 : vector<1x8x32xf32> to vector<8x32xf32>
    %c0_14 = arith.constant 0 : index
    %c0_15 = arith.constant 0 : index
    %19 = vector.load %arg3[%c0_14, %c0_15] : memref<32x320xf32, #tpu.memory_space<vmem>>, vector<32x320xf32>
    %cst_16 = arith.constant dense<0.000000e+00> : vector<8x320xf32>
    %20 = tpu.matmul %18, %19, %cst_16 {dimension_numbers = #tpu.dot_dimension_numbers<[1], [0], [0], [1], [0, 0, 1, 1], [], []>} : vector<8x32xf32>, vector<32x320xf32>, vector<8x320xf32> -> vector<8x320xf32>
    %c0_17 = arith.constant 0 : index
    %c0_18 = arith.constant 0 : index
    %21 = vector.load %arg4[%c0_17, %c0_18] : memref<320x320xf32, #tpu.memory_space<vmem>>, vector<320x320xf32>
    %cst_19 = arith.constant dense<0.000000e+00> : vector<8x320xf32>
    %22 = tpu.matmul %15, %21, %cst_19 {dimension_numbers = #tpu.dot_dimension_numbers<[1], [0], [0], [1], [0, 0, 1, 1], [], []>} : vector<8x320xf32>, vector<320x320xf32>, vector<8x320xf32> -> vector<8x320xf32>
    %23 = arith.addf %20, %22 : vector<8x320xf32>
    %24 = vector.broadcast %3 : vector<1x320xf32> to vector<8x320xf32>
    %25 = arith.addf %23, %24 : vector<8x320xf32>
    %26 = math.tanh %25 : vector<8x320xf32>
    %c2_i32 = arith.constant 2 : i32
    %27 = arith.index_cast %c2_i32 : i32 to index
    %c0_20 = arith.constant 0 : index
    %c0_21 = arith.constant 0 : index
    %28 = vector.load %arg2[%27, %c0_20, %c0_21] : memref<8x8x32xf32, #tpu.memory_space<vmem>>, vector<1x8x32xf32>
    %29 = vector.shape_cast %28 : vector<1x8x32xf32> to vector<8x32xf32>
    %c0_22 = arith.constant 0 : index
    %c0_23 = arith.constant 0 : index
    %30 = vector.load %arg3[%c0_22, %c0_23] : memref<32x320xf32, #tpu.memory_space<vmem>>, vector<32x320xf32>
    %cst_24 = arith.constant dense<0.000000e+00> : vector<8x320xf32>
    %31 = tpu.matmul %29, %30, %cst_24 {dimension_numbers = #tpu.dot_dimension_numbers<[1], [0], [0], [1], [0, 0, 1, 1], [], []>} : vector<8x32xf32>, vector<32x320xf32>, vector<8x320xf32> -> vector<8x320xf32>
    %c0_25 = arith.constant 0 : index
    %c0_26 = arith.constant 0 : index
    %32 = vector.load %arg4[%c0_25, %c0_26] : memref<320x320xf32, #tpu.memory_space<vmem>>, vector<320x320xf32>
    %cst_27 = arith.constant dense<0.000000e+00> : vector<8x320xf32>
    %33 = tpu.matmul %26, %32, %cst_27 {dimension_numbers = #tpu.dot_dimension_numbers<[1], [0], [0], [1], [0, 0, 1, 1], [], []>} : vector<8x320xf32>, vector<320x320xf32>, vector<8x320xf32> -> vector<8x320xf32>
    %34 = arith.addf %31, %33 : vector<8x320xf32>
    %35 = vector.broadcast %3 : vector<1x320xf32> to vector<8x320xf32>
    %36 = arith.addf %34, %35 : vector<8x320xf32>
    %37 = math.tanh %36 : vector<8x320xf32>
    %c3_i32 = arith.constant 3 : i32
    %38 = arith.index_cast %c3_i32 : i32 to index
    %c0_28 = arith.constant 0 : index
    %c0_29 = arith.constant 0 : index
    %39 = vector.load %arg2[%38, %c0_28, %c0_29] : memref<8x8x32xf32, #tpu.memory_space<vmem>>, vector<1x8x32xf32>
    %40 = vector.shape_cast %39 : vector<1x8x32xf32> to vector<8x32xf32>
    %c0_30 = arith.constant 0 : index
    %c0_31 = arith.constant 0 : index
    %41 = vector.load %arg3[%c0_30, %c0_31] : memref<32x320xf32, #tpu.memory_space<vmem>>, vector<32x320xf32>
    %cst_32 = arith.constant dense<0.000000e+00> : vector<8x320xf32>
    %42 = tpu.matmul %40, %41, %cst_32 {dimension_numbers = #tpu.dot_dimension_numbers<[1], [0], [0], [1], [0, 0, 1, 1], [], []>} : vector<8x32xf32>, vector<32x320xf32>, vector<8x320xf32> -> vector<8x320xf32>
    %c0_33 = arith.constant 0 : index
    %c0_34 = arith.constant 0 : index
    %43 = vector.load %arg4[%c0_33, %c0_34] : memref<320x320xf32, #tpu.memory_space<vmem>>, vector<320x320xf32>
    %cst_35 = arith.constant dense<0.000000e+00> : vector<8x320xf32>
    %44 = tpu.matmul %37, %43, %cst_35 {dimension_numbers = #tpu.dot_dimension_numbers<[1], [0], [0], [1], [0, 0, 1, 1], [], []>} : vector<8x320xf32>, vector<320x320xf32>, vector<8x320xf32> -> vector<8x320xf32>
    %45 = arith.addf %42, %44 : vector<8x320xf32>
    %46 = vector.broadcast %3 : vector<1x320xf32> to vector<8x320xf32>
    %47 = arith.addf %45, %46 : vector<8x320xf32>
    %48 = math.tanh %47 : vector<8x320xf32>
    %c4_i32 = arith.constant 4 : i32
    %49 = arith.index_cast %c4_i32 : i32 to index
    %c0_36 = arith.constant 0 : index
    %c0_37 = arith.constant 0 : index
    %50 = vector.load %arg2[%49, %c0_36, %c0_37] : memref<8x8x32xf32, #tpu.memory_space<vmem>>, vector<1x8x32xf32>
    %51 = vector.shape_cast %50 : vector<1x8x32xf32> to vector<8x32xf32>
    %c0_38 = arith.constant 0 : index
    %c0_39 = arith.constant 0 : index
    %52 = vector.load %arg3[%c0_38, %c0_39] : memref<32x320xf32, #tpu.memory_space<vmem>>, vector<32x320xf32>
    %cst_40 = arith.constant dense<0.000000e+00> : vector<8x320xf32>
    %53 = tpu.matmul %51, %52, %cst_40 {dimension_numbers = #tpu.dot_dimension_numbers<[1], [0], [0], [1], [0, 0, 1, 1], [], []>} : vector<8x32xf32>, vector<32x320xf32>, vector<8x320xf32> -> vector<8x320xf32>
    %c0_41 = arith.constant 0 : index
    %c0_42 = arith.constant 0 : index
    %54 = vector.load %arg4[%c0_41, %c0_42] : memref<320x320xf32, #tpu.memory_space<vmem>>, vector<320x320xf32>
    %cst_43 = arith.constant dense<0.000000e+00> : vector<8x320xf32>
    %55 = tpu.matmul %48, %54, %cst_43 {dimension_numbers = #tpu.dot_dimension_numbers<[1], [0], [0], [1], [0, 0, 1, 1], [], []>} : vector<8x320xf32>, vector<320x320xf32>, vector<8x320xf32> -> vector<8x320xf32>
    %56 = arith.addf %53, %55 : vector<8x320xf32>
    %57 = vector.broadcast %3 : vector<1x320xf32> to vector<8x320xf32>
    %58 = arith.addf %56, %57 : vector<8x320xf32>
    %59 = math.tanh %58 : vector<8x320xf32>
    %c5_i32 = arith.constant 5 : i32
    %60 = arith.index_cast %c5_i32 : i32 to index
    %c0_44 = arith.constant 0 : index
    %c0_45 = arith.constant 0 : index
    %61 = vector.load %arg2[%60, %c0_44, %c0_45] : memref<8x8x32xf32, #tpu.memory_space<vmem>>, vector<1x8x32xf32>
    %62 = vector.shape_cast %61 : vector<1x8x32xf32> to vector<8x32xf32>
    %c0_46 = arith.constant 0 : index
    %c0_47 = arith.constant 0 : index
    %63 = vector.load %arg3[%c0_46, %c0_47] : memref<32x320xf32, #tpu.memory_space<vmem>>, vector<32x320xf32>
    %cst_48 = arith.constant dense<0.000000e+00> : vector<8x320xf32>
    %64 = tpu.matmul %62, %63, %cst_48 {dimension_numbers = #tpu.dot_dimension_numbers<[1], [0], [0], [1], [0, 0, 1, 1], [], []>} : vector<8x32xf32>, vector<32x320xf32>, vector<8x320xf32> -> vector<8x320xf32>
    %c0_49 = arith.constant 0 : index
    %c0_50 = arith.constant 0 : index
    %65 = vector.load %arg4[%c0_49, %c0_50] : memref<320x320xf32, #tpu.memory_space<vmem>>, vector<320x320xf32>
    %cst_51 = arith.constant dense<0.000000e+00> : vector<8x320xf32>
    %66 = tpu.matmul %59, %65, %cst_51 {dimension_numbers = #tpu.dot_dimension_numbers<[1], [0], [0], [1], [0, 0, 1, 1], [], []>} : vector<8x320xf32>, vector<320x320xf32>, vector<8x320xf32> -> vector<8x320xf32>
    %67 = arith.addf %64, %66 : vector<8x320xf32>
    %68 = vector.broadcast %3 : vector<1x320xf32> to vector<8x320xf32>
    %69 = arith.addf %67, %68 : vector<8x320xf32>
    %70 = math.tanh %69 : vector<8x320xf32>
    %c6_i32 = arith.constant 6 : i32
    %71 = arith.index_cast %c6_i32 : i32 to index
    %c0_52 = arith.constant 0 : index
    %c0_53 = arith.constant 0 : index
    %72 = vector.load %arg2[%71, %c0_52, %c0_53] : memref<8x8x32xf32, #tpu.memory_space<vmem>>, vector<1x8x32xf32>
    %73 = vector.shape_cast %72 : vector<1x8x32xf32> to vector<8x32xf32>
    %c0_54 = arith.constant 0 : index
    %c0_55 = arith.constant 0 : index
    %74 = vector.load %arg3[%c0_54, %c0_55] : memref<32x320xf32, #tpu.memory_space<vmem>>, vector<32x320xf32>
    %cst_56 = arith.constant dense<0.000000e+00> : vector<8x320xf32>
    %75 = tpu.matmul %73, %74, %cst_56 {dimension_numbers = #tpu.dot_dimension_numbers<[1], [0], [0], [1], [0, 0, 1, 1], [], []>} : vector<8x32xf32>, vector<32x320xf32>, vector<8x320xf32> -> vector<8x320xf32>
    %c0_57 = arith.constant 0 : index
    %c0_58 = arith.constant 0 : index
    %76 = vector.load %arg4[%c0_57, %c0_58] : memref<320x320xf32, #tpu.memory_space<vmem>>, vector<320x320xf32>
    %cst_59 = arith.constant dense<0.000000e+00> : vector<8x320xf32>
    %77 = tpu.matmul %70, %76, %cst_59 {dimension_numbers = #tpu.dot_dimension_numbers<[1], [0], [0], [1], [0, 0, 1, 1], [], []>} : vector<8x320xf32>, vector<320x320xf32>, vector<8x320xf32> -> vector<8x320xf32>
    %78 = arith.addf %75, %77 : vector<8x320xf32>
    %79 = vector.broadcast %3 : vector<1x320xf32> to vector<8x320xf32>
    %80 = arith.addf %78, %79 : vector<8x320xf32>
    %81 = math.tanh %80 : vector<8x320xf32>
    %c7_i32 = arith.constant 7 : i32
    %82 = arith.index_cast %c7_i32 : i32 to index
    %c0_60 = arith.constant 0 : index
    %c0_61 = arith.constant 0 : index
    %83 = vector.load %arg2[%82, %c0_60, %c0_61] : memref<8x8x32xf32, #tpu.memory_space<vmem>>, vector<1x8x32xf32>
    %84 = vector.shape_cast %83 : vector<1x8x32xf32> to vector<8x32xf32>
    %c0_62 = arith.constant 0 : index
    %c0_63 = arith.constant 0 : index
    %85 = vector.load %arg3[%c0_62, %c0_63] : memref<32x320xf32, #tpu.memory_space<vmem>>, vector<32x320xf32>
    %cst_64 = arith.constant dense<0.000000e+00> : vector<8x320xf32>
    %86 = tpu.matmul %84, %85, %cst_64 {dimension_numbers = #tpu.dot_dimension_numbers<[1], [0], [0], [1], [0, 0, 1, 1], [], []>} : vector<8x32xf32>, vector<32x320xf32>, vector<8x320xf32> -> vector<8x320xf32>
    %c0_65 = arith.constant 0 : index
    %c0_66 = arith.constant 0 : index
    %87 = vector.load %arg4[%c0_65, %c0_66] : memref<320x320xf32, #tpu.memory_space<vmem>>, vector<320x320xf32>
    %cst_67 = arith.constant dense<0.000000e+00> : vector<8x320xf32>
    %88 = tpu.matmul %81, %87, %cst_67 {dimension_numbers = #tpu.dot_dimension_numbers<[1], [0], [0], [1], [0, 0, 1, 1], [], []>} : vector<8x320xf32>, vector<320x320xf32>, vector<8x320xf32> -> vector<8x320xf32>
    %89 = arith.addf %86, %88 : vector<8x320xf32>
    %90 = vector.broadcast %3 : vector<1x320xf32> to vector<8x320xf32>
    %91 = arith.addf %89, %90 : vector<8x320xf32>
    %92 = math.tanh %91 : vector<8x320xf32>
    %c8_i32 = arith.constant 8 : i32
    %c0_68 = arith.constant 0 : index
    %c0_69 = arith.constant 0 : index
    %93 = vector.load %arg13[%c0_68, %c0_69] : memref<8x320xf32, #tpu.memory_space<vmem>>, vector<8x320xf32>
    tpu.vector_store %arg13[%c0_68, %c0_69], %92 {strides = array<i32>} : memref<8x320xf32, #tpu.memory_space<vmem>>, vector<8x320xf32>,
    %c0_i32_70 = arith.constant 0 : i32
    %94 = arith.cmpi eq, %arg1, %c0_i32_70 : i32
    %95 = arith.extui %94 : i1 to i32
    %c0_i32_71 = arith.constant 0 : i32
    %96 = arith.cmpi ne, %95, %c0_i32_71 : i32
    scf.if %96 {
      %c0_72 = arith.constant 0 : index
      %c0_73 = arith.constant 0 : index
      %97 = vector.load %arg6[%c0_72, %c0_73] : memref<320x80xf32, #tpu.memory_space<vmem>>, vector<320x80xf32>
      %cst_74 = arith.constant dense<0.000000e+00> : vector<8x80xf32>
      %98 = tpu.matmul %92, %97, %cst_74 {dimension_numbers = #tpu.dot_dimension_numbers<[1], [0], [0], [1], [0, 0, 1, 1], [], []>} : vector<8x320xf32>, vector<320x80xf32>, vector<8x80xf32> -> vector<8x80xf32>
      %c0_75 = arith.constant 0 : index
      %c0_76 = arith.constant 0 : index
      %99 = vector.load %arg7[%c0_75, %c0_76] : memref<1x80xf32, #tpu.memory_space<vmem>>, vector<1x80xf32>
      %100 = vector.broadcast %99 : vector<1x80xf32> to vector<8x80xf32>
      %101 = arith.addf %98, %100 : vector<8x80xf32>
      %c0_77 = arith.constant 0 : index
      %c0_78 = arith.constant 0 : index
      %102 = vector.load %arg8[%c0_77, %c0_78] : memref<80x20xf32, #tpu.memory_space<vmem>>, vector<80x20xf32>
      %cst_79 = arith.constant dense<0.000000e+00> : vector<8x20xf32>
      %103 = tpu.matmul %101, %102, %cst_79 {dimension_numbers = #tpu.dot_dimension_numbers<[1], [0], [0], [1], [0, 0, 1, 1], [], []>} : vector<8x80xf32>, vector<80x20xf32>, vector<8x20xf32> -> vector<8x20xf32>
      %c0_80 = arith.constant 0 : index
      %c0_81 = arith.constant 0 : index
      %104 = vector.load %arg9[%c0_80, %c0_81] : memref<1x20xf32, #tpu.memory_space<vmem>>, vector<1x20xf32>
      %105 = vector.broadcast %104 : vector<1x20xf32> to vector<8x20xf32>
      %106 = arith.addf %103, %105 : vector<8x20xf32>
      %c0_82 = arith.constant 0 : index
      %c0_83 = arith.constant 0 : index
      %107 = vector.load %arg10[%c0_82, %c0_83] : memref<20x2xf32, #tpu.memory_space<vmem>>, vector<20x2xf32>
      %cst_84 = arith.constant dense<0.000000e+00> : vector<8x2xf32>
      %108 = tpu.matmul %106, %107, %cst_84 {dimension_numbers = #tpu.dot_dimension_numbers<[1], [0], [0], [1], [0, 0, 1, 1], [], []>} : vector<8x20xf32>, vector<20x2xf32>, vector<8x2xf32> -> vector<8x2xf32>
      %c0_85 = arith.constant 0 : index
      %c0_86 = arith.constant 0 : index
      %109 = vector.load %arg11[%c0_85, %c0_86] : memref<1x2xf32, #tpu.memory_space<vmem>>, vector<1x2xf32>
      %110 = vector.broadcast %109 : vector<1x2xf32> to vector<8x2xf32>
      %111 = arith.addf %108, %110 : vector<8x2xf32>
      %cst_87 = arith.constant dense<0xFF800000> : vector<8xf32>
      %112 = vector.multi_reduction <maximumf>, %111, %cst_87 [1] : vector<8x2xf32> to vector<8xf32>
      %113 = vector.shape_cast %112 : vector<8xf32> to vector<8x1xf32>
      %114 = vector.broadcast %113 : vector<8x1xf32> to vector<8x2xf32>
      %115 = arith.subf %111, %114 : vector<8x2xf32>
      %116 = math.exp %115 : vector<8x2xf32>
      %cst_88 = arith.constant dense<0.000000e+00> : vector<8xf32>
      %117 = vector.multi_reduction <add>, %116, %cst_88 [1] : vector<8x2xf32> to vector<8xf32>
      %118 = vector.shape_cast %117 : vector<8xf32> to vector<8x1xf32>
      %119 = tpu.reciprocal %118 {approx = true} : vector<8x1xf32> -> vector<8x1xf32>
      %120 = arith.mulf %118, %119 : vector<8x1xf32>
      %cst_89 = arith.constant 2.000000e+00 : f32
      %121 = vector.broadcast %cst_89 : f32 to vector<8x1xf32>
      %122 = arith.subf %121, %120 : vector<8x1xf32>
      %123 = arith.mulf %119, %122 : vector<8x1xf32>
      %124 = vector.broadcast %123 : vector<8x1xf32> to vector<8x2xf32>
      %125 = arith.mulf %116, %124 : vector<8x2xf32>
      %c0_90 = arith.constant 0 : index
      %c0_91 = arith.constant 0 : index
      %126 = vector.load %arg12[%c0_90, %c0_91] : memref<8x2xf32, #tpu.memory_space<vmem>>, vector<8x2xf32>
      tpu.vector_store %arg12[%c0_90, %c0_91], %125 {strides = array<i32>} : memref<8x2xf32, #tpu.memory_space<vmem>>, vector<8x2xf32>,
    } else {
    }
    return
  }
  func.func @transform_0(%arg0: i32, %arg1: i32) -> (i32, i32, i32) {
    %c0_i32 = arith.constant 0 : i32
    %c0_i32_0 = arith.constant 0 : i32
    return %arg1, %arg0, %c0_i32 : i32, i32, i32
  }
  func.func @transform_1(%arg0: i32, %arg1: i32) -> (i32, i32) {
    %c0_i32 = arith.constant 0 : i32
    %c0_i32_0 = arith.constant 0 : i32
    %c0_i32_1 = arith.constant 0 : i32
    return %c0_i32, %c0_i32_0 : i32, i32
  }
  func.func @transform_2(%arg0: i32, %arg1: i32) -> (i32, i32) {
    %c0_i32 = arith.constant 0 : i32
    %c0_i32_0 = arith.constant 0 : i32
    %c0_i32_1 = arith.constant 0 : i32
    return %c0_i32, %c0_i32_0 : i32, i32
  }
  func.func @transform_3(%arg0: i32, %arg1: i32) -> (i32, i32) {
    %c0_i32 = arith.constant 0 : i32
    %c0_i32_0 = arith.constant 0 : i32
    %c0_i32_1 = arith.constant 0 : i32
    return %c0_i32, %c0_i32_0 : i32, i32
  }
  func.func @transform_4(%arg0: i32, %arg1: i32) -> (i32, i32) {
    %c0_i32 = arith.constant 0 : i32
    %c0_i32_0 = arith.constant 0 : i32
    %c0_i32_1 = arith.constant 0 : i32
    return %c0_i32, %c0_i32_0 : i32, i32
  }
  func.func @transform_5(%arg0: i32, %arg1: i32) -> (i32, i32) {
    %c0_i32 = arith.constant 0 : i32
    %c0_i32_0 = arith.constant 0 : i32
    %c0_i32_1 = arith.constant 0 : i32
    return %c0_i32, %c0_i32_0 : i32, i32
  }
  func.func @transform_6(%arg0: i32, %arg1: i32) -> (i32, i32) {
    %c0_i32 = arith.constant 0 : i32
    %c0_i32_0 = arith.constant 0 : i32
    %c0_i32_1 = arith.constant 0 : i32
    return %c0_i32, %c0_i32_0 : i32, i32
  }
  func.func @transform_7(%arg0: i32, %arg1: i32) -> (i32, i32) {
    %c0_i32 = arith.constant 0 : i32
    %c0_i32_0 = arith.constant 0 : i32
    %c0_i32_1 = arith.constant 0 : i32
    return %c0_i32, %c0_i32_0 : i32, i32
  }
  func.func @transform_8(%arg0: i32, %arg1: i32) -> (i32, i32) {
    %c0_i32 = arith.constant 0 : i32
    %c0_i32_0 = arith.constant 0 : i32
    %c0_i32_1 = arith.constant 0 : i32
    return %c0_i32, %c0_i32_0 : i32, i32
  }
  func.func @transform_9(%arg0: i32, %arg1: i32) -> (i32, i32) {
    %c0_i32 = arith.constant 0 : i32
    %c0_i32_0 = arith.constant 0 : i32
    %c0_i32_1 = arith.constant 0 : i32
    return %c0_i32, %c0_i32_0 : i32, i32
  }
  func.func @transform_10(%arg0: i32, %arg1: i32) -> (i32, i32) {
    %c0_i32 = arith.constant 0 : i32
    %c0_i32_0 = arith.constant 0 : i32
    return %arg0, %c0_i32 : i32, i32
  }
}

</mosaic_0001>

<llo_original>
// kernel: _rnn_forward_impl.1
$region0: #{_rnn_forward_impl.1}
  #allocation0 [shape = 'u32[]', space=smem, size = 0x4, offset = 0x4, fixed_abs, tag = 'smem constant byte address 0x4 - core index']
  #allocation1 [shape = 'u32[144,128]{1,0:T(1,128)}', space=vmem, size = 0x12000, scoped, tag = 'internal scratch']
  #allocation2 [shape = 'f32[8,320]{1,0:T(8,128)}', space=vmem, size = 0x3000, scoped, tag = 'scratch operand']
  %s0 = inlined_call_operand.vmem [shape: f32[8,8,32], index: 0, kind: input, shape index: {}]
  %s1 = inlined_call_operand.vmem [shape: f32[32,320], index: 1, kind: input, shape index: {}]
  %s2 = inlined_call_operand.hbm [shape: f32[320,320], index: 2, kind: input, shape index: {}]
  %s3 = inlined_call_operand.vmem [shape: f32[1,320], index: 3, kind: input, shape index: {}]
  %s4 = inlined_call_operand.vmem [shape: f32[320,80], index: 4, kind: input, shape index: {}]
  %s5 = inlined_call_operand.vmem [shape: f32[1,80], index: 5, kind: input, shape index: {}]
  %s6 = inlined_call_operand.vmem [shape: f32[80,20], index: 6, kind: input, shape index: {}]
  %s7 = inlined_call_operand.vmem [shape: f32[1,20], index: 7, kind: input, shape index: {}]
  %s8 = inlined_call_operand.vmem [shape: f32[20,2], index: 8, kind: input, shape index: {}]
  %s9 = inlined_call_operand.vmem [shape: f32[1,2], index: 9, kind: input, shape index: {}]
  %s10 = inlined_call_operand.vmem [shape: f32[8,2], index: 10, kind: output, shape index: {}]
  %s11 = sld [smem:[#allocation0]]
  $region62: #{_rnn_forward_impl.1} parent=0
    _
  %s13 = ssub.s32 1, %s11
  %s14 = scalar_select 0, %s13, %s11
  $region1: #{_rnn_forward_impl.1} parent=0
    #allocation3 [shape = 'u8[491520]{0}', space=vmem, size = 0x78000, scoped, tag = 'input window, operand 2, single buffered']
    #allocation4 [shape = 's32[1]{0}', space=sflag, size = 0x4, scoped, tag = 'scoped memory for _rnn_forward_impl.1']
    %15 = vsyncpa [#allocation4], 0
    // Predicated region
    $region2: #{_rnn_forward_impl.1} parent=1 // pred_check
      _
    $region3: #{_rnn_forward_impl.1} parent=1 // pred_check_branch
      %17 = sbr.rel (0) target = $region5
    $region4: #{_rnn_forward_impl.1} parent=1 // pred_region
      _
    $region5: #{_rnn_forward_impl.1} parent=1 // pred_fallthru
      _
    // Predicated region
    $region6: #{_rnn_forward_impl.1} parent=1 // pred_check
      _
    $region7: #{_rnn_forward_impl.1} parent=1 // pred_check_branch
      %19 = sbr.rel (0) target = $region9
    $region8: #{_rnn_forward_impl.1} parent=1 // pred_region
      _
    $region9: #{_rnn_forward_impl.1} parent=1 // pred_fallthru
      _
    // Predicated region
    $region10: #{_rnn_forward_impl.1} parent=1 // pred_check
      _
    $region11: #{_rnn_forward_impl.1} parent=1 // pred_check_branch
      %21 = sbr.rel (0) target = $region13
    $region12: #{_rnn_forward_impl.1} parent=1 // pred_region
      %s23 = ssub.s32 15360, 15360
      %24 = vsyncadd [#allocation4], %s23
      %s25 = sshll.u32 [#allocation3], 4
      %s26 = int_to_ptr.vmem [resolvable:$true] %s25
      %31 = dma.hbm_to_vmem [thread:$0]  %s2, 15360, %s26, [#allocation4], 384, 384, 24
    $region13: #{_rnn_forward_impl.1} parent=1 // pred_fallthru
      _
    // Predicated region
    $region14: #{_rnn_forward_impl.1} parent=1 // pred_check
      _
    $region15: #{_rnn_forward_impl.1} parent=1 // pred_check_branch
      %33 = sbr.rel (0) target = $region17
    $region16: #{_rnn_forward_impl.1} parent=1 // pred_region
      _
    $region17: #{_rnn_forward_impl.1} parent=1 // pred_fallthru
      _
    // Predicated region
    $region18: #{_rnn_forward_impl.1} parent=1 // pred_check
      _
    $region19: #{_rnn_forward_impl.1} parent=1 // pred_check_branch
      %35 = sbr.rel (0) target = $region21
    $region20: #{_rnn_forward_impl.1} parent=1 // pred_region
      _
    $region21: #{_rnn_forward_impl.1} parent=1 // pred_fallthru
      _
    // Predicated region
    $region22: #{_rnn_forward_impl.1} parent=1 // pred_check
      _
    $region23: #{_rnn_forward_impl.1} parent=1 // pred_check_branch
      %37 = sbr.rel (0) target = $region25
    $region24: #{_rnn_forward_impl.1} parent=1 // pred_region
      _
    $region25: #{_rnn_forward_impl.1} parent=1 // pred_fallthru
      _
    // Predicated region
    $region26: #{_rnn_forward_impl.1} parent=1 // pred_check
      _
    $region27: #{_rnn_forward_impl.1} parent=1 // pred_check_branch
      %39 = sbr.rel (0) target = $region29
    $region28: #{_rnn_forward_impl.1} parent=1 // pred_region
      _
    $region29: #{_rnn_forward_impl.1} parent=1 // pred_fallthru
      _
    // Predicated region
    $region30: #{_rnn_forward_impl.1} parent=1 // pred_check
      _
    $region31: #{_rnn_forward_impl.1} parent=1 // pred_check_branch
      %41 = sbr.rel (0) target = $region33
    $region32: #{_rnn_forward_impl.1} parent=1 // pred_region
      _
    $region33: #{_rnn_forward_impl.1} parent=1 // pred_fallthru
      _
    // Predicated region
    $region34: #{_rnn_forward_impl.1} parent=1 // pred_check
      _
    $region35: #{_rnn_forward_impl.1} parent=1 // pred_check_branch
      %43 = sbr.rel (0) target = $region37
    $region36: #{_rnn_forward_impl.1} parent=1 // pred_region
      _
    $region37: #{_rnn_forward_impl.1} parent=1 // pred_fallthru
      _
    // Predicated region
    $region38: #{_rnn_forward_impl.1} parent=1 // pred_check
      _
    $region39: #{_rnn_forward_impl.1} parent=1 // pred_check_branch
      %45 = sbr.rel (0) target = $region41
    $region40: #{_rnn_forward_impl.1} parent=1 // pred_region
      _
    $region41: #{_rnn_forward_impl.1} parent=1 // pred_fallthru
      _
    // Predicated region
    $region42: #{_rnn_forward_impl.1} parent=1 // pred_check
      _
    $region43: #{_rnn_forward_impl.1} parent=1 // pred_check_branch
      %47 = sbr.rel (0) target = $region45
    $region44: #{_rnn_forward_impl.1} parent=1 // pred_region
      %48 = dma.done [#allocation4], 15360
    $region45: #{_rnn_forward_impl.1} parent=1 // pred_fallthru
      _
    %p49 = scmp.eq.s32.totalorder 0, 0
    // Predicated region
    $region46: #{_rnn_forward_impl.1} parent=1 // pred_check
      %p50 = pneg %p49
    $region47: #{_rnn_forward_impl.1} parent=1 // pred_check_branch
      %52 = sbr.rel (%p50) target = $region49
    $region48: #{_rnn_forward_impl.1} parent=1 // pred_region
      %53 = vst [vmem:[#allocation2] sm:$0xff] 0.0
      %54 = vst [vmem:[#allocation2 + $0x8] sm:$0xff] 0.0
      %vm55 = vcmask 523264
      %56 = vst.msk [vmem:[#allocation2 + $0x10] sm:$0xff] %vm55, 0.0
    $region49: #{_rnn_forward_impl.1} parent=1 // pred_fallthru
      _
    %v57 = vld [vmem:[%s3] sm:$0x7]
    %v58 = vld [vmem:[#allocation2] sm:$0xff]
    %v59 = vld [vmem:[#allocation2 + $0x8] sm:$0xff]
    %v60 = vld [vmem:[#allocation2 + $0x10] sm:$0xff]
    %v61 = vld [vmem:[%s0] sm:$0xff]
    %v62 = vld [vmem:[%s1] sm:$0xff]
    %v63 = vld [vmem:[%s1 + $0x8] sm:$0xff]
    %v64 = vld [vmem:[%s1 + $0x10] sm:$0xff]
    %v65 = vld [vmem:[%s1 + $0x18] sm:$0xff]
    %v66 = vld [vmem:[%s1 + $0x20] sm:$0xff]
    %v67 = vld [vmem:[%s1 + $0x28] sm:$0xff]
    %v68 = vld [vmem:[%s1 + $0x30] sm:$0xff]
    %v69 = vld [vmem:[%s1 + $0x38] sm:$0xff]
    %v70 = vld [vmem:[%s1 + $0x40] sm:$0xff]
    %v71 = vld [vmem:[%s1 + $0x48] sm:$0xff]
    %v72 = vld [vmem:[%s1 + $0x50] sm:$0xff]
    %v73 = vld [vmem:[%s1 + $0x58] sm:$0xff]
    %v74 = vld [vmem:[#allocation3] sm:$0xff]
    %v75 = vld [vmem:[#allocation3 + $0x8] sm:$0xff]
    %v76 = vld [vmem:[#allocation3 + $0x10] sm:$0xff]
    %v77 = vld [vmem:[#allocation3 + $0x18] sm:$0xff]
    %v78 = vld [vmem:[#allocation3 + $0x20] sm:$0xff]
    %v79 = vld [vmem:[#allocation3 + $0x28] sm:$0xff]
    %v80 = vld [vmem:[#allocation3 + $0x30] sm:$0xff]
    %v81 = vld [vmem:[#allocation3 + $0x38] sm:$0xff]
    %v82 = vld [vmem:[#allocation3 + $0x40] sm:$0xff]
    %v83 = vld [vmem:[#allocation3 + $0x48] sm:$0xff]
    %v84 = vld [vmem:[#allocation3 + $0x50] sm:$0xff]
    %v85 = vld [vmem:[#allocation3 + $0x58] sm:$0xff]
    %v86 = vld [vmem:[#allocation3 + $0x60] sm:$0xff]
    %v87 = vld [vmem:[#allocation3 + $0x68] sm:$0xff]
    %v88 = vld [vmem:[#allocation3 + $0x70] sm:$0xff]
    %v89 = vld [vmem:[#allocation3 + $0x78] sm:$0xff]
    %v90 = vld [vmem:[#allocation3 + $0x80] sm:$0xff]
    %v91 = vld [vmem:[#allocation3 + $0x88] sm:$0xff]
    %v92 = vld [vmem:[#allocation3 + $0x90] sm:$0xff]
    %v93 = vld [vmem:[#allocation3 + $0x98] sm:$0xff]
    %v94 = vld [vmem:[#allocation3 + $0xa0] sm:$0xff]
    %v95 = vld [vmem:[#allocation3 + $0xa8] sm:$0xff]
    %v96 = vld [vmem:[#allocation3 + $0xb0] sm:$0xff]
    %v97 = vld [vmem:[#allocation3 + $0xb8] sm:$0xff]
    %v98 = vld [vmem:[#allocation3 + $0xc0] sm:$0xff]
    %v99 = vld [vmem:[#allocation3 + $0xc8] sm:$0xff]
    %v100 = vld [vmem:[#allocation3 + $0xd0] sm:$0xff]
    %v101 = vld [vmem:[#allocation3 + $0xd8] sm:$0xff]
    %v102 = vld [vmem:[#allocation3 + $0xe0] sm:$0xff]
    %v103 = vld [vmem:[#allocation3 + $0xe8] sm:$0xff]
    %v104 = vld [vmem:[#allocation3 + $0xf0] sm:$0xff]
    %v105 = vld [vmem:[#allocation3 + $0xf8] sm:$0xff]
    %v106 = vld [vmem:[#allocation3 + $0x100] sm:$0xff]
    %v107 = vld [vmem:[#allocation3 + $0x108] sm:$0xff]
    %v108 = vld [vmem:[#allocation3 + $0x110] sm:$0xff]
    %v109 = vld [vmem:[#allocation3 + $0x118] sm:$0xff]
    %v110 = vld [vmem:[#allocation3 + $0x120] sm:$0xff]
    %v111 = vld [vmem:[#allocation3 + $0x128] sm:$0xff]
    %v112 = vld [vmem:[#allocation3 + $0x130] sm:$0xff]
    %v113 = vld [vmem:[#allocation3 + $0x138] sm:$0xff]
    %v114 = vld [vmem:[#allocation3 + $0x140] sm:$0xff]
    %v115 = vld [vmem:[#allocation3 + $0x148] sm:$0xff]
    %v116 = vld [vmem:[#allocation3 + $0x150] sm:$0xff]
    %v117 = vld [vmem:[#allocation3 + $0x158] sm:$0xff]
    %v118 = vld [vmem:[#allocation3 + $0x160] sm:$0xff]
    %v119 = vld [vmem:[#allocation3 + $0x168] sm:$0xff]
    %v120 = vld [vmem:[#allocation3 + $0x170] sm:$0xff]
    %v121 = vld [vmem:[#allocation3 + $0x178] sm:$0xff]
    %v122 = vld [vmem:[#allocation3 + $0x180] sm:$0xff]
    %v123 = vld [vmem:[#allocation3 + $0x188] sm:$0xff]
    %v124 = vld [vmem:[#allocation3 + $0x190] sm:$0xff]
    %v125 = vld [vmem:[#allocation3 + $0x198] sm:$0xff]
    %v126 = vld [vmem:[#allocation3 + $0x1a0] sm:$0xff]
    %v127 = vld [vmem:[#allocation3 + $0x1a8] sm:$0xff]
    %v128 = vld [vmem:[#allocation3 + $0x1b0] sm:$0xff]
    %v129 = vld [vmem:[#allocation3 + $0x1b8] sm:$0xff]
    %v130 = vld [vmem:[#allocation3 + $0x1c0] sm:$0xff]
    %v131 = vld [vmem:[#allocation3 + $0x1c8] sm:$0xff]
    %v132 = vld [vmem:[#allocation3 + $0x1d0] sm:$0xff]
    %v133 = vld [vmem:[#allocation3 + $0x1d8] sm:$0xff]
    %v134 = vld [vmem:[#allocation3 + $0x1e0] sm:$0xff]
    %v135 = vld [vmem:[#allocation3 + $0x1e8] sm:$0xff]
    %v136 = vld [vmem:[#allocation3 + $0x1f0] sm:$0xff]
    %v137 = vld [vmem:[#allocation3 + $0x1f8] sm:$0xff]
    %v138 = vld [vmem:[#allocation3 + $0x200] sm:$0xff]
    %v139 = vld [vmem:[#allocation3 + $0x208] sm:$0xff]
    %v140 = vld [vmem:[#allocation3 + $0x210] sm:$0xff]
    %v141 = vld [vmem:[#allocation3 + $0x218] sm:$0xff]
    %v142 = vld [vmem:[#allocation3 + $0x220] sm:$0xff]
    %v143 = vld [vmem:[#allocation3 + $0x228] sm:$0xff]
    %v144 = vld [vmem:[#allocation3 + $0x230] sm:$0xff]
    %v145 = vld [vmem:[#allocation3 + $0x238] sm:$0xff]
    %v146 = vld [vmem:[#allocation3 + $0x240] sm:$0xff]
    %v147 = vld [vmem:[#allocation3 + $0x248] sm:$0xff]
    %v148 = vld [vmem:[#allocation3 + $0x250] sm:$0xff]
    %v149 = vld [vmem:[#allocation3 + $0x258] sm:$0xff]
    %v150 = vld [vmem:[#allocation3 + $0x260] sm:$0xff]
    %v151 = vld [vmem:[#allocation3 + $0x268] sm:$0xff]
    %v152 = vld [vmem:[#allocation3 + $0x270] sm:$0xff]
    %v153 = vld [vmem:[#allocation3 + $0x278] sm:$0xff]
    %v154 = vld [vmem:[#allocation3 + $0x280] sm:$0xff]
    %v155 = vld [vmem:[#allocation3 + $0x288] sm:$0xff]
    %v156 = vld [vmem:[#allocation3 + $0x290] sm:$0xff]
    %v157 = vld [vmem:[#allocation3 + $0x298] sm:$0xff]
    %v158 = vld [vmem:[#allocation3 + $0x2a0] sm:$0xff]
    %v159 = vld [vmem:[#allocation3 + $0x2a8] sm:$0xff]
    %v160 = vld [vmem:[#allocation3 + $0x2b0] sm:$0xff]
    %v161 = vld [vmem:[#allocation3 + $0x2b8] sm:$0xff]
    %v162 = vld [vmem:[#allocation3 + $0x2c0] sm:$0xff]
    %v163 = vld [vmem:[#allocation3 + $0x2c8] sm:$0xff]
    %v164 = vld [vmem:[#allocation3 + $0x2d0] sm:$0xff]
    %v165 = vld [vmem:[#allocation3 + $0x2d8] sm:$0xff]
    %v166 = vld [vmem:[#allocation3 + $0x2e0] sm:$0xff]
    %v167 = vld [vmem:[#allocation3 + $0x2e8] sm:$0xff]
    %v168 = vld [vmem:[#allocation3 + $0x2f0] sm:$0xff]
    %v169 = vld [vmem:[#allocation3 + $0x2f8] sm:$0xff]
    %v170 = vld [vmem:[#allocation3 + $0x300] sm:$0xff]
    %v171 = vld [vmem:[#allocation3 + $0x308] sm:$0xff]
    %v172 = vld [vmem:[#allocation3 + $0x310] sm:$0xff]
    %v173 = vld [vmem:[#allocation3 + $0x318] sm:$0xff]
    %v174 = vld [vmem:[#allocation3 + $0x320] sm:$0xff]
    %v175 = vld [vmem:[#allocation3 + $0x328] sm:$0xff]
    %v176 = vld [vmem:[#allocation3 + $0x330] sm:$0xff]
    %v177 = vld [vmem:[#allocation3 + $0x338] sm:$0xff]
    %v178 = vld [vmem:[#allocation3 + $0x340] sm:$0xff]
    %v179 = vld [vmem:[#allocation3 + $0x348] sm:$0xff]
    %v180 = vld [vmem:[#allocation3 + $0x350] sm:$0xff]
    %v181 = vld [vmem:[#allocation3 + $0x358] sm:$0xff]
    %v182 = vld [vmem:[#allocation3 + $0x360] sm:$0xff]
    %v183 = vld [vmem:[#allocation3 + $0x368] sm:$0xff]
    %v184 = vld [vmem:[#allocation3 + $0x370] sm:$0xff]
    %v185 = vld [vmem:[#allocation3 + $0x378] sm:$0xff]
    %v186 = vld [vmem:[#allocation3 + $0x380] sm:$0xff]
    %v187 = vld [vmem:[#allocation3 + $0x388] sm:$0xff]
    %v188 = vld [vmem:[#allocation3 + $0x390] sm:$0xff]
    %v189 = vld [vmem:[#allocation3 + $0x398] sm:$0xff]
    %v190 = vld [vmem:[#allocation3 + $0x3a0] sm:$0xff]
    %v191 = vld [vmem:[#allocation3 + $0x3a8] sm:$0xff]
    %v192 = vld [vmem:[#allocation3 + $0x3b0] sm:$0xff]
    %v193 = vld [vmem:[#allocation3 + $0x3b8] sm:$0xff]
    %vm194 = vcmask 523264
    %v196 = vsel %vm194, %v60, 0
    %198 = vmatprep.subr.mxu0 %v75
    %199 = vmatpush1.msra.mxu0 %v74
    %200 = vmatprep.subr.mxu0 %v78
    %201 = vmatpush1.msra.mxu0 %v77
    %202 = vmatprep.subr.mxu0 %v81
    %203 = vmatpush1.msra.mxu0 %v80
    %204 = vmatprep.subr.mxu0 %v84
    %205 = vmatpush1.msra.mxu0 %v83
    %206 = vmatprep.subr.mxu0 %v87
    %207 = vmatpush1.msra.mxu0 %v86
    %208 = vmatprep.subr.mxu0 %v90
    %209 = vmatpush1.msra.mxu0 %v89
    %210 = vmatprep.subr.mxu0 %v93
    %211 = vmatpush1.msra.mxu0 %v92
    %212 = vmatprep.subr.mxu0 %v96
    %213 = vmatpush1.msra.mxu0 %v95
    %214 = vmatprep.subr.mxu0 %v99
    %215 = vmatpush1.msra.mxu0 %v98
    %216 = vmatprep.subr.mxu0 %v102
    %217 = vmatpush1.msra.mxu0 %v101
    %218 = vmatprep.subr.mxu0 %v105
    %219 = vmatpush1.msra.mxu0 %v104
    %220 = vmatprep.subr.mxu0 %v108
    %221 = vmatpush1.msra.mxu0 %v107
    %222 = vmatprep.subr.mxu0 %v111
    %223 = vmatpush1.msra.mxu0 %v110
    %224 = vmatprep.subr.mxu0 %v114
    %225 = vmatpush1.msra.mxu0 %v113
    %226 = vmatprep.subr.mxu0 %v117
    %227 = vmatpush1.msra.mxu0 %v116
    %228 = vmatprep.subr.mxu0 %v120
    %229 = vmatpush1.msra.mxu0 %v119
    %230 = vmatprep.subr.mxu0 %v123
    %231 = vmatpush1.msra.mxu0 %v122
    %232 = vmatprep.subr.mxu0 %v126
    %233 = vmatpush1.msra.mxu0 %v125
    %234 = vmatprep.subr.mxu0 %v129
    %235 = vmatpush1.msra.mxu0 %v128
    %236 = vmatprep.subr.mxu0 %v132
    %237 = vmatpush1.msra.mxu0 %v131
    %238 = vmatprep.subr.mxu0 %v135
    %239 = vmatpush1.msra.mxu0 %v134
    %240 = vmatprep.subr.mxu0 %v138
    %241 = vmatpush1.msra.mxu0 %v137
    %242 = vmatprep.subr.mxu0 %v141
    %243 = vmatpush1.msra.mxu0 %v140
    %244 = vmatprep.subr.mxu0 %v144
    %245 = vmatpush1.msra.mxu0 %v143
    %246 = vmatprep.subr.mxu0 %v147
    %247 = vmatpush1.msra.mxu0 %v146
    %248 = vmatprep.subr.mxu0 %v150
    %249 = vmatpush1.msra.mxu0 %v149
    %250 = vmatprep.subr.mxu0 %v153
    %251 = vmatpush1.msra.mxu0 %v152
    %252 = vmatprep.subr.mxu0 %v156
    %253 = vmatpush1.msra.mxu0 %v155
    %254 = vmatprep.subr.mxu0 %v159
    %255 = vmatpush1.msra.mxu0 %v158
    %256 = vmatprep.subr.mxu0 %v162
    %257 = vmatpush1.msra.mxu0 %v161
    %258 = vmatprep.subr.mxu0 %v165
    %259 = vmatpush1.msra.mxu0 %v164
    %260 = vmatprep.subr.mxu0 %v168
    %261 = vmatpush1.msra.mxu0 %v167
    %262 = vmatprep.mubr.f32.mxu0 %v59
    %263 = vmatmul.mubr.f32.gmra.mrb[0].mxu0 %v58
    %v264 = vpop.f32.mrb[0].mxu0
    %v265 = vadd.f32 0.0, %v264
    %v266 = vpop.f32.mrb[0].mxu0
    %v267 = vadd.f32 0.0, %v266
    %268 = vdwg.mxu0
    %269 = vmatprep.subr.mxu0 %v171
    %270 = vmatpush1.msra.mxu0 %v170
    %271 = vmatprep.subr.mxu0 %v174
    %272 = vmatpush1.msra.mxu0 %v173
    %273 = vmatprep.subr.mxu0 %v177
    %274 = vmatpush1.msra.mxu0 %v176
    %275 = vmatprep.subr.mxu0 %v180
    %276 = vmatpush1.msra.mxu0 %v179
    %277 = vmatprep.subr.mxu0 %v183
    %278 = vmatpush1.msra.mxu0 %v182
    %279 = vmatprep.subr.mxu0 %v186
    %280 = vmatpush1.msra.mxu0 %v185
    %281 = vmatprep.subr.mxu0 %v189
    %282 = vmatpush1.msra.mxu0 %v188
    %283 = vmatprep.subr.mxu0 %v192
    %284 = vmatpush1.msra.mxu0 %v191
    %285 = vmatprep.subr.mxu0 0.0
    %286 = vmatpush1.msra.mxu0 0.0
    %287 = vmatprep.subr.mxu0 0.0
    %288 = vmatpush1.msra.mxu0 0.0
    %289 = vmatprep.subr.mxu0 0.0
    %290 = vmatpush1.msra.mxu0 0.0
    %291 = vmatprep.subr.mxu0 0.0
    %292 = vmatpush1.msra.mxu0 0.0
    %293 = vmatprep.subr.mxu0 0.0
    %294 = vmatpush1.msra.mxu0 0.0
    %295 = vmatprep.subr.mxu0 0.0
    %296 = vmatpush1.msra.mxu0 0.0
    %297 = vmatprep.subr.mxu0 0.0
    %298 = vmatpush1.msra.mxu0 0.0
    %299 = vmatprep.subr.mxu0 0.0
    %300 = vmatpush1.msra.mxu0 0.0
    %301 = vmatprep.subr.mxu0 0.0
    %302 = vmatpush1.msra.mxu0 0.0
    %303 = vmatprep.subr.mxu0 0.0
    %304 = vmatpush1.msra.mxu0 0.0
    %305 = vmatprep.subr.mxu0 0.0
    %306 = vmatpush1.msra.mxu0 0.0
    %307 = vmatprep.subr.mxu0 0.0
    %308 = vmatpush1.msra.mxu0 0.0
    %309 = vmatprep.subr.mxu0 0.0
    %310 = vmatpush1.msra.mxu0 0.0
    %311 = vmatprep.subr.mxu0 0.0
    %312 = vmatpush1.msra.mxu0 0.0
    %313 = vmatprep.subr.mxu0 0.0
    %314 = vmatpush1.msra.mxu0 0.0
    %315 = vmatprep.subr.mxu0 0.0
    %316 = vmatpush1.msra.mxu0 0.0
    %317 = vmatprep.subr.mxu0 0.0
    %318 = vmatpush1.msra.mxu0 0.0
    %319 = vmatprep.subr.mxu0 0.0
    %320 = vmatpush1.msra.mxu0 0.0
    %321 = vmatprep.subr.mxu0 0.0
    %322 = vmatpush1.msra.mxu0 0.0
    %323 = vmatprep.subr.mxu0 0.0
    %324 = vmatpush1.msra.mxu0 0.0
    %325 = vmatprep.subr.mxu0 0.0
    %326 = vmatpush1.msra.mxu0 0.0
    %327 = vmatprep.subr.mxu0 0.0
    %328 = vmatpush1.msra.mxu0 0.0
    %329 = vmatprep.subr.mxu0 0.0
    %330 = vmatpush1.msra.mxu0 0.0
    %331 = vmatprep.subr.mxu0 0.0
    %332 = vmatpush1.msra.mxu0 0.0
    %333 = vmatprep.mubr.f32.mxu0 0.0
    %334 = vmatmul.mubr.f32.gmra.mrb[0].mxu0 %v196
    %v335 = vpop.f32.mrb[0].mxu0
    %v336 = vadd.f32 %v265, %v335
    %v337 = vpop.f32.mrb[0].mxu0
    %v338 = vadd.f32 %v267, %v337
    %339 = vdwg.mxu0
    %340 = vmatprep.subr.mxu0 0.0
    %341 = vmatpush1.msra.mxu0 %v76
    %342 = vmatprep.subr.mxu0 0.0
    %343 = vmatpush1.msra.mxu0 %v79
    %344 = vmatprep.subr.mxu0 0.0
    %345 = vmatpush1.msra.mxu0 %v82
    %346 = vmatprep.subr.mxu0 0.0
    %347 = vmatpush1.msra.mxu0 %v85
    %348 = vmatprep.subr.mxu0 0.0
    %349 = vmatpush1.msra.mxu0 %v88
    %350 = vmatprep.subr.mxu0 0.0
    %351 = vmatpush1.msra.mxu0 %v91
    %352 = vmatprep.subr.mxu0 0.0
    %353 = vmatpush1.msra.mxu0 %v94
    %354 = vmatprep.subr.mxu0 0.0
    %355 = vmatpush1.msra.mxu0 %v97
    %356 = vmatprep.subr.mxu0 0.0
    %357 = vmatpush1.msra.mxu0 %v100
    %358 = vmatprep.subr.mxu0 0.0
    %359 = vmatpush1.msra.mxu0 %v103
    %360 = vmatprep.subr.mxu0 0.0
    %361 = vmatpush1.msra.mxu0 %v106
    %362 = vmatprep.subr.mxu0 0.0
    %363 = vmatpush1.msra.mxu0 %v109
    %364 = vmatprep.subr.mxu0 0.0
    %365 = vmatpush1.msra.mxu0 %v112
    %366 = vmatprep.subr.mxu0 0.0
    %367 = vmatpush1.msra.mxu0 %v115
    %368 = vmatprep.subr.mxu0 0.0
    %369 = vmatpush1.msra.mxu0 %v118
    %370 = vmatprep.subr.mxu0 0.0
    %371 = vmatpush1.msra.mxu0 %v121
    %372 = vmatprep.subr.mxu0 0.0
    %373 = vmatpush1.msra.mxu0 %v124
    %374 = vmatprep.subr.mxu0 0.0
    %375 = vmatpush1.msra.mxu0 %v127
    %376 = vmatprep.subr.mxu0 0.0
    %377 = vmatpush1.msra.mxu0 %v130
    %378 = vmatprep.subr.mxu0 0.0
    %379 = vmatpush1.msra.mxu0 %v133
    %380 = vmatprep.subr.mxu0 0.0
    %381 = vmatpush1.msra.mxu0 %v136
    %382 = vmatprep.subr.mxu0 0.0
    %383 = vmatpush1.msra.mxu0 %v139
    %384 = vmatprep.subr.mxu0 0.0
    %385 = vmatpush1.msra.mxu0 %v142
    %386 = vmatprep.subr.mxu0 0.0
    %387 = vmatpush1.msra.mxu0 %v145
    %388 = vmatprep.subr.mxu0 0.0
    %389 = vmatpush1.msra.mxu0 %v148
    %390 = vmatprep.subr.mxu0 0.0
    %391 = vmatpush1.msra.mxu0 %v151
    %392 = vmatprep.subr.mxu0 0.0
    %393 = vmatpush1.msra.mxu0 %v154
    %394 = vmatprep.subr.mxu0 0.0
    %395 = vmatpush1.msra.mxu0 %v157
    %396 = vmatprep.subr.mxu0 0.0
    %397 = vmatpush1.msra.mxu0 %v160
    %398 = vmatprep.subr.mxu0 0.0
    %399 = vmatpush1.msra.mxu0 %v163
    %400 = vmatprep.subr.mxu0 0.0
    %401 = vmatpush1.msra.mxu0 %v166
    %402 = vmatprep.subr.mxu0 0.0
    %403 = vmatpush1.msra.mxu0 %v169
    %404 = vmatprep.mubr.f32.mxu0 %v59
    %405 = vmatmul.mubr.f32.gmra.mrb[0].mxu0 %v58
    %v406 = vpop.f32.mrb[0].mxu0
    %v407 = vadd.f32 0.0, %v406
    %v408 = vpop.f32.mrb[0].mxu0
    %409 = vdwg.mxu0
    %410 = vmatprep.subr.mxu0 0.0
    %411 = vmatpush1.msra.mxu0 %v172
    %412 = vmatprep.subr.mxu0 0.0
    %413 = vmatpush1.msra.mxu0 %v175
    %414 = vmatprep.subr.mxu0 0.0
    %415 = vmatpush1.msra.mxu0 %v178
    %416 = vmatprep.subr.mxu0 0.0
    %417 = vmatpush1.msra.mxu0 %v181
    %418 = vmatprep.subr.mxu0 0.0
    %419 = vmatpush1.msra.mxu0 %v184
    %420 = vmatprep.subr.mxu0 0.0
    %421 = vmatpush1.msra.mxu0 %v187
    %422 = vmatprep.subr.mxu0 0.0
    %423 = vmatpush1.msra.mxu0 %v190
    %424 = vmatprep.subr.mxu0 0.0
    %425 = vmatpush1.msra.mxu0 %v193
    %426 = vmatprep.subr.mxu0 0.0
    %427 = vmatpush1.msra.mxu0 0.0
    %428 = vmatprep.subr.mxu0 0.0
    %429 = vmatpush1.msra.mxu0 0.0
    %430 = vmatprep.subr.mxu0 0.0
    %431 = vmatpush1.msra.mxu0 0.0
    %432 = vmatprep.subr.mxu0 0.0
    %433 = vmatpush1.msra.mxu0 0.0
    %434 = vmatprep.subr.mxu0 0.0
    %435 = vmatpush1.msra.mxu0 0.0
    %436 = vmatprep.subr.mxu0 0.0
    %437 = vmatpush1.msra.mxu0 0.0
    %438 = vmatprep.subr.mxu0 0.0
    %439 = vmatpush1.msra.mxu0 0.0
    %440 = vmatprep.subr.mxu0 0.0
    %441 = vmatpush1.msra.mxu0 0.0
    %442 = vmatprep.subr.mxu0 0.0
    %443 = vmatpush1.msra.mxu0 0.0
    %444 = vmatprep.subr.mxu0 0.0
    %445 = vmatpush1.msra.mxu0 0.0
    %446 = vmatprep.subr.mxu0 0.0
    %447 = vmatpush1.msra.mxu0 0.0
    %448 = vmatprep.subr.mxu0 0.0
    %449 = vmatpush1.msra.mxu0 0.0
    %450 = vmatprep.subr.mxu0 0.0
    %451 = vmatpush1.msra.mxu0 0.0
    %452 = vmatprep.subr.mxu0 0.0
    %453 = vmatpush1.msra.mxu0 0.0
    %454 = vmatprep.subr.mxu0 0.0
    %455 = vmatpush1.msra.mxu0 0.0
    %456 = vmatprep.subr.mxu0 0.0
    %457 = vmatpush1.msra.mxu0 0.0
    %458 = vmatprep.subr.mxu0 0.0
    %459 = vmatpush1.msra.mxu0 0.0
    %460 = vmatprep.subr.mxu0 0.0
    %461 = vmatpush1.msra.mxu0 0.0
    %462 = vmatprep.subr.mxu0 0.0
    %463 = vmatpush1.msra.mxu0 0.0
    %464 = vmatprep.subr.mxu0 0.0
    %465 = vmatpush1.msra.mxu0 0.0
    %466 = vmatprep.subr.mxu0 0.0
    %467 = vmatpush1.msra.mxu0 0.0
    %468 = vmatprep.subr.mxu0 0.0
    %469 = vmatpush1.msra.mxu0 0.0
    %470 = vmatprep.subr.mxu0 0.0
    %471 = vmatpush1.msra.mxu0 0.0
    %472 = vmatprep.subr.mxu0 0.0
    %473 = vmatpush1.msra.mxu0 0.0
    %474 = vmatprep.mubr.f32.mxu0 0.0
    %475 = vmatmul.mubr.f32.gmra.mrb[0].mxu0 %v196
    %v476 = vpop.f32.mrb[0].mxu0
    %v477 = vadd.f32 %v407, %v476
    %v478 = vpop.f32.mrb[0].mxu0
    %479 = vdwg.mxu0
    %vm480 = vcmask 261120
    %v482 = vsel %vm480, %v61, 0
    %484 = vmatprep.subr.mxu0 %v63
    %485 = vmatpush1.msra.mxu0 %v62
    %486 = vmatprep.subr.mxu0 %v66
    %487 = vmatpush1.msra.mxu0 %v65
    %488 = vmatprep.subr.mxu0 %v69
    %489 = vmatpush1.msra.mxu0 %v68
    %490 = vmatprep.subr.mxu0 %v72
    %491 = vmatpush1.msra.mxu0 %v71
    %492 = vmatprep.subr.mxu0 0.0
    %493 = vmatpush1.msra.mxu0 0.0
    %494 = vmatprep.subr.mxu0 0.0
    %495 = vmatpush1.msra.mxu0 0.0
    %496 = vmatprep.subr.mxu0 0.0
    %497 = vmatpush1.msra.mxu0 0.0
    %498 = vmatprep.subr.mxu0 0.0
    %499 = vmatpush1.msra.mxu0 0.0
    %500 = vmatprep.subr.mxu0 0.0
    %501 = vmatpush1.msra.mxu0 0.0
    %502 = vmatprep.subr.mxu0 0.0
    %503 = vmatpush1.msra.mxu0 0.0
    %504 = vmatprep.subr.mxu0 0.0
    %505 = vmatpush1.msra.mxu0 0.0
    %506 = vmatprep.subr.mxu0 0.0
    %507 = vmatpush1.msra.mxu0 0.0
    %508 = vmatprep.subr.mxu0 0.0
    %509 = vmatpush1.msra.mxu0 0.0
    %510 = vmatprep.subr.mxu0 0.0
    %511 = vmatpush1.msra.mxu0 0.0
    %512 = vmatprep.subr.mxu0 0.0
    %513 = vmatpush1.msra.mxu0 0.0
    %514 = vmatprep.subr.mxu0 0.0
    %515 = vmatpush1.msra.mxu0 0.0
    %516 = vmatprep.subr.mxu0 0.0
    %517 = vmatpush1.msra.mxu0 0.0
    %518 = vmatprep.subr.mxu0 0.0
    %519 = vmatpush1.msra.mxu0 0.0
    %520 = vmatprep.subr.mxu0 0.0
    %521 = vmatpush1.msra.mxu0 0.0
    %522 = vmatprep.subr.mxu0 0.0
    %523 = vmatpush1.msra.mxu0 0.0
    %524 = vmatprep.subr.mxu0 0.0
    %525 = vmatpush1.msra.mxu0 0.0
    %526 = vmatprep.subr.mxu0 0.0
    %527 = vmatpush1.msra.mxu0 0.0
    %528 = vmatprep.subr.mxu0 0.0
    %529 = vmatpush1.msra.mxu0 0.0
    %530 = vmatprep.subr.mxu0 0.0
    %531 = vmatpush1.msra.mxu0 0.0
    %532 = vmatprep.subr.mxu0 0.0
    %533 = vmatpush1.msra.mxu0 0.0
    %534 = vmatprep.subr.mxu0 0.0
    %535 = vmatpush1.msra.mxu0 0.0
    %536 = vmatprep.subr.mxu0 0.0
    %537 = vmatpush1.msra.mxu0 0.0
    %538 = vmatprep.subr.mxu0 0.0
    %539 = vmatpush1.msra.mxu0 0.0
    %540 = vmatprep.subr.mxu0 0.0
    %541 = vmatpush1.msra.mxu0 0.0
    %542 = vmatprep.subr.mxu0 0.0
    %543 = vmatpush1.msra.mxu0 0.0
    %544 = vmatprep.subr.mxu0 0.0
    %545 = vmatpush1.msra.mxu0 0.0
    %546 = vmatprep.subr.mxu0 0.0
    %547 = vmatpush1.msra.mxu0 0.0
    %548 = vmatprep.mubr.f32.mxu0 0.0
    %549 = vmatmul.mubr.f32.gmra.mrb[0].mxu0 %v482
    %v550 = vpop.f32.mrb[0].mxu0
    %v551 = vadd.f32 %v336, %v550
    %v552 = vpop.f32.mrb[0].mxu0
    %v553 = vadd.f32 %v338, %v552
    %554 = vdwg.mxu0
    %555 = vmatprep.subr.mxu0 0.0
    %556 = vmatpush1.msra.mxu0 %v64
    %557 = vmatprep.subr.mxu0 0.0
    %558 = vmatpush1.msra.mxu0 %v67
    %559 = vmatprep.subr.mxu0 0.0
    %560 = vmatpush1.msra.mxu0 %v70
    %561 = vmatprep.subr.mxu0 0.0
    %562 = vmatpush1.msra.mxu0 %v73
    %563 = vmatprep.subr.mxu0 0.0
    %564 = vmatpush1.msra.mxu0 0.0
    %565 = vmatprep.subr.mxu0 0.0
    %566 = vmatpush1.msra.mxu0 0.0
    %567 = vmatprep.subr.mxu0 0.0
    %568 = vmatpush1.msra.mxu0 0.0
    %569 = vmatprep.subr.mxu0 0.0
    %570 = vmatpush1.msra.mxu0 0.0
    %571 = vmatprep.subr.mxu0 0.0
    %572 = vmatpush1.msra.mxu0 0.0
    %573 = vmatprep.subr.mxu0 0.0
    %574 = vmatpush1.msra.mxu0 0.0
    %575 = vmatprep.subr.mxu0 0.0
    %576 = vmatpush1.msra.mxu0 0.0
    %577 = vmatprep.subr.mxu0 0.0
    %578 = vmatpush1.msra.mxu0 0.0
    %579 = vmatprep.subr.mxu0 0.0
    %580 = vmatpush1.msra.mxu0 0.0
    %581 = vmatprep.subr.mxu0 0.0
    %582 = vmatpush1.msra.mxu0 0.0
    %583 = vmatprep.subr.mxu0 0.0
    %584 = vmatpush1.msra.mxu0 0.0
    %585 = vmatprep.subr.mxu0 0.0
    %586 = vmatpush1.msra.mxu0 0.0
    %587 = vmatprep.subr.mxu0 0.0
    %588 = vmatpush1.msra.mxu0 0.0
    %589 = vmatprep.subr.mxu0 0.0
    %590 = vmatpush1.msra.mxu0 0.0
    %591 = vmatprep.subr.mxu0 0.0
    %592 = vmatpush1.msra.mxu0 0.0
    %593 = vmatprep.subr.mxu0 0.0
    %594 = vmatpush1.msra.mxu0 0.0
    %595 = vmatprep.subr.mxu0 0.0
    %596 = vmatpush1.msra.mxu0 0.0
    %597 = vmatprep.subr.mxu0 0.0
    %598 = vmatpush1.msra.mxu0 0.0
    %599 = vmatprep.subr.mxu0 0.0
    %600 = vmatpush1.msra.mxu0 0.0
    %601 = vmatprep.subr.mxu0 0.0
    %602 = vmatpush1.msra.mxu0 0.0
    %603 = vmatprep.subr.mxu0 0.0
    %604 = vmatpush1.msra.mxu0 0.0
    %605 = vmatprep.subr.mxu0 0.0
    %606 = vmatpush1.msra.mxu0 0.0
    %607 = vmatprep.subr.mxu0 0.0
    %608 = vmatpush1.msra.mxu0 0.0
    %609 = vmatprep.subr.mxu0 0.0
    %610 = vmatpush1.msra.mxu0 0.0
    %611 = vmatprep.subr.mxu0 0.0
    %612 = vmatpush1.msra.mxu0 0.0
    %613 = vmatprep.subr.mxu0 0.0
    %614 = vmatpush1.msra.mxu0 0.0
    %615 = vmatprep.subr.mxu0 0.0
    %616 = vmatpush1.msra.mxu0 0.0
    %617 = vmatprep.subr.mxu0 0.0
    %618 = vmatpush1.msra.mxu0 0.0
    %619 = vmatprep.mubr.f32.mxu0 0.0
    %620 = vmatmul.mubr.f32.gmra.mrb[0].mxu0 %v482
    %v621 = vpop.f32.mrb[0].mxu0
    %v622 = vadd.f32 %v477, %v621
    %v623 = vpop.f32.mrb[0].mxu0
    %624 = vdwg.mxu0
    %v626 = vlaneseq
    %v627 = vshrl.u32 %v626, 7
    %v628 = vsub.s32 0, %v627
    %v629 = vrot.slane %v57, %v628
    %v630 = vlaneseq
    %v631 = vshrl.u32 %v630, 7
    %v632 = vsub.s32 1, %v631
    %v633 = vrot.slane %v57, %v632
    %v634 = vlaneseq
    %v635 = vshrl.u32 %v634, 7
    %v636 = vsub.s32 2, %v635
    %v637 = vrot.slane %v57, %v636
    %v641 = vadd.f32 %v551, %v629
    %v642 = vadd.f32 %v553, %v633
    %v643 = vadd.f32 %v622, %v637
    %v644 = vtanh.pop %v641
    %v645 = vtanh.pop %v642
    %v646 = vtanh.pop %v643
    %s647 = scalar_lea.vmem %s0, 8
    %v648 = vld [vmem:[%s647] sm:$0xff]
    %v650 = vsel %vm194, %v646, 0
    %652 = vmatprep.subr.mxu0 %v75
    %653 = vmatpush1.msra.mxu0 %v74
    %654 = vmatprep.subr.mxu0 %v78
    %655 = vmatpush1.msra.mxu0 %v77
    %656 = vmatprep.subr.mxu0 %v81
    %657 = vmatpush1.msra.mxu0 %v80
    %658 = vmatprep.subr.mxu0 %v84
    %659 = vmatpush1.msra.mxu0 %v83
    %660 = vmatprep.subr.mxu0 %v87
    %661 = vmatpush1.msra.mxu0 %v86
    %662 = vmatprep.subr.mxu0 %v90
    %663 = vmatpush1.msra.mxu0 %v89
    %664 = vmatprep.subr.mxu0 %v93
    %665 = vmatpush1.msra.mxu0 %v92
    %666 = vmatprep.subr.mxu0 %v96
    %667 = vmatpush1.msra.mxu0 %v95
    %668 = vmatprep.subr.mxu0 %v99
    %669 = vmatpush1.msra.mxu0 %v98
    %670 = vmatprep.subr.mxu0 %v102
    %671 = vmatpush1.msra.mxu0 %v101
    %672 = vmatprep.subr.mxu0 %v105
    %673 = vmatpush1.msra.mxu0 %v104
    %674 = vmatprep.subr.mxu0 %v108
    %675 = vmatpush1.msra.mxu0 %v107
    %676 = vmatprep.subr.mxu0 %v111
    %677 = vmatpush1.msra.mxu0 %v110
    %678 = vmatprep.subr.mxu0 %v114
    %679 = vmatpush1.msra.mxu0 %v113
    %680 = vmatprep.subr.mxu0 %v117
    %681 = vmatpush1.msra.mxu0 %v116
    %682 = vmatprep.subr.mxu0 %v120
    %683 = vmatpush1.msra.mxu0 %v119
    %684 = vmatprep.subr.mxu0 %v123
    %685 = vmatpush1.msra.mxu0 %v122
    %686 = vmatprep.subr.mxu0 %v126
    %687 = vmatpush1.msra.mxu0 %v125
    %688 = vmatprep.subr.mxu0 %v129
    %689 = vmatpush1.msra.mxu0 %v128
    %690 = vmatprep.subr.mxu0 %v132
    %691 = vmatpush1.msra.mxu0 %v131
    %692 = vmatprep.subr.mxu0 %v135
    %693 = vmatpush1.msra.mxu0 %v134
    %694 = vmatprep.subr.mxu0 %v138
    %695 = vmatpush1.msra.mxu0 %v137
    %696 = vmatprep.subr.mxu0 %v141
    %697 = vmatpush1.msra.mxu0 %v140
    %698 = vmatprep.subr.mxu0 %v144
    %699 = vmatpush1.msra.mxu0 %v143
    %700 = vmatprep.subr.mxu0 %v147
    %701 = vmatpush1.msra.mxu0 %v146
    %702 = vmatprep.subr.mxu0 %v150
    %703 = vmatpush1.msra.mxu0 %v149
    %704 = vmatprep.subr.mxu0 %v153
    %705 = vmatpush1.msra.mxu0 %v152
    %706 = vmatprep.subr.mxu0 %v156
    %707 = vmatpush1.msra.mxu0 %v155
    %708 = vmatprep.subr.mxu0 %v159
    %709 = vmatpush1.msra.mxu0 %v158
    %710 = vmatprep.subr.mxu0 %v162
    %711 = vmatpush1.msra.mxu0 %v161
    %712 = vmatprep.subr.mxu0 %v165
    %713 = vmatpush1.msra.mxu0 %v164
    %714 = vmatprep.subr.mxu0 %v168
    %715 = vmatpush1.msra.mxu0 %v167
    %716 = vmatprep.mubr.f32.mxu0 %v645
    %717 = vmatmul.mubr.f32.gmra.mrb[0].mxu0 %v644
    %v718 = vpop.f32.mrb[0].mxu0
    %v719 = vadd.f32 0.0, %v718
    %v720 = vpop.f32.mrb[0].mxu0
    %v721 = vadd.f32 0.0, %v720
    %722 = vdwg.mxu0
    %723 = vmatprep.subr.mxu0 %v171
    %724 = vmatpush1.msra.mxu0 %v170
    %725 = vmatprep.subr.mxu0 %v174
    %726 = vmatpush1.msra.mxu0 %v173
    %727 = vmatprep.subr.mxu0 %v177
    %728 = vmatpush1.msra.mxu0 %v176
    %729 = vmatprep.subr.mxu0 %v180
    %730 = vmatpush1.msra.mxu0 %v179
    %731 = vmatprep.subr.mxu0 %v183
    %732 = vmatpush1.msra.mxu0 %v182
    %733 = vmatprep.subr.mxu0 %v186
    %734 = vmatpush1.msra.mxu0 %v185
    %735 = vmatprep.subr.mxu0 %v189
    %736 = vmatpush1.msra.mxu0 %v188
    %737 = vmatprep.subr.mxu0 %v192
    %738 = vmatpush1.msra.mxu0 %v191
    %739 = vmatprep.subr.mxu0 0.0
    %740 = vmatpush1.msra.mxu0 0.0
    %741 = vmatprep.subr.mxu0 0.0
    %742 = vmatpush1.msra.mxu0 0.0
    %743 = vmatprep.subr.mxu0 0.0
    %744 = vmatpush1.msra.mxu0 0.0
    %745 = vmatprep.subr.mxu0 0.0
    %746 = vmatpush1.msra.mxu0 0.0
    %747 = vmatprep.subr.mxu0 0.0
    %748 = vmatpush1.msra.mxu0 0.0
    %749 = vmatprep.subr.mxu0 0.0
    %750 = vmatpush1.msra.mxu0 0.0
    %751 = vmatprep.subr.mxu0 0.0
    %752 = vmatpush1.msra.mxu0 0.0
    %753 = vmatprep.subr.mxu0 0.0
    %754 = vmatpush1.msra.mxu0 0.0
    %755 = vmatprep.subr.mxu0 0.0
    %756 = vmatpush1.msra.mxu0 0.0
    %757 = vmatprep.subr.mxu0 0.0
    %758 = vmatpush1.msra.mxu0 0.0
    %759 = vmatprep.subr.mxu0 0.0
    %760 = vmatpush1.msra.mxu0 0.0
    %761 = vmatprep.subr.mxu0 0.0
    %762 = vmatpush1.msra.mxu0 0.0
    %763 = vmatprep.subr.mxu0 0.0
    %764 = vmatpush1.msra.mxu0 0.0
    %765 = vmatprep.subr.mxu0 0.0
    %766 = vmatpush1.msra.mxu0 0.0
    %767 = vmatprep.subr.mxu0 0.0
    %768 = vmatpush1.msra.mxu0 0.0
    %769 = vmatprep.subr.mxu0 0.0
    %770 = vmatpush1.msra.mxu0 0.0
    %771 = vmatprep.subr.mxu0 0.0
    %772 = vmatpush1.msra.mxu0 0.0
    %773 = vmatprep.subr.mxu0 0.0
    %774 = vmatpush1.msra.mxu0 0.0
    %775 = vmatprep.subr.mxu0 0.0
    %776 = vmatpush1.msra.mxu0 0.0
    %777 = vmatprep.subr.mxu0 0.0
    %778 = vmatpush1.msra.mxu0 0.0
    %779 = vmatprep.subr.mxu0 0.0
    %780 = vmatpush1.msra.mxu0 0.0
    %781 = vmatprep.subr.mxu0 0.0
    %782 = vmatpush1.msra.mxu0 0.0
    %783 = vmatprep.subr.mxu0 0.0
    %784 = vmatpush1.msra.mxu0 0.0
    %785 = vmatprep.subr.mxu0 0.0
    %786 = vmatpush1.msra.mxu0 0.0
    %787 = vmatprep.mubr.f32.mxu0 0.0
    %788 = vmatmul.mubr.f32.gmra.mrb[0].mxu0 %v650
    %v789 = vpop.f32.mrb[0].mxu0
    %v790 = vadd.f32 %v719, %v789
    %v791 = vpop.f32.mrb[0].mxu0
    %v792 = vadd.f32 %v721, %v791
    %793 = vdwg.mxu0
    %794 = vmatprep.subr.mxu0 0.0
    %795 = vmatpush1.msra.mxu0 %v76
    %796 = vmatprep.subr.mxu0 0.0
    %797 = vmatpush1.msra.mxu0 %v79
    %798 = vmatprep.subr.mxu0 0.0
    %799 = vmatpush1.msra.mxu0 %v82
    %800 = vmatprep.subr.mxu0 0.0
    %801 = vmatpush1.msra.mxu0 %v85
    %802 = vmatprep.subr.mxu0 0.0
    %803 = vmatpush1.msra.mxu0 %v88
    %804 = vmatprep.subr.mxu0 0.0
    %805 = vmatpush1.msra.mxu0 %v91
    %806 = vmatprep.subr.mxu0 0.0
    %807 = vmatpush1.msra.mxu0 %v94
    %808 = vmatprep.subr.mxu0 0.0
    %809 = vmatpush1.msra.mxu0 %v97
    %810 = vmatprep.subr.mxu0 0.0
    %811 = vmatpush1.msra.mxu0 %v100
    %812 = vmatprep.subr.mxu0 0.0
    %813 = vmatpush1.msra.mxu0 %v103
    %814 = vmatprep.subr.mxu0 0.0
    %815 = vmatpush1.msra.mxu0 %v106
    %816 = vmatprep.subr.mxu0 0.0
    %817 = vmatpush1.msra.mxu0 %v109
    %818 = vmatprep.subr.mxu0 0.0
    %819 = vmatpush1.msra.mxu0 %v112
    %820 = vmatprep.subr.mxu0 0.0
    %821 = vmatpush1.msra.mxu0 %v115
    %822 = vmatprep.subr.mxu0 0.0
    %823 = vmatpush1.msra.mxu0 %v118
    %824 = vmatprep.subr.mxu0 0.0
    %825 = vmatpush1.msra.mxu0 %v121
    %826 = vmatprep.subr.mxu0 0.0
    %827 = vmatpush1.msra.mxu0 %v124
    %828 = vmatprep.subr.mxu0 0.0
    %829 = vmatpush1.msra.mxu0 %v127
    %830 = vmatprep.subr.mxu0 0.0
    %831 = vmatpush1.msra.mxu0 %v130
    %832 = vmatprep.subr.mxu0 0.0
    %833 = vmatpush1.msra.mxu0 %v133
    %834 = vmatprep.subr.mxu0 0.0
    %835 = vmatpush1.msra.mxu0 %v136
    %836 = vmatprep.subr.mxu0 0.0
    %837 = vmatpush1.msra.mxu0 %v139
    %838 = vmatprep.subr.mxu0 0.0
    %839 = vmatpush1.msra.mxu0 %v142
    %840 = vmatprep.subr.mxu0 0.0
    %841 = vmatpush1.msra.mxu0 %v145
    %842 = vmatprep.subr.mxu0 0.0
    %843 = vmatpush1.msra.mxu0 %v148
    %844 = vmatprep.subr.mxu0 0.0
    %845 = vmatpush1.msra.mxu0 %v151
    %846 = vmatprep.subr.mxu0 0.0
    %847 = vmatpush1.msra.mxu0 %v154
    %848 = vmatprep.subr.mxu0 0.0
    %849 = vmatpush1.msra.mxu0 %v157
    %850 = vmatprep.subr.mxu0 0.0
    %851 = vmatpush1.msra.mxu0 %v160
    %852 = vmatprep.subr.mxu0 0.0
    %853 = vmatpush1.msra.mxu0 %v163
    %854 = vmatprep.subr.mxu0 0.0
    %855 = vmatpush1.msra.mxu0 %v166
    %856 = vmatprep.subr.mxu0 0.0
    %857 = vmatpush1.msra.mxu0 %v169
    %858 = vmatprep.mubr.f32.mxu0 %v645
    %859 = vmatmul.mubr.f32.gmra.mrb[0].mxu0 %v644
    %v860 = vpop.f32.mrb[0].mxu0
    %v861 = vadd.f32 0.0, %v860
    %v862 = vpop.f32.mrb[0].mxu0
    %863 = vdwg.mxu0
    %864 = vmatprep.subr.mxu0 0.0
    %865 = vmatpush1.msra.mxu0 %v172
    %866 = vmatprep.subr.mxu0 0.0
    %867 = vmatpush1.msra.mxu0 %v175
    %868 = vmatprep.subr.mxu0 0.0
    %869 = vmatpush1.msra.mxu0 %v178
    %870 = vmatprep.subr.mxu0 0.0
    %871 = vmatpush1.msra.mxu0 %v181
    %872 = vmatprep.subr.mxu0 0.0
    %873 = vmatpush1.msra.mxu0 %v184
    %874 = vmatprep.subr.mxu0 0.0
    %875 = vmatpush1.msra.mxu0 %v187
    %876 = vmatprep.subr.mxu0 0.0
    %877 = vmatpush1.msra.mxu0 %v190
    %878 = vmatprep.subr.mxu0 0.0
    %879 = vmatpush1.msra.mxu0 %v193
    %880 = vmatprep.subr.mxu0 0.0
    %881 = vmatpush1.msra.mxu0 0.0
    %882 = vmatprep.subr.mxu0 0.0
    %883 = vmatpush1.msra.mxu0 0.0
    %884 = vmatprep.subr.mxu0 0.0
    %885 = vmatpush1.msra.mxu0 0.0
    %886 = vmatprep.subr.mxu0 0.0
    %887 = vmatpush1.msra.mxu0 0.0
    %888 = vmatprep.subr.mxu0 0.0
    %889 = vmatpush1.msra.mxu0 0.0
    %890 = vmatprep.subr.mxu0 0.0
    %891 = vmatpush1.msra.mxu0 0.0
    %892 = vmatprep.subr.mxu0 0.0
    %893 = vmatpush1.msra.mxu0 0.0
    %894 = vmatprep.subr.mxu0 0.0
    %895 = vmatpush1.msra.mxu0 0.0
    %896 = vmatprep.subr.mxu0 0.0
    %897 = vmatpush1.msra.mxu0 0.0
    %898 = vmatprep.subr.mxu0 0.0
    %899 = vmatpush1.msra.mxu0 0.0
    %900 = vmatprep.subr.mxu0 0.0
    %901 = vmatpush1.msra.mxu0 0.0
    %902 = vmatprep.subr.mxu0 0.0
    %903 = vmatpush1.msra.mxu0 0.0
    %904 = vmatprep.subr.mxu0 0.0
    %905 = vmatpush1.msra.mxu0 0.0
    %906 = vmatprep.subr.mxu0 0.0
    %907 = vmatpush1.msra.mxu0 0.0
    %908 = vmatprep.subr.mxu0 0.0
    %909 = vmatpush1.msra.mxu0 0.0
    %910 = vmatprep.subr.mxu0 0.0
    %911 = vmatpush1.msra.mxu0 0.0
    %912 = vmatprep.subr.mxu0 0.0
    %913 = vmatpush1.msra.mxu0 0.0
    %914 = vmatprep.subr.mxu0 0.0
    %915 = vmatpush1.msra.mxu0 0.0
    %916 = vmatprep.subr.mxu0 0.0
    %917 = vmatpush1.msra.mxu0 0.0
    %918 = vmatprep.subr.mxu0 0.0
    %919 = vmatpush1.msra.mxu0 0.0
    %920 = vmatprep.subr.mxu0 0.0
    %921 = vmatpush1.msra.mxu0 0.0
    %922 = vmatprep.subr.mxu0 0.0
    %923 = vmatpush1.msra.mxu0 0.0
    %924 = vmatprep.subr.mxu0 0.0
    %925 = vmatpush1.msra.mxu0 0.0
    %926 = vmatprep.subr.mxu0 0.0
    %927 = vmatpush1.msra.mxu0 0.0
    %928 = vmatprep.mubr.f32.mxu0 0.0
    %929 = vmatmul.mubr.f32.gmra.mrb[0].mxu0 %v650
    %v930 = vpop.f32.mrb[0].mxu0
    %v931 = vadd.f32 %v861, %v930
    %v932 = vpop.f32.mrb[0].mxu0
    %933 = vdwg.mxu0
    %v935 = vsel %vm480, %v648, 0
    %937 = vmatprep.subr.mxu0 %v63
    %938 = vmatpush1.msra.mxu0 %v62
    %939 = vmatprep.subr.mxu0 %v66
    %940 = vmatpush1.msra.mxu0 %v65
    %941 = vmatprep.subr.mxu0 %v69
    %942 = vmatpush1.msra.mxu0 %v68
    %943 = vmatprep.subr.mxu0 %v72
    %944 = vmatpush1.msra.mxu0 %v71
    %945 = vmatprep.subr.mxu0 0.0
    %946 = vmatpush1.msra.mxu0 0.0
    %947 = vmatprep.subr.mxu0 0.0
    %948 = vmatpush1.msra.mxu0 0.0
    %949 = vmatprep.subr.mxu0 0.0
    %950 = vmatpush1.msra.mxu0 0.0
    %951 = vmatprep.subr.mxu0 0.0
    %952 = vmatpush1.msra.mxu0 0.0
    %953 = vmatprep.subr.mxu0 0.0
    %954 = vmatpush1.msra.mxu0 0.0
    %955 = vmatprep.subr.mxu0 0.0
    %956 = vmatpush1.msra.mxu0 0.0
    %957 = vmatprep.subr.mxu0 0.0
    %958 = vmatpush1.msra.mxu0 0.0
    %959 = vmatprep.subr.mxu0 0.0
    %960 = vmatpush1.msra.mxu0 0.0
    %961 = vmatprep.subr.mxu0 0.0
    %962 = vmatpush1.msra.mxu0 0.0
    %963 = vmatprep.subr.mxu0 0.0
    %964 = vmatpush1.msra.mxu0 0.0
    %965 = vmatprep.subr.mxu0 0.0
    %966 = vmatpush1.msra.mxu0 0.0
    %967 = vmatprep.subr.mxu0 0.0
    %968 = vmatpush1.msra.mxu0 0.0
    %969 = vmatprep.subr.mxu0 0.0
    %970 = vmatpush1.msra.mxu0 0.0
    %971 = vmatprep.subr.mxu0 0.0
    %972 = vmatpush1.msra.mxu0 0.0
    %973 = vmatprep.subr.mxu0 0.0
    %974 = vmatpush1.msra.mxu0 0.0
    %975 = vmatprep.subr.mxu0 0.0
    %976 = vmatpush1.msra.mxu0 0.0
    %977 = vmatprep.subr.mxu0 0.0
    %978 = vmatpush1.msra.mxu0 0.0
    %979 = vmatprep.subr.mxu0 0.0
    %980 = vmatpush1.msra.mxu0 0.0
    %981 = vmatprep.subr.mxu0 0.0
    %982 = vmatpush1.msra.mxu0 0.0
    %983 = vmatprep.subr.mxu0 0.0
    %984 = vmatpush1.msra.mxu0 0.0
    %985 = vmatprep.subr.mxu0 0.0
    %986 = vmatpush1.msra.mxu0 0.0
    %987 = vmatprep.subr.mxu0 0.0
    %988 = vmatpush1.msra.mxu0 0.0
    %989 = vmatprep.subr.mxu0 0.0
    %990 = vmatpush1.msra.mxu0 0.0
    %991 = vmatprep.subr.mxu0 0.0
    %992 = vmatpush1.msra.mxu0 0.0
    %993 = vmatprep.subr.mxu0 0.0
    %994 = vmatpush1.msra.mxu0 0.0
    %995 = vmatprep.subr.mxu0 0.0
    %996 = vmatpush1.msra.mxu0 0.0
    %997 = vmatprep.subr.mxu0 0.0
    %998 = vmatpush1.msra.mxu0 0.0
    %999 = vmatprep.subr.mxu0 0.0
    %1000 = vmatpush1.msra.mxu0 0.0
    %1001 = vmatprep.mubr.f32.mxu0 0.0
    %1002 = vmatmul.mubr.f32.gmra.mrb[0].mxu0 %v935
    %v1003 = vpop.f32.mrb[0].mxu0
    %v1004 = vadd.f32 %v790, %v1003
    %v1005 = vpop.f32.mrb[0].mxu0
    %v1006 = vadd.f32 %v792, %v1005
    %1007 = vdwg.mxu0
    %1008 = vmatprep.subr.mxu0 0.0
    %1009 = vmatpush1.msra.mxu0 %v64
    %1010 = vmatprep.subr.mxu0 0.0
    %1011 = vmatpush1.msra.mxu0 %v67
    %1012 = vmatprep.subr.mxu0 0.0
    %1013 = vmatpush1.msra.mxu0 %v70
    %1014 = vmatprep.subr.mxu0 0.0
    %1015 = vmatpush1.msra.mxu0 %v73
    %1016 = vmatprep.subr.mxu0 0.0
    %1017 = vmatpush1.msra.mxu0 0.0
    %1018 = vmatprep.subr.mxu0 0.0
    %1019 = vmatpush1.msra.mxu0 0.0
    %1020 = vmatprep.subr.mxu0 0.0
    %1021 = vmatpush1.msra.mxu0 0.0
    %1022 = vmatprep.subr.mxu0 0.0
    %1023 = vmatpush1.msra.mxu0 0.0
    %1024 = vmatprep.subr.mxu0 0.0
    %1025 = vmatpush1.msra.mxu0 0.0
    %1026 = vmatprep.subr.mxu0 0.0
    %1027 = vmatpush1.msra.mxu0 0.0
    %1028 = vmatprep.subr.mxu0 0.0
    %1029 = vmatpush1.msra.mxu0 0.0
    %1030 = vmatprep.subr.mxu0 0.0
    %1031 = vmatpush1.msra.mxu0 0.0
    %1032 = vmatprep.subr.mxu0 0.0
    %1033 = vmatpush1.msra.mxu0 0.0
    %1034 = vmatprep.subr.mxu0 0.0
    %1035 = vmatpush1.msra.mxu0 0.0
    %1036 = vmatprep.subr.mxu0 0.0
    %1037 = vmatpush1.msra.mxu0 0.0
    %1038 = vmatprep.subr.mxu0 0.0
    %1039 = vmatpush1.msra.mxu0 0.0
    %1040 = vmatprep.subr.mxu0 0.0
    %1041 = vmatpush1.msra.mxu0 0.0
    %1042 = vmatprep.subr.mxu0 0.0
    %1043 = vmatpush1.msra.mxu0 0.0
    %1044 = vmatprep.subr.mxu0 0.0
    %1045 = vmatpush1.msra.mxu0 0.0
    %1046 = vmatprep.subr.mxu0 0.0
    %1047 = vmatpush1.msra.mxu0 0.0
    %1048 = vmatprep.subr.mxu0 0.0
    %1049 = vmatpush1.msra.mxu0 0.0
    %1050 = vmatprep.subr.mxu0 0.0
    %1051 = vmatpush1.msra.mxu0 0.0
    %1052 = vmatprep.subr.mxu0 0.0
    %1053 = vmatpush1.msra.mxu0 0.0
    %1054 = vmatprep.subr.mxu0 0.0
    %1055 = vmatpush1.msra.mxu0 0.0
    %1056 = vmatprep.subr.mxu0 0.0
    %1057 = vmatpush1.msra.mxu0 0.0
    %1058 = vmatprep.subr.mxu0 0.0
    %1059 = vmatpush1.msra.mxu0 0.0
    %1060 = vmatprep.subr.mxu0 0.0
    %1061 = vmatpush1.msra.mxu0 0.0
    %1062 = vmatprep.subr.mxu0 0.0
    %1063 = vmatpush1.msra.mxu0 0.0
    %1064 = vmatprep.subr.mxu0 0.0
    %1065 = vmatpush1.msra.mxu0 0.0
    %1066 = vmatprep.subr.mxu0 0.0
    %1067 = vmatpush1.msra.mxu0 0.0
    %1068 = vmatprep.subr.mxu0 0.0
    %1069 = vmatpush1.msra.mxu0 0.0
    %1070 = vmatprep.subr.mxu0 0.0
    %1071 = vmatpush1.msra.mxu0 0.0
    %1072 = vmatprep.mubr.f32.mxu0 0.0
    %1073 = vmatmul.mubr.f32.gmra.mrb[0].mxu0 %v935
    %v1074 = vpop.f32.mrb[0].mxu0
    %v1075 = vadd.f32 %v931, %v1074
    %v1076 = vpop.f32.mrb[0].mxu0
    %1077 = vdwg.mxu0
    %v1078 = vadd.f32 %v1004, %v629
    %v1079 = vadd.f32 %v1006, %v633
    %v1080 = vadd.f32 %v1075, %v637
    %v1081 = vtanh.pop %v1078
    %v1082 = vtanh.pop %v1079
    %v1083 = vtanh.pop %v1080
    %s1084 = scalar_lea.vmem %s0, 16
    %v1085 = vld [vmem:[%s1084] sm:$0xff]
    %v1087 = vsel %vm194, %v1083, 0
    %1089 = vmatprep.subr.mxu0 %v75
    %1090 = vmatpush1.msra.mxu0 %v74
    %1091 = vmatprep.subr.mxu0 %v78
    %1092 = vmatpush1.msra.mxu0 %v77
    %1093 = vmatprep.subr.mxu0 %v81
    %1094 = vmatpush1.msra.mxu0 %v80
    %1095 = vmatprep.subr.mxu0 %v84
    %1096 = vmatpush1.msra.mxu0 %v83
    %1097 = vmatprep.subr.mxu0 %v87
    %1098 = vmatpush1.msra.mxu0 %v86
    %1099 = vmatprep.subr.mxu0 %v90
    %1100 = vmatpush1.msra.mxu0 %v89
    %1101 = vmatprep.subr.mxu0 %v93
    %1102 = vmatpush1.msra.mxu0 %v92
    %1103 = vmatprep.subr.mxu0 %v96
    %1104 = vmatpush1.msra.mxu0 %v95
    %1105 = vmatprep.subr.mxu0 %v99
    %1106 = vmatpush1.msra.mxu0 %v98
    %1107 = vmatprep.subr.mxu0 %v102
    %1108 = vmatpush1.msra.mxu0 %v101
    %1109 = vmatprep.subr.mxu0 %v105
    %1110 = vmatpush1.msra.mxu0 %v104
    %1111 = vmatprep.subr.mxu0 %v108
    %1112 = vmatpush1.msra.mxu0 %v107
    %1113 = vmatprep.subr.mxu0 %v111
    %1114 = vmatpush1.msra.mxu0 %v110
    %1115 = vmatprep.subr.mxu0 %v114
    %1116 = vmatpush1.msra.mxu0 %v113
    %1117 = vmatprep.subr.mxu0 %v117
    %1118 = vmatpush1.msra.mxu0 %v116
    %1119 = vmatprep.subr.mxu0 %v120
    %1120 = vmatpush1.msra.mxu0 %v119
    %1121 = vmatprep.subr.mxu0 %v123
    %1122 = vmatpush1.msra.mxu0 %v122
    %1123 = vmatprep.subr.mxu0 %v126
    %1124 = vmatpush1.msra.mxu0 %v125
    %1125 = vmatprep.subr.mxu0 %v129
    %1126 = vmatpush1.msra.mxu0 %v128
    %1127 = vmatprep.subr.mxu0 %v132
    %1128 = vmatpush1.msra.mxu0 %v131
    %1129 = vmatprep.subr.mxu0 %v135
    %1130 = vmatpush1.msra.mxu0 %v134
    %1131 = vmatprep.subr.mxu0 %v138
    %1132 = vmatpush1.msra.mxu0 %v137
    %1133 = vmatprep.subr.mxu0 %v141
    %1134 = vmatpush1.msra.mxu0 %v140
    %1135 = vmatprep.subr.mxu0 %v144
    %1136 = vmatpush1.msra.mxu0 %v143
    %1137 = vmatprep.subr.mxu0 %v147
    %1138 = vmatpush1.msra.mxu0 %v146
    %1139 = vmatprep.subr.mxu0 %v150
    %1140 = vmatpush1.msra.mxu0 %v149
    %1141 = vmatprep.subr.mxu0 %v153
    %1142 = vmatpush1.msra.mxu0 %v152
    %1143 = vmatprep.subr.mxu0 %v156
    %1144 = vmatpush1.msra.mxu0 %v155
    %1145 = vmatprep.subr.mxu0 %v159
    %1146 = vmatpush1.msra.mxu0 %v158
    %1147 = vmatprep.subr.mxu0 %v162
    %1148 = vmatpush1.msra.mxu0 %v161
    %1149 = vmatprep.subr.mxu0 %v165
    %1150 = vmatpush1.msra.mxu0 %v164
    %1151 = vmatprep.subr.mxu0 %v168
    %1152 = vmatpush1.msra.mxu0 %v167
    %1153 = vmatprep.mubr.f32.mxu0 %v1082
    %1154 = vmatmul.mubr.f32.gmra.mrb[0].mxu0 %v1081
    %v1155 = vpop.f32.mrb[0].mxu0
    %v1156 = vadd.f32 0.0, %v1155
    %v1157 = vpop.f32.mrb[0].mxu0
    %v1158 = vadd.f32 0.0, %v1157
    %1159 = vdwg.mxu0
    %1160 = vmatprep.subr.mxu0 %v171
    %1161 = vmatpush1.msra.mxu0 %v170
    %1162 = vmatprep.subr.mxu0 %v174
    %1163 = vmatpush1.msra.mxu0 %v173
    %1164 = vmatprep.subr.mxu0 %v177
    %1165 = vmatpush1.msra.mxu0 %v176
    %1166 = vmatprep.subr.mxu0 %v180
    %1167 = vmatpush1.msra.mxu0 %v179
    %1168 = vmatprep.subr.mxu0 %v183
    %1169 = vmatpush1.msra.mxu0 %v182
    %1170 = vmatprep.subr.mxu0 %v186
    %1171 = vmatpush1.msra.mxu0 %v185
    %1172 = vmatprep.subr.mxu0 %v189
    %1173 = vmatpush1.msra.mxu0 %v188
    %1174 = vmatprep.subr.mxu0 %v192
    %1175 = vmatpush1.msra.mxu0 %v191
    %1176 = vmatprep.subr.mxu0 0.0
    %1177 = vmatpush1.msra.mxu0 0.0
    %1178 = vmatprep.subr.mxu0 0.0
    %1179 = vmatpush1.msra.mxu0 0.0
    %1180 = vmatprep.subr.mxu0 0.0
    %1181 = vmatpush1.msra.mxu0 0.0
    %1182 = vmatprep.subr.mxu0 0.0
    %1183 = vmatpush1.msra.mxu0 0.0
    %1184 = vmatprep.subr.mxu0 0.0
    %1185 = vmatpush1.msra.mxu0 0.0
    %1186 = vmatprep.subr.mxu0 0.0
    %1187 = vmatpush1.msra.mxu0 0.0
    %1188 = vmatprep.subr.mxu0 0.0
    %1189 = vmatpush1.msra.mxu0 0.0
    %1190 = vmatprep.subr.mxu0 0.0
    %1191 = vmatpush1.msra.mxu0 0.0
    %1192 = vmatprep.subr.mxu0 0.0
    %1193 = vmatpush1.msra.mxu0 0.0
    %1194 = vmatprep.subr.mxu0 0.0
    %1195 = vmatpush1.msra.mxu0 0.0
    %1196 = vmatprep.subr.mxu0 0.0
    %1197 = vmatpush1.msra.mxu0 0.0
    %1198 = vmatprep.subr.mxu0 0.0
    %1199 = vmatpush1.msra.mxu0 0.0
    %1200 = vmatprep.subr.mxu0 0.0
    %1201 = vmatpush1.msra.mxu0 0.0
    %1202 = vmatprep.subr.mxu0 0.0
    %1203 = vmatpush1.msra.mxu0 0.0
    %1204 = vmatprep.subr.mxu0 0.0
    %1205 = vmatpush1.msra.mxu0 0.0
    %1206 = vmatprep.subr.mxu0 0.0
    %1207 = vmatpush1.msra.mxu0 0.0
    %1208 = vmatprep.subr.mxu0 0.0
    %1209 = vmatpush1.msra.mxu0 0.0
    %1210 = vmatprep.subr.mxu0 0.0
    %1211 = vmatpush1.msra.mxu0 0.0
    %1212 = vmatprep.subr.mxu0 0.0
    %1213 = vmatpush1.msra.mxu0 0.0
    %1214 = vmatprep.subr.mxu0 0.0
    %1215 = vmatpush1.msra.mxu0 0.0
    %1216 = vmatprep.subr.mxu0 0.0
    %1217 = vmatpush1.msra.mxu0 0.0
    %1218 = vmatprep.subr.mxu0 0.0
    %1219 = vmatpush1.msra.mxu0 0.0
    %1220 = vmatprep.subr.mxu0 0.0
    %1221 = vmatpush1.msra.mxu0 0.0
    %1222 = vmatprep.subr.mxu0 0.0
    %1223 = vmatpush1.msra.mxu0 0.0
    %1224 = vmatprep.mubr.f32.mxu0 0.0
    %1225 = vmatmul.mubr.f32.gmra.mrb[0].mxu0 %v1087
    %v1226 = vpop.f32.mrb[0].mxu0
    %v1227 = vadd.f32 %v1156, %v1226
    %v1228 = vpop.f32.mrb[0].mxu0
    %v1229 = vadd.f32 %v1158, %v1228
    %1230 = vdwg.mxu0
    %1231 = vmatprep.subr.mxu0 0.0
    %1232 = vmatpush1.msra.mxu0 %v76
    %1233 = vmatprep.subr.mxu0 0.0
    %1234 = vmatpush1.msra.mxu0 %v79
    %1235 = vmatprep.subr.mxu0 0.0
    %1236 = vmatpush1.msra.mxu0 %v82
    %1237 = vmatprep.subr.mxu0 0.0
    %1238 = vmatpush1.msra.mxu0 %v85
    %1239 = vmatprep.subr.mxu0 0.0
    %1240 = vmatpush1.msra.mxu0 %v88
    %1241 = vmatprep.subr.mxu0 0.0
    %1242 = vmatpush1.msra.mxu0 %v91
    %1243 = vmatprep.subr.mxu0 0.0
    %1244 = vmatpush1.msra.mxu0 %v94
    %1245 = vmatprep.subr.mxu0 0.0
    %1246 = vmatpush1.msra.mxu0 %v97
    %1247 = vmatprep.subr.mxu0 0.0
    %1248 = vmatpush1.msra.mxu0 %v100
    %1249 = vmatprep.subr.mxu0 0.0
    %1250 = vmatpush1.msra.mxu0 %v103
    %1251 = vmatprep.subr.mxu0 0.0
    %1252 = vmatpush1.msra.mxu0 %v106
    %1253 = vmatprep.subr.mxu0 0.0
    %1254 = vmatpush1.msra.mxu0 %v109
    %1255 = vmatprep.subr.mxu0 0.0
    %1256 = vmatpush1.msra.mxu0 %v112
    %1257 = vmatprep.subr.mxu0 0.0
    %1258 = vmatpush1.msra.mxu0 %v115
    %1259 = vmatprep.subr.mxu0 0.0
    %1260 = vmatpush1.msra.mxu0 %v118
    %1261 = vmatprep.subr.mxu0 0.0
    %1262 = vmatpush1.msra.mxu0 %v121
    %1263 = vmatprep.subr.mxu0 0.0
    %1264 = vmatpush1.msra.mxu0 %v124
    %1265 = vmatprep.subr.mxu0 0.0
    %1266 = vmatpush1.msra.mxu0 %v127
    %1267 = vmatprep.subr.mxu0 0.0
    %1268 = vmatpush1.msra.mxu0 %v130
    %1269 = vmatprep.subr.mxu0 0.0
    %1270 = vmatpush1.msra.mxu0 %v133
    %1271 = vmatprep.subr.mxu0 0.0
    %1272 = vmatpush1.msra.mxu0 %v136
    %1273 = vmatprep.subr.mxu0 0.0
    %1274 = vmatpush1.msra.mxu0 %v139
    %1275 = vmatprep.subr.mxu0 0.0
    %1276 = vmatpush1.msra.mxu0 %v142
    %1277 = vmatprep.subr.mxu0 0.0
    %1278 = vmatpush1.msra.mxu0 %v145
    %1279 = vmatprep.subr.mxu0 0.0
    %1280 = vmatpush1.msra.mxu0 %v148
    %1281 = vmatprep.subr.mxu0 0.0
    %1282 = vmatpush1.msra.mxu0 %v151
    %1283 = vmatprep.subr.mxu0 0.0
    %1284 = vmatpush1.msra.mxu0 %v154
    %1285 = vmatprep.subr.mxu0 0.0
    %1286 = vmatpush1.msra.mxu0 %v157
    %1287 = vmatprep.subr.mxu0 0.0
    %1288 = vmatpush1.msra.mxu0 %v160
    %1289 = vmatprep.subr.mxu0 0.0
    %1290 = vmatpush1.msra.mxu0 %v163
    %1291 = vmatprep.subr.mxu0 0.0
    %1292 = vmatpush1.msra.mxu0 %v166
    %1293 = vmatprep.subr.mxu0 0.0
    %1294 = vmatpush1.msra.mxu0 %v169
    %1295 = vmatprep.mubr.f32.mxu0 %v1082
    %1296 = vmatmul.mubr.f32.gmra.mrb[0].mxu0 %v1081
    %v1297 = vpop.f32.mrb[0].mxu0
    %v1298 = vadd.f32 0.0, %v1297
    %v1299 = vpop.f32.mrb[0].mxu0
    %1300 = vdwg.mxu0
    %1301 = vmatprep.subr.mxu0 0.0
    %1302 = vmatpush1.msra.mxu0 %v172
    %1303 = vmatprep.subr.mxu0 0.0
    %1304 = vmatpush1.msra.mxu0 %v175
    %1305 = vmatprep.subr.mxu0 0.0
    %1306 = vmatpush1.msra.mxu0 %v178
    %1307 = vmatprep.subr.mxu0 0.0
    %1308 = vmatpush1.msra.mxu0 %v181
    %1309 = vmatprep.subr.mxu0 0.0
    %1310 = vmatpush1.msra.mxu0 %v184
    %1311 = vmatprep.subr.mxu0 0.0
    %1312 = vmatpush1.msra.mxu0 %v187
    %1313 = vmatprep.subr.mxu0 0.0
    %1314 = vmatpush1.msra.mxu0 %v190
    %1315 = vmatprep.subr.mxu0 0.0
    %1316 = vmatpush1.msra.mxu0 %v193
    %1317 = vmatprep.subr.mxu0 0.0
    %1318 = vmatpush1.msra.mxu0 0.0
    %1319 = vmatprep.subr.mxu0 0.0
    %1320 = vmatpush1.msra.mxu0 0.0
    %1321 = vmatprep.subr.mxu0 0.0
    %1322 = vmatpush1.msra.mxu0 0.0
    %1323 = vmatprep.subr.mxu0 0.0
    %1324 = vmatpush1.msra.mxu0 0.0
    %1325 = vmatprep.subr.mxu0 0.0
    %1326 = vmatpush1.msra.mxu0 0.0
    %1327 = vmatprep.subr.mxu0 0.0
    %1328 = vmatpush1.msra.mxu0 0.0
    %1329 = vmatprep.subr.mxu0 0.0
    %1330 = vmatpush1.msra.mxu0 0.0
    %1331 = vmatprep.subr.mxu0 0.0
    %1332 = vmatpush1.msra.mxu0 0.0
    %1333 = vmatprep.subr.mxu0 0.0
    %1334 = vmatpush1.msra.mxu0 0.0
    %1335 = vmatprep.subr.mxu0 0.0
    %1336 = vmatpush1.msra.mxu0 0.0
    %1337 = vmatprep.subr.mxu0 0.0
    %1338 = vmatpush1.msra.mxu0 0.0
    %1339 = vmatprep.subr.mxu0 0.0
    %1340 = vmatpush1.msra.mxu0 0.0
    %1341 = vmatprep.subr.mxu0 0.0
    %1342 = vmatpush1.msra.mxu0 0.0
    %1343 = vmatprep.subr.mxu0 0.0
    %1344 = vmatpush1.msra.mxu0 0.0
    %1345 = vmatprep.subr.mxu0 0.0
    %1346 = vmatpush1.msra.mxu0 0.0
    %1347 = vmatprep.subr.mxu0 0.0
    %1348 = vmatpush1.msra.mxu0 0.0
    %1349 = vmatprep.subr.mxu0 0.0
    %1350 = vmatpush1.msra.mxu0 0.0
    %1351 = vmatprep.subr.mxu0 0.0
    %1352 = vmatpush1.msra.mxu0 0.0
    %1353 = vmatprep.subr.mxu0 0.0
    %1354 = vmatpush1.msra.mxu0 0.0
    %1355 = vmatprep.subr.mxu0 0.0
    %1356 = vmatpush1.msra.mxu0 0.0
    %1357 = vmatprep.subr.mxu0 0.0
    %1358 = vmatpush1.msra.mxu0 0.0
    %1359 = vmatprep.subr.mxu0 0.0
    %1360 = vmatpush1.msra.mxu0 0.0
    %1361 = vmatprep.subr.mxu0 0.0
    %1362 = vmatpush1.msra.mxu0 0.0
    %1363 = vmatprep.subr.mxu0 0.0
    %1364 = vmatpush1.msra.mxu0 0.0
    %1365 = vmatprep.mubr.f32.mxu0 0.0
    %1366 = vmatmul.mubr.f32.gmra.mrb[0].mxu0 %v1087
    %v1367 = vpop.f32.mrb[0].mxu0
    %v1368 = vadd.f32 %v1298, %v1367
    %v1369 = vpop.f32.mrb[0].mxu0
    %1370 = vdwg.mxu0
    %v1372 = vsel %vm480, %v1085, 0
    %1374 = vmatprep.subr.mxu0 %v63
    %1375 = vmatpush1.msra.mxu0 %v62
    %1376 = vmatprep.subr.mxu0 %v66
    %1377 = vmatpush1.msra.mxu0 %v65
    %1378 = vmatprep.subr.mxu0 %v69
    %1379 = vmatpush1.msra.mxu0 %v68
    %1380 = vmatprep.subr.mxu0 %v72
    %1381 = vmatpush1.msra.mxu0 %v71
    %1382 = vmatprep.subr.mxu0 0.0
    %1383 = vmatpush1.msra.mxu0 0.0
    %1384 = vmatprep.subr.mxu0 0.0
    %1385 = vmatpush1.msra.mxu0 0.0
    %1386 = vmatprep.subr.mxu0 0.0
    %1387 = vmatpush1.msra.mxu0 0.0
    %1388 = vmatprep.subr.mxu0 0.0
    %1389 = vmatpush1.msra.mxu0 0.0
    %1390 = vmatprep.subr.mxu0 0.0
    %1391 = vmatpush1.msra.mxu0 0.0
    %1392 = vmatprep.subr.mxu0 0.0
    %1393 = vmatpush1.msra.mxu0 0.0
    %1394 = vmatprep.subr.mxu0 0.0
    %1395 = vmatpush1.msra.mxu0 0.0
    %1396 = vmatprep.subr.mxu0 0.0
    %1397 = vmatpush1.msra.mxu0 0.0
    %1398 = vmatprep.subr.mxu0 0.0
    %1399 = vmatpush1.msra.mxu0 0.0
    %1400 = vmatprep.subr.mxu0 0.0
    %1401 = vmatpush1.msra.mxu0 0.0
    %1402 = vmatprep.subr.mxu0 0.0
    %1403 = vmatpush1.msra.mxu0 0.0
    %1404 = vmatprep.subr.mxu0 0.0
    %1405 = vmatpush1.msra.mxu0 0.0
    %1406 = vmatprep.subr.mxu0 0.0
    %1407 = vmatpush1.msra.mxu0 0.0
    %1408 = vmatprep.subr.mxu0 0.0
    %1409 = vmatpush1.msra.mxu0 0.0
    %1410 = vmatprep.subr.mxu0 0.0
    %1411 = vmatpush1.msra.mxu0 0.0
    %1412 = vmatprep.subr.mxu0 0.0
    %1413 = vmatpush1.msra.mxu0 0.0
    %1414 = vmatprep.subr.mxu0 0.0
    %1415 = vmatpush1.msra.mxu0 0.0
    %1416 = vmatprep.subr.mxu0 0.0
    %1417 = vmatpush1.msra.mxu0 0.0
    %1418 = vmatprep.subr.mxu0 0.0
    %1419 = vmatpush1.msra.mxu0 0.0
    %1420 = vmatprep.subr.mxu0 0.0
    %1421 = vmatpush1.msra.mxu0 0.0
    %1422 = vmatprep.subr.mxu0 0.0
    %1423 = vmatpush1.msra.mxu0 0.0
    %1424 = vmatprep.subr.mxu0 0.0
    %1425 = vmatpush1.msra.mxu0 0.0
    %1426 = vmatprep.subr.mxu0 0.0
    %1427 = vmatpush1.msra.mxu0 0.0
    %1428 = vmatprep.subr.mxu0 0.0
    %1429 = vmatpush1.msra.mxu0 0.0
    %1430 = vmatprep.subr.mxu0 0.0
    %1431 = vmatpush1.msra.mxu0 0.0
    %1432 = vmatprep.subr.mxu0 0.0
    %1433 = vmatpush1.msra.mxu0 0.0
    %1434 = vmatprep.subr.mxu0 0.0
    %1435 = vmatpush1.msra.mxu0 0.0
    %1436 = vmatprep.subr.mxu0 0.0
    %1437 = vmatpush1.msra.mxu0 0.0
    %1438 = vmatprep.mubr.f32.mxu0 0.0
    %1439 = vmatmul.mubr.f32.gmra.mrb[0].mxu0 %v1372
    %v1440 = vpop.f32.mrb[0].mxu0
    %v1441 = vadd.f32 %v1227, %v1440
    %v1442 = vpop.f32.mrb[0].mxu0
    %v1443 = vadd.f32 %v1229, %v1442
    %1444 = vdwg.mxu0
    %1445 = vmatprep.subr.mxu0 0.0
    %1446 = vmatpush1.msra.mxu0 %v64
    %1447 = vmatprep.subr.mxu0 0.0
    %1448 = vmatpush1.msra.mxu0 %v67
    %1449 = vmatprep.subr.mxu0 0.0
    %1450 = vmatpush1.msra.mxu0 %v70
    %1451 = vmatprep.subr.mxu0 0.0
    %1452 = vmatpush1.msra.mxu0 %v73
    %1453 = vmatprep.subr.mxu0 0.0
    %1454 = vmatpush1.msra.mxu0 0.0
    %1455 = vmatprep.subr.mxu0 0.0
    %1456 = vmatpush1.msra.mxu0 0.0
    %1457 = vmatprep.subr.mxu0 0.0
    %1458 = vmatpush1.msra.mxu0 0.0
    %1459 = vmatprep.subr.mxu0 0.0
    %1460 = vmatpush1.msra.mxu0 0.0
    %1461 = vmatprep.subr.mxu0 0.0
    %1462 = vmatpush1.msra.mxu0 0.0
    %1463 = vmatprep.subr.mxu0 0.0
    %1464 = vmatpush1.msra.mxu0 0.0
    %1465 = vmatprep.subr.mxu0 0.0
    %1466 = vmatpush1.msra.mxu0 0.0
    %1467 = vmatprep.subr.mxu0 0.0
    %1468 = vmatpush1.msra.mxu0 0.0
    %1469 = vmatprep.subr.mxu0 0.0
    %1470 = vmatpush1.msra.mxu0 0.0
    %1471 = vmatprep.subr.mxu0 0.0
    %1472 = vmatpush1.msra.mxu0 0.0
    %1473 = vmatprep.subr.mxu0 0.0
    %1474 = vmatpush1.msra.mxu0 0.0
    %1475 = vmatprep.subr.mxu0 0.0
    %1476 = vmatpush1.msra.mxu0 0.0
    %1477 = vmatprep.subr.mxu0 0.0
    %1478 = vmatpush1.msra.mxu0 0.0
    %1479 = vmatprep.subr.mxu0 0.0
    %1480 = vmatpush1.msra.mxu0 0.0
    %1481 = vmatprep.subr.mxu0 0.0
    %1482 = vmatpush1.msra.mxu0 0.0
    %1483 = vmatprep.subr.mxu0 0.0
    %1484 = vmatpush1.msra.mxu0 0.0
    %1485 = vmatprep.subr.mxu0 0.0
    %1486 = vmatpush1.msra.mxu0 0.0
    %1487 = vmatprep.subr.mxu0 0.0
    %1488 = vmatpush1.msra.mxu0 0.0
    %1489 = vmatprep.subr.mxu0 0.0
    %1490 = vmatpush1.msra.mxu0 0.0
    %1491 = vmatprep.subr.mxu0 0.0
    %1492 = vmatpush1.msra.mxu0 0.0
    %1493 = vmatprep.subr.mxu0 0.0
    %1494 = vmatpush1.msra.mxu0 0.0
    %1495 = vmatprep.subr.mxu0 0.0
    %1496 = vmatpush1.msra.mxu0 0.0
    %1497 = vmatprep.subr.mxu0 0.0
    %1498 = vmatpush1.msra.mxu0 0.0
    %1499 = vmatprep.subr.mxu0 0.0
    %1500 = vmatpush1.msra.mxu0 0.0
    %1501 = vmatprep.subr.mxu0 0.0
    %1502 = vmatpush1.msra.mxu0 0.0
    %1503 = vmatprep.subr.mxu0 0.0
    %1504 = vmatpush1.msra.mxu0 0.0
    %1505 = vmatprep.subr.mxu0 0.0
    %1506 = vmatpush1.msra.mxu0 0.0
    %1507 = vmatprep.subr.mxu0 0.0
    %1508 = vmatpush1.msra.mxu0 0.0
    %1509 = vmatprep.mubr.f32.mxu0 0.0
    %1510 = vmatmul.mubr.f32.gmra.mrb[0].mxu0 %v1372
    %v1511 = vpop.f32.mrb[0].mxu0
    %v1512 = vadd.f32 %v1368, %v1511
    %v1513 = vpop.f32.mrb[0].mxu0
    %1514 = vdwg.mxu0
    %v1515 = vadd.f32 %v1441, %v629
    %v1516 = vadd.f32 %v1443, %v633
    %v1517 = vadd.f32 %v1512, %v637
    %v1518 = vtanh.pop %v1515
    %v1519 = vtanh.pop %v1516
    %v1520 = vtanh.pop %v1517
    %s1521 = scalar_lea.vmem %s0, 24
    %v1522 = vld [vmem:[%s1521] sm:$0xff]
    %v1524 = vsel %vm194, %v1520, 0
    %1526 = vmatprep.subr.mxu0 %v75
    %1527 = vmatpush1.msra.mxu0 %v74
    %1528 = vmatprep.subr.mxu0 %v78
    %1529 = vmatpush1.msra.mxu0 %v77
    %1530 = vmatprep.subr.mxu0 %v81
    %1531 = vmatpush1.msra.mxu0 %v80
    %1532 = vmatprep.subr.mxu0 %v84
    %1533 = vmatpush1.msra.mxu0 %v83
    %1534 = vmatprep.subr.mxu0 %v87
    %1535 = vmatpush1.msra.mxu0 %v86
    %1536 = vmatprep.subr.mxu0 %v90
    %1537 = vmatpush1.msra.mxu0 %v89
    %1538 = vmatprep.subr.mxu0 %v93
    %1539 = vmatpush1.msra.mxu0 %v92
    %1540 = vmatprep.subr.mxu0 %v96
    %1541 = vmatpush1.msra.mxu0 %v95
    %1542 = vmatprep.subr.mxu0 %v99
    %1543 = vmatpush1.msra.mxu0 %v98
    %1544 = vmatprep.subr.mxu0 %v102
    %1545 = vmatpush1.msra.mxu0 %v101
    %1546 = vmatprep.subr.mxu0 %v105
    %1547 = vmatpush1.msra.mxu0 %v104
    %1548 = vmatprep.subr.mxu0 %v108
    %1549 = vmatpush1.msra.mxu0 %v107
    %1550 = vmatprep.subr.mxu0 %v111
    %1551 = vmatpush1.msra.mxu0 %v110
    %1552 = vmatprep.subr.mxu0 %v114
    %1553 = vmatpush1.msra.mxu0 %v113
    %1554 = vmatprep.subr.mxu0 %v117
    %1555 = vmatpush1.msra.mxu0 %v116
    %1556 = vmatprep.subr.mxu0 %v120
    %1557 = vmatpush1.msra.mxu0 %v119
    %1558 = vmatprep.subr.mxu0 %v123
    %1559 = vmatpush1.msra.mxu0 %v122
    %1560 = vmatprep.subr.mxu0 %v126
    %1561 = vmatpush1.msra.mxu0 %v125
    %1562 = vmatprep.subr.mxu0 %v129
    %1563 = vmatpush1.msra.mxu0 %v128
    %1564 = vmatprep.subr.mxu0 %v132
    %1565 = vmatpush1.msra.mxu0 %v131
    %1566 = vmatprep.subr.mxu0 %v135
    %1567 = vmatpush1.msra.mxu0 %v134
    %1568 = vmatprep.subr.mxu0 %v138
    %1569 = vmatpush1.msra.mxu0 %v137
    %1570 = vmatprep.subr.mxu0 %v141
    %1571 = vmatpush1.msra.mxu0 %v140
    %1572 = vmatprep.subr.mxu0 %v144
    %1573 = vmatpush1.msra.mxu0 %v143
    %1574 = vmatprep.subr.mxu0 %v147
    %1575 = vmatpush1.msra.mxu0 %v146
    %1576 = vmatprep.subr.mxu0 %v150
    %1577 = vmatpush1.msra.mxu0 %v149
    %1578 = vmatprep.subr.mxu0 %v153
    %1579 = vmatpush1.msra.mxu0 %v152
    %1580 = vmatprep.subr.mxu0 %v156
    %1581 = vmatpush1.msra.mxu0 %v155
    %1582 = vmatprep.subr.mxu0 %v159
    %1583 = vmatpush1.msra.mxu0 %v158
    %1584 = vmatprep.subr.mxu0 %v162
    %1585 = vmatpush1.msra.mxu0 %v161
    %1586 = vmatprep.subr.mxu0 %v165
    %1587 = vmatpush1.msra.mxu0 %v164
    %1588 = vmatprep.subr.mxu0 %v168
    %1589 = vmatpush1.msra.mxu0 %v167
    %1590 = vmatprep.mubr.f32.mxu0 %v1519
    %1591 = vmatmul.mubr.f32.gmra.mrb[0].mxu0 %v1518
    %v1592 = vpop.f32.mrb[0].mxu0
    %v1593 = vadd.f32 0.0, %v1592
    %v1594 = vpop.f32.mrb[0].mxu0
    %v1595 = vadd.f32 0.0, %v1594
    %1596 = vdwg.mxu0
    %1597 = vmatprep.subr.mxu0 %v171
    %1598 = vmatpush1.msra.mxu0 %v170
    %1599 = vmatprep.subr.mxu0 %v174
    %1600 = vmatpush1.msra.mxu0 %v173
    %1601 = vmatprep.subr.mxu0 %v177
    %1602 = vmatpush1.msra.mxu0 %v176
    %1603 = vmatprep.subr.mxu0 %v180
    %1604 = vmatpush1.msra.mxu0 %v179
    %1605 = vmatprep.subr.mxu0 %v183
    %1606 = vmatpush1.msra.mxu0 %v182
    %1607 = vmatprep.subr.mxu0 %v186
    %1608 = vmatpush1.msra.mxu0 %v185
    %1609 = vmatprep.subr.mxu0 %v189
    %1610 = vmatpush1.msra.mxu0 %v188
    %1611 = vmatprep.subr.mxu0 %v192
    %1612 = vmatpush1.msra.mxu0 %v191
    %1613 = vmatprep.subr.mxu0 0.0
    %1614 = vmatpush1.msra.mxu0 0.0
    %1615 = vmatprep.subr.mxu0 0.0
    %1616 = vmatpush1.msra.mxu0 0.0
    %1617 = vmatprep.subr.mxu0 0.0
    %1618 = vmatpush1.msra.mxu0 0.0
    %1619 = vmatprep.subr.mxu0 0.0
    %1620 = vmatpush1.msra.mxu0 0.0
    %1621 = vmatprep.subr.mxu0 0.0
    %1622 = vmatpush1.msra.mxu0 0.0
    %1623 = vmatprep.subr.mxu0 0.0
    %1624 = vmatpush1.msra.mxu0 0.0
    %1625 = vmatprep.subr.mxu0 0.0
    %1626 = vmatpush1.msra.mxu0 0.0
    %1627 = vmatprep.subr.mxu0 0.0
    %1628 = vmatpush1.msra.mxu0 0.0
    %1629 = vmatprep.subr.mxu0 0.0
    %1630 = vmatpush1.msra.mxu0 0.0
    %1631 = vmatprep.subr.mxu0 0.0
    %1632 = vmatpush1.msra.mxu0 0.0
    %1633 = vmatprep.subr.mxu0 0.0
    %1634 = vmatpush1.msra.mxu0 0.0
    %1635 = vmatprep.subr.mxu0 0.0
    %1636 = vmatpush1.msra.mxu0 0.0
    %1637 = vmatprep.subr.mxu0 0.0
    %1638 = vmatpush1.msra.mxu0 0.0
    %1639 = vmatprep.subr.mxu0 0.0
    %1640 = vmatpush1.msra.mxu0 0.0
    %1641 = vmatprep.subr.mxu0 0.0
    %1642 = vmatpush1.msra.mxu0 0.0
    %1643 = vmatprep.subr.mxu0 0.0
    %1644 = vmatpush1.msra.mxu0 0.0
    %1645 = vmatprep.subr.mxu0 0.0
    %1646 = vmatpush1.msra.mxu0 0.0
    %1647 = vmatprep.subr.mxu0 0.0
    %1648 = vmatpush1.msra.mxu0 0.0
    %1649 = vmatprep.subr.mxu0 0.0
    %1650 = vmatpush1.msra.mxu0 0.0
    %1651 = vmatprep.subr.mxu0 0.0
    %1652 = vmatpush1.msra.mxu0 0.0
    %1653 = vmatprep.subr.mxu0 0.0
    %1654 = vmatpush1.msra.mxu0 0.0
    %1655 = vmatprep.subr.mxu0 0.0
    %1656 = vmatpush1.msra.mxu0 0.0
    %1657 = vmatprep.subr.mxu0 0.0
    %1658 = vmatpush1.msra.mxu0 0.0
    %1659 = vmatprep.subr.mxu0 0.0
    %1660 = vmatpush1.msra.mxu0 0.0
    %1661 = vmatprep.mubr.f32.mxu0 0.0
    %1662 = vmatmul.mubr.f32.gmra.mrb[0].mxu0 %v1524
    %v1663 = vpop.f32.mrb[0].mxu0
    %v1664 = vadd.f32 %v1593, %v1663
    %v1665 = vpop.f32.mrb[0].mxu0
    %v1666 = vadd.f32 %v1595, %v1665
    %1667 = vdwg.mxu0
    %1668 = vmatprep.subr.mxu0 0.0
    %1669 = vmatpush1.msra.mxu0 %v76
    %1670 = vmatprep.subr.mxu0 0.0
    %1671 = vmatpush1.msra.mxu0 %v79
    %1672 = vmatprep.subr.mxu0 0.0
    %1673 = vmatpush1.msra.mxu0 %v82
    %1674 = vmatprep.subr.mxu0 0.0
    %1675 = vmatpush1.msra.mxu0 %v85
    %1676 = vmatprep.subr.mxu0 0.0
    %1677 = vmatpush1.msra.mxu0 %v88
    %1678 = vmatprep.subr.mxu0 0.0
    %1679 = vmatpush1.msra.mxu0 %v91
    %1680 = vmatprep.subr.mxu0 0.0
    %1681 = vmatpush1.msra.mxu0 %v94
    %1682 = vmatprep.subr.mxu0 0.0
    %1683 = vmatpush1.msra.mxu0 %v97
    %1684 = vmatprep.subr.mxu0 0.0
    %1685 = vmatpush1.msra.mxu0 %v100
    %1686 = vmatprep.subr.mxu0 0.0
    %1687 = vmatpush1.msra.mxu0 %v103
    %1688 = vmatprep.subr.mxu0 0.0
    %1689 = vmatpush1.msra.mxu0 %v106
    %1690 = vmatprep.subr.mxu0 0.0
    %1691 = vmatpush1.msra.mxu0 %v109
    %1692 = vmatprep.subr.mxu0 0.0
    %1693 = vmatpush1.msra.mxu0 %v112
    %1694 = vmatprep.subr.mxu0 0.0
    %1695 = vmatpush1.msra.mxu0 %v115
    %1696 = vmatprep.subr.mxu0 0.0
    %1697 = vmatpush1.msra.mxu0 %v118
    %1698 = vmatprep.subr.mxu0 0.0
    %1699 = vmatpush1.msra.mxu0 %v121
    %1700 = vmatprep.subr.mxu0 0.0
    %1701 = vmatpush1.msra.mxu0 %v124
    %1702 = vmatprep.subr.mxu0 0.0
    %1703 = vmatpush1.msra.mxu0 %v127
    %1704 = vmatprep.subr.mxu0 0.0
    %1705 = vmatpush1.msra.mxu0 %v130
    %1706 = vmatprep.subr.mxu0 0.0
    %1707 = vmatpush1.msra.mxu0 %v133
    %1708 = vmatprep.subr.mxu0 0.0
    %1709 = vmatpush1.msra.mxu0 %v136
    %1710 = vmatprep.subr.mxu0 0.0
    %1711 = vmatpush1.msra.mxu0 %v139
    %1712 = vmatprep.subr.mxu0 0.0
    %1713 = vmatpush1.msra.mxu0 %v142
    %1714 = vmatprep.subr.mxu0 0.0
    %1715 = vmatpush1.msra.mxu0 %v145
    %1716 = vmatprep.subr.mxu0 0.0
    %1717 = vmatpush1.msra.mxu0 %v148
    %1718 = vmatprep.subr.mxu0 0.0
    %1719 = vmatpush1.msra.mxu0 %v151
    %1720 = vmatprep.subr.mxu0 0.0
    %1721 = vmatpush1.msra.mxu0 %v154
    %1722 = vmatprep.subr.mxu0 0.0
    %1723 = vmatpush1.msra.mxu0 %v157
    %1724 = vmatprep.subr.mxu0 0.0
    %1725 = vmatpush1.msra.mxu0 %v160
    %1726 = vmatprep.subr.mxu0 0.0
    %1727 = vmatpush1.msra.mxu0 %v163
    %1728 = vmatprep.subr.mxu0 0.0
    %1729 = vmatpush1.msra.mxu0 %v166
    %1730 = vmatprep.subr.mxu0 0.0
    %1731 = vmatpush1.msra.mxu0 %v169
    %1732 = vmatprep.mubr.f32.mxu0 %v1519
    %1733 = vmatmul.mubr.f32.gmra.mrb[0].mxu0 %v1518
    %v1734 = vpop.f32.mrb[0].mxu0
    %v1735 = vadd.f32 0.0, %v1734
    %v1736 = vpop.f32.mrb[0].mxu0
    %1737 = vdwg.mxu0
    %1738 = vmatprep.subr.mxu0 0.0
    %1739 = vmatpush1.msra.mxu0 %v172
    %1740 = vmatprep.subr.mxu0 0.0
    %1741 = vmatpush1.msra.mxu0 %v175
    %1742 = vmatprep.subr.mxu0 0.0
    %1743 = vmatpush1.msra.mxu0 %v178
    %1744 = vmatprep.subr.mxu0 0.0
    %1745 = vmatpush1.msra.mxu0 %v181
    %1746 = vmatprep.subr.mxu0 0.0
    %1747 = vmatpush1.msra.mxu0 %v184
    %1748 = vmatprep.subr.mxu0 0.0
    %1749 = vmatpush1.msra.mxu0 %v187
    %1750 = vmatprep.subr.mxu0 0.0
    %1751 = vmatpush1.msra.mxu0 %v190
    %1752 = vmatprep.subr.mxu0 0.0
    %1753 = vmatpush1.msra.mxu0 %v193
    %1754 = vmatprep.subr.mxu0 0.0
    %1755 = vmatpush1.msra.mxu0 0.0
    %1756 = vmatprep.subr.mxu0 0.0
    %1757 = vmatpush1.msra.mxu0 0.0
    %1758 = vmatprep.subr.mxu0 0.0
    %1759 = vmatpush1.msra.mxu0 0.0
    %1760 = vmatprep.subr.mxu0 0.0
    %1761 = vmatpush1.msra.mxu0 0.0
    %1762 = vmatprep.subr.mxu0 0.0
    %1763 = vmatpush1.msra.mxu0 0.0
    %1764 = vmatprep.subr.mxu0 0.0
    %1765 = vmatpush1.msra.mxu0 0.0
    %1766 = vmatprep.subr.mxu0 0.0
    %1767 = vmatpush1.msra.mxu0 0.0
    %1768 = vmatprep.subr.mxu0 0.0
    %1769 = vmatpush1.msra.mxu0 0.0
    %1770 = vmatprep.subr.mxu0 0.0
    %1771 = vmatpush1.msra.mxu0 0.0
    %1772 = vmatprep.subr.mxu0 0.0
    %1773 = vmatpush1.msra.mxu0 0.0
    %1774 = vmatprep.subr.mxu0 0.0
    %1775 = vmatpush1.msra.mxu0 0.0
    %1776 = vmatprep.subr.mxu0 0.0
    %1777 = vmatpush1.msra.mxu0 0.0
    %1778 = vmatprep.subr.mxu0 0.0
    %1779 = vmatpush1.msra.mxu0 0.0
    %1780 = vmatprep.subr.mxu0 0.0
    %1781 = vmatpush1.msra.mxu0 0.0
    %1782 = vmatprep.subr.mxu0 0.0
    %1783 = vmatpush1.msra.mxu0 0.0
    %1784 = vmatprep.subr.mxu0 0.0
    %1785 = vmatpush1.msra.mxu0 0.0
    %1786 = vmatprep.subr.mxu0 0.0
    %1787 = vmatpush1.msra.mxu0 0.0
    %1788 = vmatprep.subr.mxu0 0.0
    %1789 = vmatpush1.msra.mxu0 0.0
    %1790 = vmatprep.subr.mxu0 0.0
    %1791 = vmatpush1.msra.mxu0 0.0
    %1792 = vmatprep.subr.mxu0 0.0
    %1793 = vmatpush1.msra.mxu0 0.0
    %1794 = vmatprep.subr.mxu0 0.0
    %1795 = vmatpush1.msra.mxu0 0.0
    %1796 = vmatprep.subr.mxu0 0.0
    %1797 = vmatpush1.msra.mxu0 0.0
    %1798 = vmatprep.subr.mxu0 0.0
    %1799 = vmatpush1.msra.mxu0 0.0
    %1800 = vmatprep.subr.mxu0 0.0
    %1801 = vmatpush1.msra.mxu0 0.0
    %1802 = vmatprep.mubr.f32.mxu0 0.0
    %1803 = vmatmul.mubr.f32.gmra.mrb[0].mxu0 %v1524
    %v1804 = vpop.f32.mrb[0].mxu0
    %v1805 = vadd.f32 %v1735, %v1804
    %v1806 = vpop.f32.mrb[0].mxu0
    %1807 = vdwg.mxu0
    %v1809 = vsel %vm480, %v1522, 0
    %1811 = vmatprep.subr.mxu0 %v63
    %1812 = vmatpush1.msra.mxu0 %v62
    %1813 = vmatprep.subr.mxu0 %v66
    %1814 = vmatpush1.msra.mxu0 %v65
    %1815 = vmatprep.subr.mxu0 %v69
    %1816 = vmatpush1.msra.mxu0 %v68
    %1817 = vmatprep.subr.mxu0 %v72
    %1818 = vmatpush1.msra.mxu0 %v71
    %1819 = vmatprep.subr.mxu0 0.0
    %1820 = vmatpush1.msra.mxu0 0.0
    %1821 = vmatprep.subr.mxu0 0.0
    %1822 = vmatpush1.msra.mxu0 0.0
    %1823 = vmatprep.subr.mxu0 0.0
    %1824 = vmatpush1.msra.mxu0 0.0
    %1825 = vmatprep.subr.mxu0 0.0
    %1826 = vmatpush1.msra.mxu0 0.0
    %1827 = vmatprep.subr.mxu0 0.0
    %1828 = vmatpush1.msra.mxu0 0.0
    %1829 = vmatprep.subr.mxu0 0.0
    %1830 = vmatpush1.msra.mxu0 0.0
    %1831 = vmatprep.subr.mxu0 0.0
    %1832 = vmatpush1.msra.mxu0 0.0
    %1833 = vmatprep.subr.mxu0 0.0
    %1834 = vmatpush1.msra.mxu0 0.0
    %1835 = vmatprep.subr.mxu0 0.0
    %1836 = vmatpush1.msra.mxu0 0.0
    %1837 = vmatprep.subr.mxu0 0.0
    %1838 = vmatpush1.msra.mxu0 0.0
    %1839 = vmatprep.subr.mxu0 0.0
    %1840 = vmatpush1.msra.mxu0 0.0
    %1841 = vmatprep.subr.mxu0 0.0
    %1842 = vmatpush1.msra.mxu0 0.0
    %1843 = vmatprep.subr.mxu0 0.0
    %1844 = vmatpush1.msra.mxu0 0.0
    %1845 = vmatprep.subr.mxu0 0.0
    %1846 = vmatpush1.msra.mxu0 0.0
    %1847 = vmatprep.subr.mxu0 0.0
    %1848 = vmatpush1.msra.mxu0 0.0
    %1849 = vmatprep.subr.mxu0 0.0
    %1850 = vmatpush1.msra.mxu0 0.0
    %1851 = vmatprep.subr.mxu0 0.0
    %1852 = vmatpush1.msra.mxu0 0.0
    %1853 = vmatprep.subr.mxu0 0.0
    %1854 = vmatpush1.msra.mxu0 0.0
    %1855 = vmatprep.subr.mxu0 0.0
    %1856 = vmatpush1.msra.mxu0 0.0
    %1857 = vmatprep.subr.mxu0 0.0
    %1858 = vmatpush1.msra.mxu0 0.0
    %1859 = vmatprep.subr.mxu0 0.0
    %1860 = vmatpush1.msra.mxu0 0.0
    %1861 = vmatprep.subr.mxu0 0.0
    %1862 = vmatpush1.msra.mxu0 0.0
    %1863 = vmatprep.subr.mxu0 0.0
    %1864 = vmatpush1.msra.mxu0 0.0
    %1865 = vmatprep.subr.mxu0 0.0
    %1866 = vmatpush1.msra.mxu0 0.0
    %1867 = vmatprep.subr.mxu0 0.0
    %1868 = vmatpush1.msra.mxu0 0.0
    %1869 = vmatprep.subr.mxu0 0.0
    %1870 = vmatpush1.msra.mxu0 0.0
    %1871 = vmatprep.subr.mxu0 0.0
    %1872 = vmatpush1.msra.mxu0 0.0
    %1873 = vmatprep.subr.mxu0 0.0
    %1874 = vmatpush1.msra.mxu0 0.0
    %1875 = vmatprep.mubr.f32.mxu0 0.0
    %1876 = vmatmul.mubr.f32.gmra.mrb[0].mxu0 %v1809
    %v1877 = vpop.f32.mrb[0].mxu0
    %v1878 = vadd.f32 %v1664, %v1877
    %v1879 = vpop.f32.mrb[0].mxu0
    %v1880 = vadd.f32 %v1666, %v1879
    %1881 = vdwg.mxu0
    %1882 = vmatprep.subr.mxu0 0.0
    %1883 = vmatpush1.msra.mxu0 %v64
    %1884 = vmatprep.subr.mxu0 0.0
    %1885 = vmatpush1.msra.mxu0 %v67
    %1886 = vmatprep.subr.mxu0 0.0
    %1887 = vmatpush1.msra.mxu0 %v70
    %1888 = vmatprep.subr.mxu0 0.0
    %1889 = vmatpush1.msra.mxu0 %v73
    %1890 = vmatprep.subr.mxu0 0.0
    %1891 = vmatpush1.msra.mxu0 0.0
    %1892 = vmatprep.subr.mxu0 0.0
    %1893 = vmatpush1.msra.mxu0 0.0
    %1894 = vmatprep.subr.mxu0 0.0
    %1895 = vmatpush1.msra.mxu0 0.0
    %1896 = vmatprep.subr.mxu0 0.0
    %1897 = vmatpush1.msra.mxu0 0.0
    %1898 = vmatprep.subr.mxu0 0.0
    %1899 = vmatpush1.msra.mxu0 0.0
    %1900 = vmatprep.subr.mxu0 0.0
    %1901 = vmatpush1.msra.mxu0 0.0
    %1902 = vmatprep.subr.mxu0 0.0
    %1903 = vmatpush1.msra.mxu0 0.0
    %1904 = vmatprep.subr.mxu0 0.0
    %1905 = vmatpush1.msra.mxu0 0.0
    %1906 = vmatprep.subr.mxu0 0.0
    %1907 = vmatpush1.msra.mxu0 0.0
    %1908 = vmatprep.subr.mxu0 0.0
    %1909 = vmatpush1.msra.mxu0 0.0
    %1910 = vmatprep.subr.mxu0 0.0
    %1911 = vmatpush1.msra.mxu0 0.0
    %1912 = vmatprep.subr.mxu0 0.0
    %1913 = vmatpush1.msra.mxu0 0.0
    %1914 = vmatprep.subr.mxu0 0.0
    %1915 = vmatpush1.msra.mxu0 0.0
    %1916 = vmatprep.subr.mxu0 0.0
    %1917 = vmatpush1.msra.mxu0 0.0
    %1918 = vmatprep.subr.mxu0 0.0
    %1919 = vmatpush1.msra.mxu0 0.0
    %1920 = vmatprep.subr.mxu0 0.0
    %1921 = vmatpush1.msra.mxu0 0.0
    %1922 = vmatprep.subr.mxu0 0.0
    %1923 = vmatpush1.msra.mxu0 0.0
    %1924 = vmatprep.subr.mxu0 0.0
    %1925 = vmatpush1.msra.mxu0 0.0
    %1926 = vmatprep.subr.mxu0 0.0
    %1927 = vmatpush1.msra.mxu0 0.0
    %1928 = vmatprep.subr.mxu0 0.0
    %1929 = vmatpush1.msra.mxu0 0.0
    %1930 = vmatprep.subr.mxu0 0.0
    %1931 = vmatpush1.msra.mxu0 0.0
    %1932 = vmatprep.subr.mxu0 0.0
    %1933 = vmatpush1.msra.mxu0 0.0
    %1934 = vmatprep.subr.mxu0 0.0
    %1935 = vmatpush1.msra.mxu0 0.0
    %1936 = vmatprep.subr.mxu0 0.0
    %1937 = vmatpush1.msra.mxu0 0.0
    %1938 = vmatprep.subr.mxu0 0.0
    %1939 = vmatpush1.msra.mxu0 0.0
    %1940 = vmatprep.subr.mxu0 0.0
    %1941 = vmatpush1.msra.mxu0 0.0
    %1942 = vmatprep.subr.mxu0 0.0
    %1943 = vmatpush1.msra.mxu0 0.0
    %1944 = vmatprep.subr.mxu0 0.0
    %1945 = vmatpush1.msra.mxu0 0.0
    %1946 = vmatprep.mubr.f32.mxu0 0.0
    %1947 = vmatmul.mubr.f32.gmra.mrb[0].mxu0 %v1809
    %v1948 = vpop.f32.mrb[0].mxu0
    %v1949 = vadd.f32 %v1805, %v1948
    %v1950 = vpop.f32.mrb[0].mxu0
    %1951 = vdwg.mxu0
    %v1952 = vadd.f32 %v1878, %v629
    %v1953 = vadd.f32 %v1880, %v633
    %v1954 = vadd.f32 %v1949, %v637
    %v1955 = vtanh.pop %v1952
    %v1956 = vtanh.pop %v1953
    %v1957 = vtanh.pop %v1954
    %s1958 = scalar_lea.vmem %s0, 32
    %v1959 = vld [vmem:[%s1958] sm:$0xff]
    %v1961 = vsel %vm194, %v1957, 0
    %1963 = vmatprep.subr.mxu0 %v75
    %1964 = vmatpush1.msra.mxu0 %v74
    %1965 = vmatprep.subr.mxu0 %v78
    %1966 = vmatpush1.msra.mxu0 %v77
    %1967 = vmatprep.subr.mxu0 %v81
    %1968 = vmatpush1.msra.mxu0 %v80
    %1969 = vmatprep.subr.mxu0 %v84
    %1970 = vmatpush1.msra.mxu0 %v83
    %1971 = vmatprep.subr.mxu0 %v87
    %1972 = vmatpush1.msra.mxu0 %v86
    %1973 = vmatprep.subr.mxu0 %v90
    %1974 = vmatpush1.msra.mxu0 %v89
    %1975 = vmatprep.subr.mxu0 %v93
    %1976 = vmatpush1.msra.mxu0 %v92
    %1977 = vmatprep.subr.mxu0 %v96
    %1978 = vmatpush1.msra.mxu0 %v95
    %1979 = vmatprep.subr.mxu0 %v99
    %1980 = vmatpush1.msra.mxu0 %v98
    %1981 = vmatprep.subr.mxu0 %v102
    %1982 = vmatpush1.msra.mxu0 %v101
    %1983 = vmatprep.subr.mxu0 %v105
    %1984 = vmatpush1.msra.mxu0 %v104
    %1985 = vmatprep.subr.mxu0 %v108
    %1986 = vmatpush1.msra.mxu0 %v107
    %1987 = vmatprep.subr.mxu0 %v111
    %1988 = vmatpush1.msra.mxu0 %v110
    %1989 = vmatprep.subr.mxu0 %v114
    %1990 = vmatpush1.msra.mxu0 %v113
    %1991 = vmatprep.subr.mxu0 %v117
    %1992 = vmatpush1.msra.mxu0 %v116
    %1993 = vmatprep.subr.mxu0 %v120
    %1994 = vmatpush1.msra.mxu0 %v119
    %1995 = vmatprep.subr.mxu0 %v123
    %1996 = vmatpush1.msra.mxu0 %v122
    %1997 = vmatprep.subr.mxu0 %v126
    %1998 = vmatpush1.msra.mxu0 %v125
    %1999 = vmatprep.subr.mxu0 %v129
    %2000 = vmatpush1.msra.mxu0 %v128
    %2001 = vmatprep.subr.mxu0 %v132
    %2002 = vmatpush1.msra.mxu0 %v131
    %2003 = vmatprep.subr.mxu0 %v135
    %2004 = vmatpush1.msra.mxu0 %v134
    %2005 = vmatprep.subr.mxu0 %v138
    %2006 = vmatpush1.msra.mxu0 %v137
    %2007 = vmatprep.subr.mxu0 %v141
    %2008 = vmatpush1.msra.mxu0 %v140
    %2009 = vmatprep.subr.mxu0 %v144
    %2010 = vmatpush1.msra.mxu0 %v143
    %2011 = vmatprep.subr.mxu0 %v147
    %2012 = vmatpush1.msra.mxu0 %v146
    %2013 = vmatprep.subr.mxu0 %v150
    %2014 = vmatpush1.msra.mxu0 %v149
    %2015 = vmatprep.subr.mxu0 %v153
    %2016 = vmatpush1.msra.mxu0 %v152
    %2017 = vmatprep.subr.mxu0 %v156
    %2018 = vmatpush1.msra.mxu0 %v155
    %2019 = vmatprep.subr.mxu0 %v159
    %2020 = vmatpush1.msra.mxu0 %v158
    %2021 = vmatprep.subr.mxu0 %v162
    %2022 = vmatpush1.msra.mxu0 %v161
    %2023 = vmatprep.subr.mxu0 %v165
    %2024 = vmatpush1.msra.mxu0 %v164
    %2025 = vmatprep.subr.mxu0 %v168
    %2026 = vmatpush1.msra.mxu0 %v167
    %2027 = vmatprep.mubr.f32.mxu0 %v1956
    %2028 = vmatmul.mubr.f32.gmra.mrb[0].mxu0 %v1955
    %v2029 = vpop.f32.mrb[0].mxu0
    %v2030 = vadd.f32 0.0, %v2029
    %v2031 = vpop.f32.mrb[0].mxu0
    %v2032 = vadd.f32 0.0, %v2031
    %2033 = vdwg.mxu0
    %2034 = vmatprep.subr.mxu0 %v171
    %2035 = vmatpush1.msra.mxu0 %v170
    %2036 = vmatprep.subr.mxu0 %v174
    %2037 = vmatpush1.msra.mxu0 %v173
    %2038 = vmatprep.subr.mxu0 %v177
    %2039 = vmatpush1.msra.mxu0 %v176
    %2040 = vmatprep.subr.mxu0 %v180
    %2041 = vmatpush1.msra.mxu0 %v179
    %2042 = vmatprep.subr.mxu0 %v183
    %2043 = vmatpush1.msra.mxu0 %v182
    %2044 = vmatprep.subr.mxu0 %v186
    %2045 = vmatpush1.msra.mxu0 %v185
    %2046 = vmatprep.subr.mxu0 %v189
    %2047 = vmatpush1.msra.mxu0 %v188
    %2048 = vmatprep.subr.mxu0 %v192
    %2049 = vmatpush1.msra.mxu0 %v191
    %2050 = vmatprep.subr.mxu0 0.0
    %2051 = vmatpush1.msra.mxu0 0.0
    %2052 = vmatprep.subr.mxu0 0.0
    %2053 = vmatpush1.msra.mxu0 0.0
    %2054 = vmatprep.subr.mxu0 0.0
    %2055 = vmatpush1.msra.mxu0 0.0
    %2056 = vmatprep.subr.mxu0 0.0
    %2057 = vmatpush1.msra.mxu0 0.0
    %2058 = vmatprep.subr.mxu0 0.0
    %2059 = vmatpush1.msra.mxu0 0.0
    %2060 = vmatprep.subr.mxu0 0.0
    %2061 = vmatpush1.msra.mxu0 0.0
    %2062 = vmatprep.subr.mxu0 0.0
    %2063 = vmatpush1.msra.mxu0 0.0
    %2064 = vmatprep.subr.mxu0 0.0
    %2065 = vmatpush1.msra.mxu0 0.0
    %2066 = vmatprep.subr.mxu0 0.0
    %2067 = vmatpush1.msra.mxu0 0.0
    %2068 = vmatprep.subr.mxu0 0.0
    %2069 = vmatpush1.msra.mxu0 0.0
    %2070 = vmatprep.subr.mxu0 0.0
    %2071 = vmatpush1.msra.mxu0 0.0
    %2072 = vmatprep.subr.mxu0 0.0
    %2073 = vmatpush1.msra.mxu0 0.0
    %2074 = vmatprep.subr.mxu0 0.0
    %2075 = vmatpush1.msra.mxu0 0.0
    %2076 = vmatprep.subr.mxu0 0.0
    %2077 = vmatpush1.msra.mxu0 0.0
    %2078 = vmatprep.subr.mxu0 0.0
    %2079 = vmatpush1.msra.mxu0 0.0
    %2080 = vmatprep.subr.mxu0 0.0
    %2081 = vmatpush1.msra.mxu0 0.0
    %2082 = vmatprep.subr.mxu0 0.0
    %2083 = vmatpush1.msra.mxu0 0.0
    %2084 = vmatprep.subr.mxu0 0.0
    %2085 = vmatpush1.msra.mxu0 0.0
    %2086 = vmatprep.subr.mxu0 0.0
    %2087 = vmatpush1.msra.mxu0 0.0
    %2088 = vmatprep.subr.mxu0 0.0
    %2089 = vmatpush1.msra.mxu0 0.0
    %2090 = vmatprep.subr.mxu0 0.0
    %2091 = vmatpush1.msra.mxu0 0.0
    %2092 = vmatprep.subr.mxu0 0.0
    %2093 = vmatpush1.msra.mxu0 0.0
    %2094 = vmatprep.subr.mxu0 0.0
    %2095 = vmatpush1.msra.mxu0 0.0
    %2096 = vmatprep.subr.mxu0 0.0
    %2097 = vmatpush1.msra.mxu0 0.0
    %2098 = vmatprep.mubr.f32.mxu0 0.0
    %2099 = vmatmul.mubr.f32.gmra.mrb[0].mxu0 %v1961
    %v2100 = vpop.f32.mrb[0].mxu0
    %v2101 = vadd.f32 %v2030, %v2100
    %v2102 = vpop.f32.mrb[0].mxu0
    %v2103 = vadd.f32 %v2032, %v2102
    %2104 = vdwg.mxu0
    %2105 = vmatprep.subr.mxu0 0.0
    %2106 = vmatpush1.msra.mxu0 %v76
    %2107 = vmatprep.subr.mxu0 0.0
    %2108 = vmatpush1.msra.mxu0 %v79
    %2109 = vmatprep.subr.mxu0 0.0
    %2110 = vmatpush1.msra.mxu0 %v82
    %2111 = vmatprep.subr.mxu0 0.0
    %2112 = vmatpush1.msra.mxu0 %v85
    %2113 = vmatprep.subr.mxu0 0.0
    %2114 = vmatpush1.msra.mxu0 %v88
    %2115 = vmatprep.subr.mxu0 0.0
    %2116 = vmatpush1.msra.mxu0 %v91
    %2117 = vmatprep.subr.mxu0 0.0
    %2118 = vmatpush1.msra.mxu0 %v94
    %2119 = vmatprep.subr.mxu0 0.0
    %2120 = vmatpush1.msra.mxu0 %v97
    %2121 = vmatprep.subr.mxu0 0.0
    %2122 = vmatpush1.msra.mxu0 %v100
    %2123 = vmatprep.subr.mxu0 0.0
    %2124 = vmatpush1.msra.mxu0 %v103
    %2125 = vmatprep.subr.mxu0 0.0
    %2126 = vmatpush1.msra.mxu0 %v106
    %2127 = vmatprep.subr.mxu0 0.0
    %2128 = vmatpush1.msra.mxu0 %v109
    %2129 = vmatprep.subr.mxu0 0.0
    %2130 = vmatpush1.msra.mxu0 %v112
    %2131 = vmatprep.subr.mxu0 0.0
    %2132 = vmatpush1.msra.mxu0 %v115
    %2133 = vmatprep.subr.mxu0 0.0
    %2134 = vmatpush1.msra.mxu0 %v118
    %2135 = vmatprep.subr.mxu0 0.0
    %2136 = vmatpush1.msra.mxu0 %v121
    %2137 = vmatprep.subr.mxu0 0.0
    %2138 = vmatpush1.msra.mxu0 %v124
    %2139 = vmatprep.subr.mxu0 0.0
    %2140 = vmatpush1.msra.mxu0 %v127
    %2141 = vmatprep.subr.mxu0 0.0
    %2142 = vmatpush1.msra.mxu0 %v130
    %2143 = vmatprep.subr.mxu0 0.0
    %2144 = vmatpush1.msra.mxu0 %v133
    %2145 = vmatprep.subr.mxu0 0.0
    %2146 = vmatpush1.msra.mxu0 %v136
    %2147 = vmatprep.subr.mxu0 0.0
    %2148 = vmatpush1.msra.mxu0 %v139
    %2149 = vmatprep.subr.mxu0 0.0
    %2150 = vmatpush1.msra.mxu0 %v142
    %2151 = vmatprep.subr.mxu0 0.0
    %2152 = vmatpush1.msra.mxu0 %v145
    %2153 = vmatprep.subr.mxu0 0.0
    %2154 = vmatpush1.msra.mxu0 %v148
    %2155 = vmatprep.subr.mxu0 0.0
    %2156 = vmatpush1.msra.mxu0 %v151
    %2157 = vmatprep.subr.mxu0 0.0
    %2158 = vmatpush1.msra.mxu0 %v154
    %2159 = vmatprep.subr.mxu0 0.0
    %2160 = vmatpush1.msra.mxu0 %v157
    %2161 = vmatprep.subr.mxu0 0.0
    %2162 = vmatpush1.msra.mxu0 %v160
    %2163 = vmatprep.subr.mxu0 0.0
    %2164 = vmatpush1.msra.mxu0 %v163
    %2165 = vmatprep.subr.mxu0 0.0
    %2166 = vmatpush1.msra.mxu0 %v166
    %2167 = vmatprep.subr.mxu0 0.0
    %2168 = vmatpush1.msra.mxu0 %v169
    %2169 = vmatprep.mubr.f32.mxu0 %v1956
    %2170 = vmatmul.mubr.f32.gmra.mrb[0].mxu0 %v1955
    %v2171 = vpop.f32.mrb[0].mxu0
    %v2172 = vadd.f32 0.0, %v2171
    %v2173 = vpop.f32.mrb[0].mxu0
    %2174 = vdwg.mxu0
    %2175 = vmatprep.subr.mxu0 0.0
    %2176 = vmatpush1.msra.mxu0 %v172
    %2177 = vmatprep.subr.mxu0 0.0
    %2178 = vmatpush1.msra.mxu0 %v175
    %2179 = vmatprep.subr.mxu0 0.0
    %2180 = vmatpush1.msra.mxu0 %v178
    %2181 = vmatprep.subr.mxu0 0.0
    %2182 = vmatpush1.msra.mxu0 %v181
    %2183 = vmatprep.subr.mxu0 0.0
    %2184 = vmatpush1.msra.mxu0 %v184
    %2185 = vmatprep.subr.mxu0 0.0
    %2186 = vmatpush1.msra.mxu0 %v187
    %2187 = vmatprep.subr.mxu0 0.0
    %2188 = vmatpush1.msra.mxu0 %v190
    %2189 = vmatprep.subr.mxu0 0.0
    %2190 = vmatpush1.msra.mxu0 %v193
    %2191 = vmatprep.subr.mxu0 0.0
    %2192 = vmatpush1.msra.mxu0 0.0
    %2193 = vmatprep.subr.mxu0 0.0
    %2194 = vmatpush1.msra.mxu0 0.0
    %2195 = vmatprep.subr.mxu0 0.0
    %2196 = vmatpush1.msra.mxu0 0.0
    %2197 = vmatprep.subr.mxu0 0.0
    %2198 = vmatpush1.msra.mxu0 0.0
    %2199 = vmatprep.subr.mxu0 0.0
    %2200 = vmatpush1.msra.mxu0 0.0
    %2201 = vmatprep.subr.mxu0 0.0
    %2202 = vmatpush1.msra.mxu0 0.0
    %2203 = vmatprep.subr.mxu0 0.0
    %2204 = vmatpush1.msra.mxu0 0.0
    %2205 = vmatprep.subr.mxu0 0.0
    %2206 = vmatpush1.msra.mxu0 0.0
    %2207 = vmatprep.subr.mxu0 0.0
    %2208 = vmatpush1.msra.mxu0 0.0
    %2209 = vmatprep.subr.mxu0 0.0
    %2210 = vmatpush1.msra.mxu0 0.0
    %2211 = vmatprep.subr.mxu0 0.0
    %2212 = vmatpush1.msra.mxu0 0.0
    %2213 = vmatprep.subr.mxu0 0.0
    %2214 = vmatpush1.msra.mxu0 0.0
    %2215 = vmatprep.subr.mxu0 0.0
    %2216 = vmatpush1.msra.mxu0 0.0
    %2217 = vmatprep.subr.mxu0 0.0
    %2218 = vmatpush1.msra.mxu0 0.0
    %2219 = vmatprep.subr.mxu0 0.0
    %2220 = vmatpush1.msra.mxu0 0.0
    %2221 = vmatprep.subr.mxu0 0.0
    %2222 = vmatpush1.msra.mxu0 0.0
    %2223 = vmatprep.subr.mxu0 0.0
    %2224 = vmatpush1.msra.mxu0 0.0
    %2225 = vmatprep.subr.mxu0 0.0
    %2226 = vmatpush1.msra.mxu0 0.0
    %2227 = vmatprep.subr.mxu0 0.0
    %2228 = vmatpush1.msra.mxu0 0.0
    %2229 = vmatprep.subr.mxu0 0.0
    %2230 = vmatpush1.msra.mxu0 0.0
    %2231 = vmatprep.subr.mxu0 0.0
    %2232 = vmatpush1.msra.mxu0 0.0
    %2233 = vmatprep.subr.mxu0 0.0
    %2234 = vmatpush1.msra.mxu0 0.0
    %2235 = vmatprep.subr.mxu0 0.0
    %2236 = vmatpush1.msra.mxu0 0.0
    %2237 = vmatprep.subr.mxu0 0.0
    %2238 = vmatpush1.msra.mxu0 0.0
    %2239 = vmatprep.mubr.f32.mxu0 0.0
    %2240 = vmatmul.mubr.f32.gmra.mrb[0].mxu0 %v1961
    %v2241 = vpop.f32.mrb[0].mxu0
    %v2242 = vadd.f32 %v2172, %v2241
    %v2243 = vpop.f32.mrb[0].mxu0
    %2244 = vdwg.mxu0
    %v2246 = vsel %vm480, %v1959, 0
    %2248 = vmatprep.subr.mxu0 %v63
    %2249 = vmatpush1.msra.mxu0 %v62
    %2250 = vmatprep.subr.mxu0 %v66
    %2251 = vmatpush1.msra.mxu0 %v65
    %2252 = vmatprep.subr.mxu0 %v69
    %2253 = vmatpush1.msra.mxu0 %v68
    %2254 = vmatprep.subr.mxu0 %v72
    %2255 = vmatpush1.msra.mxu0 %v71
    %2256 = vmatprep.subr.mxu0 0.0
    %2257 = vmatpush1.msra.mxu0 0.0
    %2258 = vmatprep.subr.mxu0 0.0
    %2259 = vmatpush1.msra.mxu0 0.0
    %2260 = vmatprep.subr.mxu0 0.0
    %2261 = vmatpush1.msra.mxu0 0.0
    %2262 = vmatprep.subr.mxu0 0.0
    %2263 = vmatpush1.msra.mxu0 0.0
    %2264 = vmatprep.subr.mxu0 0.0
    %2265 = vmatpush1.msra.mxu0 0.0
    %2266 = vmatprep.subr.mxu0 0.0
    %2267 = vmatpush1.msra.mxu0 0.0
    %2268 = vmatprep.subr.mxu0 0.0
    %2269 = vmatpush1.msra.mxu0 0.0
    %2270 = vmatprep.subr.mxu0 0.0
    %2271 = vmatpush1.msra.mxu0 0.0
    %2272 = vmatprep.subr.mxu0 0.0
    %2273 = vmatpush1.msra.mxu0 0.0
    %2274 = vmatprep.subr.mxu0 0.0
    %2275 = vmatpush1.msra.mxu0 0.0
    %2276 = vmatprep.subr.mxu0 0.0
    %2277 = vmatpush1.msra.mxu0 0.0
    %2278 = vmatprep.subr.mxu0 0.0
    %2279 = vmatpush1.msra.mxu0 0.0
    %2280 = vmatprep.subr.mxu0 0.0
    %2281 = vmatpush1.msra.mxu0 0.0
    %2282 = vmatprep.subr.mxu0 0.0
    %2283 = vmatpush1.msra.mxu0 0.0
    %2284 = vmatprep.subr.mxu0 0.0
    %2285 = vmatpush1.msra.mxu0 0.0
    %2286 = vmatprep.subr.mxu0 0.0
    %2287 = vmatpush1.msra.mxu0 0.0
    %2288 = vmatprep.subr.mxu0 0.0
    %2289 = vmatpush1.msra.mxu0 0.0
    %2290 = vmatprep.subr.mxu0 0.0
    %2291 = vmatpush1.msra.mxu0 0.0
    %2292 = vmatprep.subr.mxu0 0.0
    %2293 = vmatpush1.msra.mxu0 0.0
    %2294 = vmatprep.subr.mxu0 0.0
    %2295 = vmatpush1.msra.mxu0 0.0
    %2296 = vmatprep.subr.mxu0 0.0
    %2297 = vmatpush1.msra.mxu0 0.0
    %2298 = vmatprep.subr.mxu0 0.0
    %2299 = vmatpush1.msra.mxu0 0.0
    %2300 = vmatprep.subr.mxu0 0.0
    %2301 = vmatpush1.msra.mxu0 0.0
    %2302 = vmatprep.subr.mxu0 0.0
    %2303 = vmatpush1.msra.mxu0 0.0
    %2304 = vmatprep.subr.mxu0 0.0
    %2305 = vmatpush1.msra.mxu0 0.0
    %2306 = vmatprep.subr.mxu0 0.0
    %2307 = vmatpush1.msra.mxu0 0.0
    %2308 = vmatprep.subr.mxu0 0.0
    %2309 = vmatpush1.msra.mxu0 0.0
    %2310 = vmatprep.subr.mxu0 0.0
    %2311 = vmatpush1.msra.mxu0 0.0
    %2312 = vmatprep.mubr.f32.mxu0 0.0
    %2313 = vmatmul.mubr.f32.gmra.mrb[0].mxu0 %v2246
    %v2314 = vpop.f32.mrb[0].mxu0
    %v2315 = vadd.f32 %v2101, %v2314
    %v2316 = vpop.f32.mrb[0].mxu0
    %v2317 = vadd.f32 %v2103, %v2316
    %2318 = vdwg.mxu0
    %2319 = vmatprep.subr.mxu0 0.0
    %2320 = vmatpush1.msra.mxu0 %v64
    %2321 = vmatprep.subr.mxu0 0.0
    %2322 = vmatpush1.msra.mxu0 %v67
    %2323 = vmatprep.subr.mxu0 0.0
    %2324 = vmatpush1.msra.mxu0 %v70
    %2325 = vmatprep.subr.mxu0 0.0
    %2326 = vmatpush1.msra.mxu0 %v73
    %2327 = vmatprep.subr.mxu0 0.0
    %2328 = vmatpush1.msra.mxu0 0.0
    %2329 = vmatprep.subr.mxu0 0.0
    %2330 = vmatpush1.msra.mxu0 0.0
    %2331 = vmatprep.subr.mxu0 0.0
    %2332 = vmatpush1.msra.mxu0 0.0
    %2333 = vmatprep.subr.mxu0 0.0
    %2334 = vmatpush1.msra.mxu0 0.0
    %2335 = vmatprep.subr.mxu0 0.0
    %2336 = vmatpush1.msra.mxu0 0.0
    %2337 = vmatprep.subr.mxu0 0.0
    %2338 = vmatpush1.msra.mxu0 0.0
    %2339 = vmatprep.subr.mxu0 0.0
    %2340 = vmatpush1.msra.mxu0 0.0
    %2341 = vmatprep.subr.mxu0 0.0
    %2342 = vmatpush1.msra.mxu0 0.0
    %2343 = vmatprep.subr.mxu0 0.0
    %2344 = vmatpush1.msra.mxu0 0.0
    %2345 = vmatprep.subr.mxu0 0.0
    %2346 = vmatpush1.msra.mxu0 0.0
    %2347 = vmatprep.subr.mxu0 0.0
    %2348 = vmatpush1.msra.mxu0 0.0
    %2349 = vmatprep.subr.mxu0 0.0
    %2350 = vmatpush1.msra.mxu0 0.0
    %2351 = vmatprep.subr.mxu0 0.0
    %2352 = vmatpush1.msra.mxu0 0.0
    %2353 = vmatprep.subr.mxu0 0.0
    %2354 = vmatpush1.msra.mxu0 0.0
    %2355 = vmatprep.subr.mxu0 0.0
    %2356 = vmatpush1.msra.mxu0 0.0
    %2357 = vmatprep.subr.mxu0 0.0
    %2358 = vmatpush1.msra.mxu0 0.0
    %2359 = vmatprep.subr.mxu0 0.0
    %2360 = vmatpush1.msra.mxu0 0.0
    %2361 = vmatprep.subr.mxu0 0.0
    %2362 = vmatpush1.msra.mxu0 0.0
    %2363 = vmatprep.subr.mxu0 0.0
    %2364 = vmatpush1.msra.mxu0 0.0
    %2365 = vmatprep.subr.mxu0 0.0
    %2366 = vmatpush1.msra.mxu0 0.0
    %2367 = vmatprep.subr.mxu0 0.0
    %2368 = vmatpush1.msra.mxu0 0.0
    %2369 = vmatprep.subr.mxu0 0.0
    %2370 = vmatpush1.msra.mxu0 0.0
    %2371 = vmatprep.subr.mxu0 0.0
    %2372 = vmatpush1.msra.mxu0 0.0
    %2373 = vmatprep.subr.mxu0 0.0
    %2374 = vmatpush1.msra.mxu0 0.0
    %2375 = vmatprep.subr.mxu0 0.0
    %2376 = vmatpush1.msra.mxu0 0.0
    %2377 = vmatprep.subr.mxu0 0.0
    %2378 = vmatpush1.msra.mxu0 0.0
    %2379 = vmatprep.subr.mxu0 0.0
    %2380 = vmatpush1.msra.mxu0 0.0
    %2381 = vmatprep.subr.mxu0 0.0
    %2382 = vmatpush1.msra.mxu0 0.0
    %2383 = vmatprep.mubr.f32.mxu0 0.0
    %2384 = vmatmul.mubr.f32.gmra.mrb[0].mxu0 %v2246
    %v2385 = vpop.f32.mrb[0].mxu0
    %v2386 = vadd.f32 %v2242, %v2385
    %v2387 = vpop.f32.mrb[0].mxu0
    %2388 = vdwg.mxu0
    %v2389 = vadd.f32 %v2315, %v629
    %v2390 = vadd.f32 %v2317, %v633
    %v2391 = vadd.f32 %v2386, %v637
    %v2392 = vtanh.pop %v2389
    %v2393 = vtanh.pop %v2390
    %v2394 = vtanh.pop %v2391
    %s2395 = scalar_lea.vmem %s0, 40
    %v2396 = vld [vmem:[%s2395] sm:$0xff]
    %v2398 = vsel %vm194, %v2394, 0
    %2400 = vmatprep.subr.mxu0 %v75
    %2401 = vmatpush1.msra.mxu0 %v74
    %2402 = vmatprep.subr.mxu0 %v78
    %2403 = vmatpush1.msra.mxu0 %v77
    %2404 = vmatprep.subr.mxu0 %v81
    %2405 = vmatpush1.msra.mxu0 %v80
    %2406 = vmatprep.subr.mxu0 %v84
    %2407 = vmatpush1.msra.mxu0 %v83
    %2408 = vmatprep.subr.mxu0 %v87
    %2409 = vmatpush1.msra.mxu0 %v86
    %2410 = vmatprep.subr.mxu0 %v90
    %2411 = vmatpush1.msra.mxu0 %v89
    %2412 = vmatprep.subr.mxu0 %v93
    %2413 = vmatpush1.msra.mxu0 %v92
    %2414 = vmatprep.subr.mxu0 %v96
    %2415 = vmatpush1.msra.mxu0 %v95
    %2416 = vmatprep.subr.mxu0 %v99
    %2417 = vmatpush1.msra.mxu0 %v98
    %2418 = vmatprep.subr.mxu0 %v102
    %2419 = vmatpush1.msra.mxu0 %v101
    %2420 = vmatprep.subr.mxu0 %v105
    %2421 = vmatpush1.msra.mxu0 %v104
    %2422 = vmatprep.subr.mxu0 %v108
    %2423 = vmatpush1.msra.mxu0 %v107
    %2424 = vmatprep.subr.mxu0 %v111
    %2425 = vmatpush1.msra.mxu0 %v110
    %2426 = vmatprep.subr.mxu0 %v114
    %2427 = vmatpush1.msra.mxu0 %v113
    %2428 = vmatprep.subr.mxu0 %v117
    %2429 = vmatpush1.msra.mxu0 %v116
    %2430 = vmatprep.subr.mxu0 %v120
    %2431 = vmatpush1.msra.mxu0 %v119
    %2432 = vmatprep.subr.mxu0 %v123
    %2433 = vmatpush1.msra.mxu0 %v122
    %2434 = vmatprep.subr.mxu0 %v126
    %2435 = vmatpush1.msra.mxu0 %v125
    %2436 = vmatprep.subr.mxu0 %v129
    %2437 = vmatpush1.msra.mxu0 %v128
    %2438 = vmatprep.subr.mxu0 %v132
    %2439 = vmatpush1.msra.mxu0 %v131
    %2440 = vmatprep.subr.mxu0 %v135
    %2441 = vmatpush1.msra.mxu0 %v134
    %2442 = vmatprep.subr.mxu0 %v138
    %2443 = vmatpush1.msra.mxu0 %v137
    %2444 = vmatprep.subr.mxu0 %v141
    %2445 = vmatpush1.msra.mxu0 %v140
    %2446 = vmatprep.subr.mxu0 %v144
    %2447 = vmatpush1.msra.mxu0 %v143
    %2448 = vmatprep.subr.mxu0 %v147
    %2449 = vmatpush1.msra.mxu0 %v146
    %2450 = vmatprep.subr.mxu0 %v150
    %2451 = vmatpush1.msra.mxu0 %v149
    %2452 = vmatprep.subr.mxu0 %v153
    %2453 = vmatpush1.msra.mxu0 %v152
    %2454 = vmatprep.subr.mxu0 %v156
    %2455 = vmatpush1.msra.mxu0 %v155
    %2456 = vmatprep.subr.mxu0 %v159
    %2457 = vmatpush1.msra.mxu0 %v158
    %2458 = vmatprep.subr.mxu0 %v162
    %2459 = vmatpush1.msra.mxu0 %v161
    %2460 = vmatprep.subr.mxu0 %v165
    %2461 = vmatpush1.msra.mxu0 %v164
    %2462 = vmatprep.subr.mxu0 %v168
    %2463 = vmatpush1.msra.mxu0 %v167
    %2464 = vmatprep.mubr.f32.mxu0 %v2393
    %2465 = vmatmul.mubr.f32.gmra.mrb[0].mxu0 %v2392
    %v2466 = vpop.f32.mrb[0].mxu0
    %v2467 = vadd.f32 0.0, %v2466
    %v2468 = vpop.f32.mrb[0].mxu0
    %v2469 = vadd.f32 0.0, %v2468
    %2470 = vdwg.mxu0
    %2471 = vmatprep.subr.mxu0 %v171
    %2472 = vmatpush1.msra.mxu0 %v170
    %2473 = vmatprep.subr.mxu0 %v174
    %2474 = vmatpush1.msra.mxu0 %v173
    %2475 = vmatprep.subr.mxu0 %v177
    %2476 = vmatpush1.msra.mxu0 %v176
    %2477 = vmatprep.subr.mxu0 %v180
    %2478 = vmatpush1.msra.mxu0 %v179
    %2479 = vmatprep.subr.mxu0 %v183
    %2480 = vmatpush1.msra.mxu0 %v182
    %2481 = vmatprep.subr.mxu0 %v186
    %2482 = vmatpush1.msra.mxu0 %v185
    %2483 = vmatprep.subr.mxu0 %v189
    %2484 = vmatpush1.msra.mxu0 %v188
    %2485 = vmatprep.subr.mxu0 %v192
    %2486 = vmatpush1.msra.mxu0 %v191
    %2487 = vmatprep.subr.mxu0 0.0
    %2488 = vmatpush1.msra.mxu0 0.0
    %2489 = vmatprep.subr.mxu0 0.0
    %2490 = vmatpush1.msra.mxu0 0.0
    %2491 = vmatprep.subr.mxu0 0.0
    %2492 = vmatpush1.msra.mxu0 0.0
    %2493 = vmatprep.subr.mxu0 0.0
    %2494 = vmatpush1.msra.mxu0 0.0
    %2495 = vmatprep.subr.mxu0 0.0
    %2496 = vmatpush1.msra.mxu0 0.0
    %2497 = vmatprep.subr.mxu0 0.0
    %2498 = vmatpush1.msra.mxu0 0.0
    %2499 = vmatprep.subr.mxu0 0.0
    %2500 = vmatpush1.msra.mxu0 0.0
    %2501 = vmatprep.subr.mxu0 0.0
    %2502 = vmatpush1.msra.mxu0 0.0
    %2503 = vmatprep.subr.mxu0 0.0
    %2504 = vmatpush1.msra.mxu0 0.0
    %2505 = vmatprep.subr.mxu0 0.0
    %2506 = vmatpush1.msra.mxu0 0.0
    %2507 = vmatprep.subr.mxu0 0.0
    %2508 = vmatpush1.msra.mxu0 0.0
    %2509 = vmatprep.subr.mxu0 0.0
    %2510 = vmatpush1.msra.mxu0 0.0
    %2511 = vmatprep.subr.mxu0 0.0
    %2512 = vmatpush1.msra.mxu0 0.0
    %2513 = vmatprep.subr.mxu0 0.0
    %2514 = vmatpush1.msra.mxu0 0.0
    %2515 = vmatprep.subr.mxu0 0.0
    %2516 = vmatpush1.msra.mxu0 0.0
    %2517 = vmatprep.subr.mxu0 0.0
    %2518 = vmatpush1.msra.mxu0 0.0
    %2519 = vmatprep.subr.mxu0 0.0
    %2520 = vmatpush1.msra.mxu0 0.0
    %2521 = vmatprep.subr.mxu0 0.0
    %2522 = vmatpush1.msra.mxu0 0.0
    %2523 = vmatprep.subr.mxu0 0.0
    %2524 = vmatpush1.msra.mxu0 0.0
    %2525 = vmatprep.subr.mxu0 0.0
    %2526 = vmatpush1.msra.mxu0 0.0
    %2527 = vmatprep.subr.mxu0 0.0
    %2528 = vmatpush1.msra.mxu0 0.0
    %2529 = vmatprep.subr.mxu0 0.0
    %2530 = vmatpush1.msra.mxu0 0.0
    %2531 = vmatprep.subr.mxu0 0.0
    %2532 = vmatpush1.msra.mxu0 0.0
    %2533 = vmatprep.subr.mxu0 0.0
    %2534 = vmatpush1.msra.mxu0 0.0
    %2535 = vmatprep.mubr.f32.mxu0 0.0
    %2536 = vmatmul.mubr.f32.gmra.mrb[0].mxu0 %v2398
    %v2537 = vpop.f32.mrb[0].mxu0
    %v2538 = vadd.f32 %v2467, %v2537
    %v2539 = vpop.f32.mrb[0].mxu0
    %v2540 = vadd.f32 %v2469, %v2539
    %2541 = vdwg.mxu0
    %2542 = vmatprep.subr.mxu0 0.0
    %2543 = vmatpush1.msra.mxu0 %v76
    %2544 = vmatprep.subr.mxu0 0.0
    %2545 = vmatpush1.msra.mxu0 %v79
    %2546 = vmatprep.subr.mxu0 0.0
    %2547 = vmatpush1.msra.mxu0 %v82
    %2548 = vmatprep.subr.mxu0 0.0
    %2549 = vmatpush1.msra.mxu0 %v85
    %2550 = vmatprep.subr.mxu0 0.0
    %2551 = vmatpush1.msra.mxu0 %v88
    %2552 = vmatprep.subr.mxu0 0.0
    %2553 = vmatpush1.msra.mxu0 %v91
    %2554 = vmatprep.subr.mxu0 0.0
    %2555 = vmatpush1.msra.mxu0 %v94
    %2556 = vmatprep.subr.mxu0 0.0
    %2557 = vmatpush1.msra.mxu0 %v97
    %2558 = vmatprep.subr.mxu0 0.0
    %2559 = vmatpush1.msra.mxu0 %v100
    %2560 = vmatprep.subr.mxu0 0.0
    %2561 = vmatpush1.msra.mxu0 %v103
    %2562 = vmatprep.subr.mxu0 0.0
    %2563 = vmatpush1.msra.mxu0 %v106
    %2564 = vmatprep.subr.mxu0 0.0
    %2565 = vmatpush1.msra.mxu0 %v109
    %2566 = vmatprep.subr.mxu0 0.0
    %2567 = vmatpush1.msra.mxu0 %v112
    %2568 = vmatprep.subr.mxu0 0.0
    %2569 = vmatpush1.msra.mxu0 %v115
    %2570 = vmatprep.subr.mxu0 0.0
    %2571 = vmatpush1.msra.mxu0 %v118
    %2572 = vmatprep.subr.mxu0 0.0
    %2573 = vmatpush1.msra.mxu0 %v121
    %2574 = vmatprep.subr.mxu0 0.0
    %2575 = vmatpush1.msra.mxu0 %v124
    %2576 = vmatprep.subr.mxu0 0.0
    %2577 = vmatpush1.msra.mxu0 %v127
    %2578 = vmatprep.subr.mxu0 0.0
    %2579 = vmatpush1.msra.mxu0 %v130
    %2580 = vmatprep.subr.mxu0 0.0
    %2581 = vmatpush1.msra.mxu0 %v133
    %2582 = vmatprep.subr.mxu0 0.0
    %2583 = vmatpush1.msra.mxu0 %v136
    %2584 = vmatprep.subr.mxu0 0.0
    %2585 = vmatpush1.msra.mxu0 %v139
    %2586 = vmatprep.subr.mxu0 0.0
    %2587 = vmatpush1.msra.mxu0 %v142
    %2588 = vmatprep.subr.mxu0 0.0
    %2589 = vmatpush1.msra.mxu0 %v145
    %2590 = vmatprep.subr.mxu0 0.0
    %2591 = vmatpush1.msra.mxu0 %v148
    %2592 = vmatprep.subr.mxu0 0.0
    %2593 = vmatpush1.msra.mxu0 %v151
    %2594 = vmatprep.subr.mxu0 0.0
    %2595 = vmatpush1.msra.mxu0 %v154
    %2596 = vmatprep.subr.mxu0 0.0
    %2597 = vmatpush1.msra.mxu0 %v157
    %2598 = vmatprep.subr.mxu0 0.0
    %2599 = vmatpush1.msra.mxu0 %v160
    %2600 = vmatprep.subr.mxu0 0.0
    %2601 = vmatpush1.msra.mxu0 %v163
    %2602 = vmatprep.subr.mxu0 0.0
    %2603 = vmatpush1.msra.mxu0 %v166
    %2604 = vmatprep.subr.mxu0 0.0
    %2605 = vmatpush1.msra.mxu0 %v169
    %2606 = vmatprep.mubr.f32.mxu0 %v2393
    %2607 = vmatmul.mubr.f32.gmra.mrb[0].mxu0 %v2392
    %v2608 = vpop.f32.mrb[0].mxu0
    %v2609 = vadd.f32 0.0, %v2608
    %v2610 = vpop.f32.mrb[0].mxu0
    %2611 = vdwg.mxu0
    %2612 = vmatprep.subr.mxu0 0.0
    %2613 = vmatpush1.msra.mxu0 %v172
    %2614 = vmatprep.subr.mxu0 0.0
    %2615 = vmatpush1.msra.mxu0 %v175
    %2616 = vmatprep.subr.mxu0 0.0
    %2617 = vmatpush1.msra.mxu0 %v178
    %2618 = vmatprep.subr.mxu0 0.0
    %2619 = vmatpush1.msra.mxu0 %v181
    %2620 = vmatprep.subr.mxu0 0.0
    %2621 = vmatpush1.msra.mxu0 %v184
    %2622 = vmatprep.subr.mxu0 0.0
    %2623 = vmatpush1.msra.mxu0 %v187
    %2624 = vmatprep.subr.mxu0 0.0
    %2625 = vmatpush1.msra.mxu0 %v190
    %2626 = vmatprep.subr.mxu0 0.0
    %2627 = vmatpush1.msra.mxu0 %v193
    %2628 = vmatprep.subr.mxu0 0.0
    %2629 = vmatpush1.msra.mxu0 0.0
    %2630 = vmatprep.subr.mxu0 0.0
    %2631 = vmatpush1.msra.mxu0 0.0
    %2632 = vmatprep.subr.mxu0 0.0
    %2633 = vmatpush1.msra.mxu0 0.0
    %2634 = vmatprep.subr.mxu0 0.0
    %2635 = vmatpush1.msra.mxu0 0.0
    %2636 = vmatprep.subr.mxu0 0.0
    %2637 = vmatpush1.msra.mxu0 0.0
    %2638 = vmatprep.subr.mxu0 0.0
    %2639 = vmatpush1.msra.mxu0 0.0
    %2640 = vmatprep.subr.mxu0 0.0
    %2641 = vmatpush1.msra.mxu0 0.0
    %2642 = vmatprep.subr.mxu0 0.0
    %2643 = vmatpush1.msra.mxu0 0.0
    %2644 = vmatprep.subr.mxu0 0.0
    %2645 = vmatpush1.msra.mxu0 0.0
    %2646 = vmatprep.subr.mxu0 0.0
    %2647 = vmatpush1.msra.mxu0 0.0
    %2648 = vmatprep.subr.mxu0 0.0
    %2649 = vmatpush1.msra.mxu0 0.0
    %2650 = vmatprep.subr.mxu0 0.0
    %2651 = vmatpush1.msra.mxu0 0.0
    %2652 = vmatprep.subr.mxu0 0.0
    %2653 = vmatpush1.msra.mxu0 0.0
    %2654 = vmatprep.subr.mxu0 0.0
    %2655 = vmatpush1.msra.mxu0 0.0
    %2656 = vmatprep.subr.mxu0 0.0
    %2657 = vmatpush1.msra.mxu0 0.0
    %2658 = vmatprep.subr.mxu0 0.0
    %2659 = vmatpush1.msra.mxu0 0.0
    %2660 = vmatprep.subr.mxu0 0.0
    %2661 = vmatpush1.msra.mxu0 0.0
    %2662 = vmatprep.subr.mxu0 0.0
    %2663 = vmatpush1.msra.mxu0 0.0
    %2664 = vmatprep.subr.mxu0 0.0
    %2665 = vmatpush1.msra.mxu0 0.0
    %2666 = vmatprep.subr.mxu0 0.0
    %2667 = vmatpush1.msra.mxu0 0.0
    %2668 = vmatprep.subr.mxu0 0.0
    %2669 = vmatpush1.msra.mxu0 0.0
    %2670 = vmatprep.subr.mxu0 0.0
    %2671 = vmatpush1.msra.mxu0 0.0
    %2672 = vmatprep.subr.mxu0 0.0
    %2673 = vmatpush1.msra.mxu0 0.0
    %2674 = vmatprep.subr.mxu0 0.0
    %2675 = vmatpush1.msra.mxu0 0.0
    %2676 = vmatprep.mubr.f32.mxu0 0.0
    %2677 = vmatmul.mubr.f32.gmra.mrb[0].mxu0 %v2398
    %v2678 = vpop.f32.mrb[0].mxu0
    %v2679 = vadd.f32 %v2609, %v2678
    %v2680 = vpop.f32.mrb[0].mxu0
    %2681 = vdwg.mxu0
    %v2683 = vsel %vm480, %v2396, 0
    %2685 = vmatprep.subr.mxu0 %v63
    %2686 = vmatpush1.msra.mxu0 %v62
    %2687 = vmatprep.subr.mxu0 %v66
    %2688 = vmatpush1.msra.mxu0 %v65
    %2689 = vmatprep.subr.mxu0 %v69
    %2690 = vmatpush1.msra.mxu0 %v68
    %2691 = vmatprep.subr.mxu0 %v72
    %2692 = vmatpush1.msra.mxu0 %v71
    %2693 = vmatprep.subr.mxu0 0.0
    %2694 = vmatpush1.msra.mxu0 0.0
    %2695 = vmatprep.subr.mxu0 0.0
    %2696 = vmatpush1.msra.mxu0 0.0
    %2697 = vmatprep.subr.mxu0 0.0
    %2698 = vmatpush1.msra.mxu0 0.0
    %2699 = vmatprep.subr.mxu0 0.0
    %2700 = vmatpush1.msra.mxu0 0.0
    %2701 = vmatprep.subr.mxu0 0.0
    %2702 = vmatpush1.msra.mxu0 0.0
    %2703 = vmatprep.subr.mxu0 0.0
    %2704 = vmatpush1.msra.mxu0 0.0
    %2705 = vmatprep.subr.mxu0 0.0
    %2706 = vmatpush1.msra.mxu0 0.0
    %2707 = vmatprep.subr.mxu0 0.0
    %2708 = vmatpush1.msra.mxu0 0.0
    %2709 = vmatprep.subr.mxu0 0.0
    %2710 = vmatpush1.msra.mxu0 0.0
    %2711 = vmatprep.subr.mxu0 0.0
    %2712 = vmatpush1.msra.mxu0 0.0
    %2713 = vmatprep.subr.mxu0 0.0
    %2714 = vmatpush1.msra.mxu0 0.0
    %2715 = vmatprep.subr.mxu0 0.0
    %2716 = vmatpush1.msra.mxu0 0.0
    %2717 = vmatprep.subr.mxu0 0.0
    %2718 = vmatpush1.msra.mxu0 0.0
    %2719 = vmatprep.subr.mxu0 0.0
    %2720 = vmatpush1.msra.mxu0 0.0
    %2721 = vmatprep.subr.mxu0 0.0
    %2722 = vmatpush1.msra.mxu0 0.0
    %2723 = vmatprep.subr.mxu0 0.0
    %2724 = vmatpush1.msra.mxu0 0.0
    %2725 = vmatprep.subr.mxu0 0.0
    %2726 = vmatpush1.msra.mxu0 0.0
    %2727 = vmatprep.subr.mxu0 0.0
    %2728 = vmatpush1.msra.mxu0 0.0
    %2729 = vmatprep.subr.mxu0 0.0
    %2730 = vmatpush1.msra.mxu0 0.0
    %2731 = vmatprep.subr.mxu0 0.0
    %2732 = vmatpush1.msra.mxu0 0.0
    %2733 = vmatprep.subr.mxu0 0.0
    %2734 = vmatpush1.msra.mxu0 0.0
    %2735 = vmatprep.subr.mxu0 0.0
    %2736 = vmatpush1.msra.mxu0 0.0
    %2737 = vmatprep.subr.mxu0 0.0
    %2738 = vmatpush1.msra.mxu0 0.0
    %2739 = vmatprep.subr.mxu0 0.0
    %2740 = vmatpush1.msra.mxu0 0.0
    %2741 = vmatprep.subr.mxu0 0.0
    %2742 = vmatpush1.msra.mxu0 0.0
    %2743 = vmatprep.subr.mxu0 0.0
    %2744 = vmatpush1.msra.mxu0 0.0
    %2745 = vmatprep.subr.mxu0 0.0
    %2746 = vmatpush1.msra.mxu0 0.0
    %2747 = vmatprep.subr.mxu0 0.0
    %2748 = vmatpush1.msra.mxu0 0.0
    %2749 = vmatprep.mubr.f32.mxu0 0.0
    %2750 = vmatmul.mubr.f32.gmra.mrb[0].mxu0 %v2683
    %v2751 = vpop.f32.mrb[0].mxu0
    %v2752 = vadd.f32 %v2538, %v2751
    %v2753 = vpop.f32.mrb[0].mxu0
    %v2754 = vadd.f32 %v2540, %v2753
    %2755 = vdwg.mxu0
    %2756 = vmatprep.subr.mxu0 0.0
    %2757 = vmatpush1.msra.mxu0 %v64
    %2758 = vmatprep.subr.mxu0 0.0
    %2759 = vmatpush1.msra.mxu0 %v67
    %2760 = vmatprep.subr.mxu0 0.0
    %2761 = vmatpush1.msra.mxu0 %v70
    %2762 = vmatprep.subr.mxu0 0.0
    %2763 = vmatpush1.msra.mxu0 %v73
    %2764 = vmatprep.subr.mxu0 0.0
    %2765 = vmatpush1.msra.mxu0 0.0
    %2766 = vmatprep.subr.mxu0 0.0
    %2767 = vmatpush1.msra.mxu0 0.0
    %2768 = vmatprep.subr.mxu0 0.0
    %2769 = vmatpush1.msra.mxu0 0.0
    %2770 = vmatprep.subr.mxu0 0.0
    %2771 = vmatpush1.msra.mxu0 0.0
    %2772 = vmatprep.subr.mxu0 0.0
    %2773 = vmatpush1.msra.mxu0 0.0
    %2774 = vmatprep.subr.mxu0 0.0
    %2775 = vmatpush1.msra.mxu0 0.0
    %2776 = vmatprep.subr.mxu0 0.0
    %2777 = vmatpush1.msra.mxu0 0.0
    %2778 = vmatprep.subr.mxu0 0.0
    %2779 = vmatpush1.msra.mxu0 0.0
    %2780 = vmatprep.subr.mxu0 0.0
    %2781 = vmatpush1.msra.mxu0 0.0
    %2782 = vmatprep.subr.mxu0 0.0
    %2783 = vmatpush1.msra.mxu0 0.0
    %2784 = vmatprep.subr.mxu0 0.0
    %2785 = vmatpush1.msra.mxu0 0.0
    %2786 = vmatprep.subr.mxu0 0.0
    %2787 = vmatpush1.msra.mxu0 0.0
    %2788 = vmatprep.subr.mxu0 0.0
    %2789 = vmatpush1.msra.mxu0 0.0
    %2790 = vmatprep.subr.mxu0 0.0
    %2791 = vmatpush1.msra.mxu0 0.0
    %2792 = vmatprep.subr.mxu0 0.0
    %2793 = vmatpush1.msra.mxu0 0.0
    %2794 = vmatprep.subr.mxu0 0.0
    %2795 = vmatpush1.msra.mxu0 0.0
    %2796 = vmatprep.subr.mxu0 0.0
    %2797 = vmatpush1.msra.mxu0 0.0
    %2798 = vmatprep.subr.mxu0 0.0
    %2799 = vmatpush1.msra.mxu0 0.0
    %2800 = vmatprep.subr.mxu0 0.0
    %2801 = vmatpush1.msra.mxu0 0.0
    %2802 = vmatprep.subr.mxu0 0.0
    %2803 = vmatpush1.msra.mxu0 0.0
    %2804 = vmatprep.subr.mxu0 0.0
    %2805 = vmatpush1.msra.mxu0 0.0
    %2806 = vmatprep.subr.mxu0 0.0
    %2807 = vmatpush1.msra.mxu0 0.0
    %2808 = vmatprep.subr.mxu0 0.0
    %2809 = vmatpush1.msra.mxu0 0.0
    %2810 = vmatprep.subr.mxu0 0.0
    %2811 = vmatpush1.msra.mxu0 0.0
    %2812 = vmatprep.subr.mxu0 0.0
    %2813 = vmatpush1.msra.mxu0 0.0
    %2814 = vmatprep.subr.mxu0 0.0
    %2815 = vmatpush1.msra.mxu0 0.0
    %2816 = vmatprep.subr.mxu0 0.0
    %2817 = vmatpush1.msra.mxu0 0.0
    %2818 = vmatprep.subr.mxu0 0.0
    %2819 = vmatpush1.msra.mxu0 0.0
    %2820 = vmatprep.mubr.f32.mxu0 0.0
    %2821 = vmatmul.mubr.f32.gmra.mrb[0].mxu0 %v2683
    %v2822 = vpop.f32.mrb[0].mxu0
    %v2823 = vadd.f32 %v2679, %v2822
    %v2824 = vpop.f32.mrb[0].mxu0
    %2825 = vdwg.mxu0
    %v2826 = vadd.f32 %v2752, %v629
    %v2827 = vadd.f32 %v2754, %v633
    %v2828 = vadd.f32 %v2823, %v637
    %v2829 = vtanh.pop %v2826
    %v2830 = vtanh.pop %v2827
    %v2831 = vtanh.pop %v2828
    %s2832 = scalar_lea.vmem %s0, 48
    %v2833 = vld [vmem:[%s2832] sm:$0xff]
    %v2835 = vsel %vm194, %v2831, 0
    %2837 = vmatprep.subr.mxu0 %v75
    %2838 = vmatpush1.msra.mxu0 %v74
    %2839 = vmatprep.subr.mxu0 %v78
    %2840 = vmatpush1.msra.mxu0 %v77
    %2841 = vmatprep.subr.mxu0 %v81
    %2842 = vmatpush1.msra.mxu0 %v80
    %2843 = vmatprep.subr.mxu0 %v84
    %2844 = vmatpush1.msra.mxu0 %v83
    %2845 = vmatprep.subr.mxu0 %v87
    %2846 = vmatpush1.msra.mxu0 %v86
    %2847 = vmatprep.subr.mxu0 %v90
    %2848 = vmatpush1.msra.mxu0 %v89
    %2849 = vmatprep.subr.mxu0 %v93
    %2850 = vmatpush1.msra.mxu0 %v92
    %2851 = vmatprep.subr.mxu0 %v96
    %2852 = vmatpush1.msra.mxu0 %v95
    %2853 = vmatprep.subr.mxu0 %v99
    %2854 = vmatpush1.msra.mxu0 %v98
    %2855 = vmatprep.subr.mxu0 %v102
    %2856 = vmatpush1.msra.mxu0 %v101
    %2857 = vmatprep.subr.mxu0 %v105
    %2858 = vmatpush1.msra.mxu0 %v104
    %2859 = vmatprep.subr.mxu0 %v108
    %2860 = vmatpush1.msra.mxu0 %v107
    %2861 = vmatprep.subr.mxu0 %v111
    %2862 = vmatpush1.msra.mxu0 %v110
    %2863 = vmatprep.subr.mxu0 %v114
    %2864 = vmatpush1.msra.mxu0 %v113
    %2865 = vmatprep.subr.mxu0 %v117
    %2866 = vmatpush1.msra.mxu0 %v116
    %2867 = vmatprep.subr.mxu0 %v120
    %2868 = vmatpush1.msra.mxu0 %v119
    %2869 = vmatprep.subr.mxu0 %v123
    %2870 = vmatpush1.msra.mxu0 %v122
    %2871 = vmatprep.subr.mxu0 %v126
    %2872 = vmatpush1.msra.mxu0 %v125
    %2873 = vmatprep.subr.mxu0 %v129
    %2874 = vmatpush1.msra.mxu0 %v128
    %2875 = vmatprep.subr.mxu0 %v132
    %2876 = vmatpush1.msra.mxu0 %v131
    %2877 = vmatprep.subr.mxu0 %v135
    %2878 = vmatpush1.msra.mxu0 %v134
    %2879 = vmatprep.subr.mxu0 %v138
    %2880 = vmatpush1.msra.mxu0 %v137
    %2881 = vmatprep.subr.mxu0 %v141
    %2882 = vmatpush1.msra.mxu0 %v140
    %2883 = vmatprep.subr.mxu0 %v144
    %2884 = vmatpush1.msra.mxu0 %v143
    %2885 = vmatprep.subr.mxu0 %v147
    %2886 = vmatpush1.msra.mxu0 %v146
    %2887 = vmatprep.subr.mxu0 %v150
    %2888 = vmatpush1.msra.mxu0 %v149
    %2889 = vmatprep.subr.mxu0 %v153
    %2890 = vmatpush1.msra.mxu0 %v152
    %2891 = vmatprep.subr.mxu0 %v156
    %2892 = vmatpush1.msra.mxu0 %v155
    %2893 = vmatprep.subr.mxu0 %v159
    %2894 = vmatpush1.msra.mxu0 %v158
    %2895 = vmatprep.subr.mxu0 %v162
    %2896 = vmatpush1.msra.mxu0 %v161
    %2897 = vmatprep.subr.mxu0 %v165
    %2898 = vmatpush1.msra.mxu0 %v164
    %2899 = vmatprep.subr.mxu0 %v168
    %2900 = vmatpush1.msra.mxu0 %v167
    %2901 = vmatprep.mubr.f32.mxu0 %v2830
    %2902 = vmatmul.mubr.f32.gmra.mrb[0].mxu0 %v2829
    %v2903 = vpop.f32.mrb[0].mxu0
    %v2904 = vadd.f32 0.0, %v2903
    %v2905 = vpop.f32.mrb[0].mxu0
    %v2906 = vadd.f32 0.0, %v2905
    %2907 = vdwg.mxu0
    %2908 = vmatprep.subr.mxu0 %v171
    %2909 = vmatpush1.msra.mxu0 %v170
    %2910 = vmatprep.subr.mxu0 %v174
    %2911 = vmatpush1.msra.mxu0 %v173
    %2912 = vmatprep.subr.mxu0 %v177
    %2913 = vmatpush1.msra.mxu0 %v176
    %2914 = vmatprep.subr.mxu0 %v180
    %2915 = vmatpush1.msra.mxu0 %v179
    %2916 = vmatprep.subr.mxu0 %v183
    %2917 = vmatpush1.msra.mxu0 %v182
    %2918 = vmatprep.subr.mxu0 %v186
    %2919 = vmatpush1.msra.mxu0 %v185
    %2920 = vmatprep.subr.mxu0 %v189
    %2921 = vmatpush1.msra.mxu0 %v188
    %2922 = vmatprep.subr.mxu0 %v192
    %2923 = vmatpush1.msra.mxu0 %v191
    %2924 = vmatprep.subr.mxu0 0.0
    %2925 = vmatpush1.msra.mxu0 0.0
    %2926 = vmatprep.subr.mxu0 0.0
    %2927 = vmatpush1.msra.mxu0 0.0
    %2928 = vmatprep.subr.mxu0 0.0
    %2929 = vmatpush1.msra.mxu0 0.0
    %2930 = vmatprep.subr.mxu0 0.0
    %2931 = vmatpush1.msra.mxu0 0.0
    %2932 = vmatprep.subr.mxu0 0.0
    %2933 = vmatpush1.msra.mxu0 0.0
    %2934 = vmatprep.subr.mxu0 0.0
    %2935 = vmatpush1.msra.mxu0 0.0
    %2936 = vmatprep.subr.mxu0 0.0
    %2937 = vmatpush1.msra.mxu0 0.0
    %2938 = vmatprep.subr.mxu0 0.0
    %2939 = vmatpush1.msra.mxu0 0.0
    %2940 = vmatprep.subr.mxu0 0.0
    %2941 = vmatpush1.msra.mxu0 0.0
    %2942 = vmatprep.subr.mxu0 0.0
    %2943 = vmatpush1.msra.mxu0 0.0
    %2944 = vmatprep.subr.mxu0 0.0
    %2945 = vmatpush1.msra.mxu0 0.0
    %2946 = vmatprep.subr.mxu0 0.0
    %2947 = vmatpush1.msra.mxu0 0.0
    %2948 = vmatprep.subr.mxu0 0.0
    %2949 = vmatpush1.msra.mxu0 0.0
    %2950 = vmatprep.subr.mxu0 0.0
    %2951 = vmatpush1.msra.mxu0 0.0
    %2952 = vmatprep.subr.mxu0 0.0
    %2953 = vmatpush1.msra.mxu0 0.0
    %2954 = vmatprep.subr.mxu0 0.0
    %2955 = vmatpush1.msra.mxu0 0.0
    %2956 = vmatprep.subr.mxu0 0.0
    %2957 = vmatpush1.msra.mxu0 0.0
    %2958 = vmatprep.subr.mxu0 0.0
    %2959 = vmatpush1.msra.mxu0 0.0
    %2960 = vmatprep.subr.mxu0 0.0
    %2961 = vmatpush1.msra.mxu0 0.0
    %2962 = vmatprep.subr.mxu0 0.0
    %2963 = vmatpush1.msra.mxu0 0.0
    %2964 = vmatprep.subr.mxu0 0.0
    %2965 = vmatpush1.msra.mxu0 0.0
    %2966 = vmatprep.subr.mxu0 0.0
    %2967 = vmatpush1.msra.mxu0 0.0
    %2968 = vmatprep.subr.mxu0 0.0
    %2969 = vmatpush1.msra.mxu0 0.0
    %2970 = vmatprep.subr.mxu0 0.0
    %2971 = vmatpush1.msra.mxu0 0.0
    %2972 = vmatprep.mubr.f32.mxu0 0.0
    %2973 = vmatmul.mubr.f32.gmra.mrb[0].mxu0 %v2835
    %v2974 = vpop.f32.mrb[0].mxu0
    %v2975 = vadd.f32 %v2904, %v2974
    %v2976 = vpop.f32.mrb[0].mxu0
    %v2977 = vadd.f32 %v2906, %v2976
    %2978 = vdwg.mxu0
    %2979 = vmatprep.subr.mxu0 0.0
    %2980 = vmatpush1.msra.mxu0 %v76
    %2981 = vmatprep.subr.mxu0 0.0
    %2982 = vmatpush1.msra.mxu0 %v79
    %2983 = vmatprep.subr.mxu0 0.0
    %2984 = vmatpush1.msra.mxu0 %v82
    %2985 = vmatprep.subr.mxu0 0.0
    %2986 = vmatpush1.msra.mxu0 %v85
    %2987 = vmatprep.subr.mxu0 0.0
    %2988 = vmatpush1.msra.mxu0 %v88
    %2989 = vmatprep.subr.mxu0 0.0
    %2990 = vmatpush1.msra.mxu0 %v91
    %2991 = vmatprep.subr.mxu0 0.0
    %2992 = vmatpush1.msra.mxu0 %v94
    %2993 = vmatprep.subr.mxu0 0.0
    %2994 = vmatpush1.msra.mxu0 %v97
    %2995 = vmatprep.subr.mxu0 0.0
    %2996 = vmatpush1.msra.mxu0 %v100
    %2997 = vmatprep.subr.mxu0 0.0
    %2998 = vmatpush1.msra.mxu0 %v103
    %2999 = vmatprep.subr.mxu0 0.0
    %3000 = vmatpush1.msra.mxu0 %v106
    %3001 = vmatprep.subr.mxu0 0.0
    %3002 = vmatpush1.msra.mxu0 %v109
    %3003 = vmatprep.subr.mxu0 0.0
    %3004 = vmatpush1.msra.mxu0 %v112
    %3005 = vmatprep.subr.mxu0 0.0
    %3006 = vmatpush1.msra.mxu0 %v115
    %3007 = vmatprep.subr.mxu0 0.0
    %3008 = vmatpush1.msra.mxu0 %v118
    %3009 = vmatprep.subr.mxu0 0.0
    %3010 = vmatpush1.msra.mxu0 %v121
    %3011 = vmatprep.subr.mxu0 0.0
    %3012 = vmatpush1.msra.mxu0 %v124
    %3013 = vmatprep.subr.mxu0 0.0
    %3014 = vmatpush1.msra.mxu0 %v127
    %3015 = vmatprep.subr.mxu0 0.0
    %3016 = vmatpush1.msra.mxu0 %v130
    %3017 = vmatprep.subr.mxu0 0.0
    %3018 = vmatpush1.msra.mxu0 %v133
    %3019 = vmatprep.subr.mxu0 0.0
    %3020 = vmatpush1.msra.mxu0 %v136
    %3021 = vmatprep.subr.mxu0 0.0
    %3022 = vmatpush1.msra.mxu0 %v139
    %3023 = vmatprep.subr.mxu0 0.0
    %3024 = vmatpush1.msra.mxu0 %v142
    %3025 = vmatprep.subr.mxu0 0.0
    %3026 = vmatpush1.msra.mxu0 %v145
    %3027 = vmatprep.subr.mxu0 0.0
    %3028 = vmatpush1.msra.mxu0 %v148
    %3029 = vmatprep.subr.mxu0 0.0
    %3030 = vmatpush1.msra.mxu0 %v151
    %3031 = vmatprep.subr.mxu0 0.0
    %3032 = vmatpush1.msra.mxu0 %v154
    %3033 = vmatprep.subr.mxu0 0.0
    %3034 = vmatpush1.msra.mxu0 %v157
    %3035 = vmatprep.subr.mxu0 0.0
    %3036 = vmatpush1.msra.mxu0 %v160
    %3037 = vmatprep.subr.mxu0 0.0
    %3038 = vmatpush1.msra.mxu0 %v163
    %3039 = vmatprep.subr.mxu0 0.0
    %3040 = vmatpush1.msra.mxu0 %v166
    %3041 = vmatprep.subr.mxu0 0.0
    %3042 = vmatpush1.msra.mxu0 %v169
    %3043 = vmatprep.mubr.f32.mxu0 %v2830
    %3044 = vmatmul.mubr.f32.gmra.mrb[0].mxu0 %v2829
    %v3045 = vpop.f32.mrb[0].mxu0
    %v3046 = vadd.f32 0.0, %v3045
    %v3047 = vpop.f32.mrb[0].mxu0
    %3048 = vdwg.mxu0
    %3049 = vmatprep.subr.mxu0 0.0
    %3050 = vmatpush1.msra.mxu0 %v172
    %3051 = vmatprep.subr.mxu0 0.0
    %3052 = vmatpush1.msra.mxu0 %v175
    %3053 = vmatprep.subr.mxu0 0.0
    %3054 = vmatpush1.msra.mxu0 %v178
    %3055 = vmatprep.subr.mxu0 0.0
    %3056 = vmatpush1.msra.mxu0 %v181
    %3057 = vmatprep.subr.mxu0 0.0
    %3058 = vmatpush1.msra.mxu0 %v184
    %3059 = vmatprep.subr.mxu0 0.0
    %3060 = vmatpush1.msra.mxu0 %v187
    %3061 = vmatprep.subr.mxu0 0.0
    %3062 = vmatpush1.msra.mxu0 %v190
    %3063 = vmatprep.subr.mxu0 0.0
    %3064 = vmatpush1.msra.mxu0 %v193
    %3065 = vmatprep.subr.mxu0 0.0
    %3066 = vmatpush1.msra.mxu0 0.0
    %3067 = vmatprep.subr.mxu0 0.0
    %3068 = vmatpush1.msra.mxu0 0.0
    %3069 = vmatprep.subr.mxu0 0.0
    %3070 = vmatpush1.msra.mxu0 0.0
    %3071 = vmatprep.subr.mxu0 0.0
    %3072 = vmatpush1.msra.mxu0 0.0
    %3073 = vmatprep.subr.mxu0 0.0
    %3074 = vmatpush1.msra.mxu0 0.0
    %3075 = vmatprep.subr.mxu0 0.0
    %3076 = vmatpush1.msra.mxu0 0.0
    %3077 = vmatprep.subr.mxu0 0.0
    %3078 = vmatpush1.msra.mxu0 0.0
    %3079 = vmatprep.subr.mxu0 0.0
    %3080 = vmatpush1.msra.mxu0 0.0
    %3081 = vmatprep.subr.mxu0 0.0
    %3082 = vmatpush1.msra.mxu0 0.0
    %3083 = vmatprep.subr.mxu0 0.0
    %3084 = vmatpush1.msra.mxu0 0.0
    %3085 = vmatprep.subr.mxu0 0.0
    %3086 = vmatpush1.msra.mxu0 0.0
    %3087 = vmatprep.subr.mxu0 0.0
    %3088 = vmatpush1.msra.mxu0 0.0
    %3089 = vmatprep.subr.mxu0 0.0
    %3090 = vmatpush1.msra.mxu0 0.0
    %3091 = vmatprep.subr.mxu0 0.0
    %3092 = vmatpush1.msra.mxu0 0.0
    %3093 = vmatprep.subr.mxu0 0.0
    %3094 = vmatpush1.msra.mxu0 0.0
    %3095 = vmatprep.subr.mxu0 0.0
    %3096 = vmatpush1.msra.mxu0 0.0
    %3097 = vmatprep.subr.mxu0 0.0
    %3098 = vmatpush1.msra.mxu0 0.0
    %3099 = vmatprep.subr.mxu0 0.0
    %3100 = vmatpush1.msra.mxu0 0.0
    %3101 = vmatprep.subr.mxu0 0.0
    %3102 = vmatpush1.msra.mxu0 0.0
    %3103 = vmatprep.subr.mxu0 0.0
    %3104 = vmatpush1.msra.mxu0 0.0
    %3105 = vmatprep.subr.mxu0 0.0
    %3106 = vmatpush1.msra.mxu0 0.0
    %3107 = vmatprep.subr.mxu0 0.0
    %3108 = vmatpush1.msra.mxu0 0.0
    %3109 = vmatprep.subr.mxu0 0.0
    %3110 = vmatpush1.msra.mxu0 0.0
    %3111 = vmatprep.subr.mxu0 0.0
    %3112 = vmatpush1.msra.mxu0 0.0
    %3113 = vmatprep.mubr.f32.mxu0 0.0
    %3114 = vmatmul.mubr.f32.gmra.mrb[0].mxu0 %v2835
    %v3115 = vpop.f32.mrb[0].mxu0
    %v3116 = vadd.f32 %v3046, %v3115
    %v3117 = vpop.f32.mrb[0].mxu0
    %3118 = vdwg.mxu0
    %v3120 = vsel %vm480, %v2833, 0
    %3122 = vmatprep.subr.mxu0 %v63
    %3123 = vmatpush1.msra.mxu0 %v62
    %3124 = vmatprep.subr.mxu0 %v66
    %3125 = vmatpush1.msra.mxu0 %v65
    %3126 = vmatprep.subr.mxu0 %v69
    %3127 = vmatpush1.msra.mxu0 %v68
    %3128 = vmatprep.subr.mxu0 %v72
    %3129 = vmatpush1.msra.mxu0 %v71
    %3130 = vmatprep.subr.mxu0 0.0
    %3131 = vmatpush1.msra.mxu0 0.0
    %3132 = vmatprep.subr.mxu0 0.0
    %3133 = vmatpush1.msra.mxu0 0.0
    %3134 = vmatprep.subr.mxu0 0.0
    %3135 = vmatpush1.msra.mxu0 0.0
    %3136 = vmatprep.subr.mxu0 0.0
    %3137 = vmatpush1.msra.mxu0 0.0
    %3138 = vmatprep.subr.mxu0 0.0
    %3139 = vmatpush1.msra.mxu0 0.0
    %3140 = vmatprep.subr.mxu0 0.0
    %3141 = vmatpush1.msra.mxu0 0.0
    %3142 = vmatprep.subr.mxu0 0.0
    %3143 = vmatpush1.msra.mxu0 0.0
    %3144 = vmatprep.subr.mxu0 0.0
    %3145 = vmatpush1.msra.mxu0 0.0
    %3146 = vmatprep.subr.mxu0 0.0
    %3147 = vmatpush1.msra.mxu0 0.0
    %3148 = vmatprep.subr.mxu0 0.0
    %3149 = vmatpush1.msra.mxu0 0.0
    %3150 = vmatprep.subr.mxu0 0.0
    %3151 = vmatpush1.msra.mxu0 0.0
    %3152 = vmatprep.subr.mxu0 0.0
    %3153 = vmatpush1.msra.mxu0 0.0
    %3154 = vmatprep.subr.mxu0 0.0
    %3155 = vmatpush1.msra.mxu0 0.0
    %3156 = vmatprep.subr.mxu0 0.0
    %3157 = vmatpush1.msra.mxu0 0.0
    %3158 = vmatprep.subr.mxu0 0.0
    %3159 = vmatpush1.msra.mxu0 0.0
    %3160 = vmatprep.subr.mxu0 0.0
    %3161 = vmatpush1.msra.mxu0 0.0
    %3162 = vmatprep.subr.mxu0 0.0
    %3163 = vmatpush1.msra.mxu0 0.0
    %3164 = vmatprep.subr.mxu0 0.0
    %3165 = vmatpush1.msra.mxu0 0.0
    %3166 = vmatprep.subr.mxu0 0.0
    %3167 = vmatpush1.msra.mxu0 0.0
    %3168 = vmatprep.subr.mxu0 0.0
    %3169 = vmatpush1.msra.mxu0 0.0
    %3170 = vmatprep.subr.mxu0 0.0
    %3171 = vmatpush1.msra.mxu0 0.0
    %3172 = vmatprep.subr.mxu0 0.0
    %3173 = vmatpush1.msra.mxu0 0.0
    %3174 = vmatprep.subr.mxu0 0.0
    %3175 = vmatpush1.msra.mxu0 0.0
    %3176 = vmatprep.subr.mxu0 0.0
    %3177 = vmatpush1.msra.mxu0 0.0
    %3178 = vmatprep.subr.mxu0 0.0
    %3179 = vmatpush1.msra.mxu0 0.0
    %3180 = vmatprep.subr.mxu0 0.0
    %3181 = vmatpush1.msra.mxu0 0.0
    %3182 = vmatprep.subr.mxu0 0.0
    %3183 = vmatpush1.msra.mxu0 0.0
    %3184 = vmatprep.subr.mxu0 0.0
    %3185 = vmatpush1.msra.mxu0 0.0
    %3186 = vmatprep.mubr.f32.mxu0 0.0
    %3187 = vmatmul.mubr.f32.gmra.mrb[0].mxu0 %v3120
    %v3188 = vpop.f32.mrb[0].mxu0
    %v3189 = vadd.f32 %v2975, %v3188
    %v3190 = vpop.f32.mrb[0].mxu0
    %v3191 = vadd.f32 %v2977, %v3190
    %3192 = vdwg.mxu0
    %3193 = vmatprep.subr.mxu0 0.0
    %3194 = vmatpush1.msra.mxu0 %v64
    %3195 = vmatprep.subr.mxu0 0.0
    %3196 = vmatpush1.msra.mxu0 %v67
    %3197 = vmatprep.subr.mxu0 0.0
    %3198 = vmatpush1.msra.mxu0 %v70
    %3199 = vmatprep.subr.mxu0 0.0
    %3200 = vmatpush1.msra.mxu0 %v73
    %3201 = vmatprep.subr.mxu0 0.0
    %3202 = vmatpush1.msra.mxu0 0.0
    %3203 = vmatprep.subr.mxu0 0.0
    %3204 = vmatpush1.msra.mxu0 0.0
    %3205 = vmatprep.subr.mxu0 0.0
    %3206 = vmatpush1.msra.mxu0 0.0
    %3207 = vmatprep.subr.mxu0 0.0
    %3208 = vmatpush1.msra.mxu0 0.0
    %3209 = vmatprep.subr.mxu0 0.0
    %3210 = vmatpush1.msra.mxu0 0.0
    %3211 = vmatprep.subr.mxu0 0.0
    %3212 = vmatpush1.msra.mxu0 0.0
    %3213 = vmatprep.subr.mxu0 0.0
    %3214 = vmatpush1.msra.mxu0 0.0
    %3215 = vmatprep.subr.mxu0 0.0
    %3216 = vmatpush1.msra.mxu0 0.0
    %3217 = vmatprep.subr.mxu0 0.0
    %3218 = vmatpush1.msra.mxu0 0.0
    %3219 = vmatprep.subr.mxu0 0.0
    %3220 = vmatpush1.msra.mxu0 0.0
    %3221 = vmatprep.subr.mxu0 0.0
    %3222 = vmatpush1.msra.mxu0 0.0
    %3223 = vmatprep.subr.mxu0 0.0
    %3224 = vmatpush1.msra.mxu0 0.0
    %3225 = vmatprep.subr.mxu0 0.0
    %3226 = vmatpush1.msra.mxu0 0.0
    %3227 = vmatprep.subr.mxu0 0.0
    %3228 = vmatpush1.msra.mxu0 0.0
    %3229 = vmatprep.subr.mxu0 0.0
    %3230 = vmatpush1.msra.mxu0 0.0
    %3231 = vmatprep.subr.mxu0 0.0
    %3232 = vmatpush1.msra.mxu0 0.0
    %3233 = vmatprep.subr.mxu0 0.0
    %3234 = vmatpush1.msra.mxu0 0.0
    %3235 = vmatprep.subr.mxu0 0.0
    %3236 = vmatpush1.msra.mxu0 0.0
    %3237 = vmatprep.subr.mxu0 0.0
    %3238 = vmatpush1.msra.mxu0 0.0
    %3239 = vmatprep.subr.mxu0 0.0
    %3240 = vmatpush1.msra.mxu0 0.0
    %3241 = vmatprep.subr.mxu0 0.0
    %3242 = vmatpush1.msra.mxu0 0.0
    %3243 = vmatprep.subr.mxu0 0.0
    %3244 = vmatpush1.msra.mxu0 0.0
    %3245 = vmatprep.subr.mxu0 0.0
    %3246 = vmatpush1.msra.mxu0 0.0
    %3247 = vmatprep.subr.mxu0 0.0
    %3248 = vmatpush1.msra.mxu0 0.0
    %3249 = vmatprep.subr.mxu0 0.0
    %3250 = vmatpush1.msra.mxu0 0.0
    %3251 = vmatprep.subr.mxu0 0.0
    %3252 = vmatpush1.msra.mxu0 0.0
    %3253 = vmatprep.subr.mxu0 0.0
    %3254 = vmatpush1.msra.mxu0 0.0
    %3255 = vmatprep.subr.mxu0 0.0
    %3256 = vmatpush1.msra.mxu0 0.0
    %3257 = vmatprep.mubr.f32.mxu0 0.0
    %3258 = vmatmul.mubr.f32.gmra.mrb[0].mxu0 %v3120
    %v3259 = vpop.f32.mrb[0].mxu0
    %v3260 = vadd.f32 %v3116, %v3259
    %v3261 = vpop.f32.mrb[0].mxu0
    %3262 = vdwg.mxu0
    %v3263 = vadd.f32 %v3189, %v629
    %v3264 = vadd.f32 %v3191, %v633
    %v3265 = vadd.f32 %v3260, %v637
    %v3266 = vtanh.pop %v3263
    %v3267 = vtanh.pop %v3264
    %v3268 = vtanh.pop %v3265
    %s3269 = scalar_lea.vmem %s0, 56
    %v3270 = vld [vmem:[%s3269] sm:$0xff]
    %v3272 = vsel %vm194, %v3268, 0
    %3274 = vmatprep.subr.mxu0 %v75
    %3275 = vmatpush1.msra.mxu0 %v74
    %3276 = vmatprep.subr.mxu0 %v78
    %3277 = vmatpush1.msra.mxu0 %v77
    %3278 = vmatprep.subr.mxu0 %v81
    %3279 = vmatpush1.msra.mxu0 %v80
    %3280 = vmatprep.subr.mxu0 %v84
    %3281 = vmatpush1.msra.mxu0 %v83
    %3282 = vmatprep.subr.mxu0 %v87
    %3283 = vmatpush1.msra.mxu0 %v86
    %3284 = vmatprep.subr.mxu0 %v90
    %3285 = vmatpush1.msra.mxu0 %v89
    %3286 = vmatprep.subr.mxu0 %v93
    %3287 = vmatpush1.msra.mxu0 %v92
    %3288 = vmatprep.subr.mxu0 %v96
    %3289 = vmatpush1.msra.mxu0 %v95
    %3290 = vmatprep.subr.mxu0 %v99
    %3291 = vmatpush1.msra.mxu0 %v98
    %3292 = vmatprep.subr.mxu0 %v102
    %3293 = vmatpush1.msra.mxu0 %v101
    %3294 = vmatprep.subr.mxu0 %v105
    %3295 = vmatpush1.msra.mxu0 %v104
    %3296 = vmatprep.subr.mxu0 %v108
    %3297 = vmatpush1.msra.mxu0 %v107
    %3298 = vmatprep.subr.mxu0 %v111
    %3299 = vmatpush1.msra.mxu0 %v110
    %3300 = vmatprep.subr.mxu0 %v114
    %3301 = vmatpush1.msra.mxu0 %v113
    %3302 = vmatprep.subr.mxu0 %v117
    %3303 = vmatpush1.msra.mxu0 %v116
    %3304 = vmatprep.subr.mxu0 %v120
    %3305 = vmatpush1.msra.mxu0 %v119
    %3306 = vmatprep.subr.mxu0 %v123
    %3307 = vmatpush1.msra.mxu0 %v122
    %3308 = vmatprep.subr.mxu0 %v126
    %3309 = vmatpush1.msra.mxu0 %v125
    %3310 = vmatprep.subr.mxu0 %v129
    %3311 = vmatpush1.msra.mxu0 %v128
    %3312 = vmatprep.subr.mxu0 %v132
    %3313 = vmatpush1.msra.mxu0 %v131
    %3314 = vmatprep.subr.mxu0 %v135
    %3315 = vmatpush1.msra.mxu0 %v134
    %3316 = vmatprep.subr.mxu0 %v138
    %3317 = vmatpush1.msra.mxu0 %v137
    %3318 = vmatprep.subr.mxu0 %v141
    %3319 = vmatpush1.msra.mxu0 %v140
    %3320 = vmatprep.subr.mxu0 %v144
    %3321 = vmatpush1.msra.mxu0 %v143
    %3322 = vmatprep.subr.mxu0 %v147
    %3323 = vmatpush1.msra.mxu0 %v146
    %3324 = vmatprep.subr.mxu0 %v150
    %3325 = vmatpush1.msra.mxu0 %v149
    %3326 = vmatprep.subr.mxu0 %v153
    %3327 = vmatpush1.msra.mxu0 %v152
    %3328 = vmatprep.subr.mxu0 %v156
    %3329 = vmatpush1.msra.mxu0 %v155
    %3330 = vmatprep.subr.mxu0 %v159
    %3331 = vmatpush1.msra.mxu0 %v158
    %3332 = vmatprep.subr.mxu0 %v162
    %3333 = vmatpush1.msra.mxu0 %v161
    %3334 = vmatprep.subr.mxu0 %v165
    %3335 = vmatpush1.msra.mxu0 %v164
    %3336 = vmatprep.subr.mxu0 %v168
    %3337 = vmatpush1.msra.mxu0 %v167
    %3338 = vmatprep.mubr.f32.mxu0 %v3267
    %3339 = vmatmul.mubr.f32.gmra.mrb[0].mxu0 %v3266
    %v3340 = vpop.f32.mrb[0].mxu0
    %v3341 = vadd.f32 0.0, %v3340
    %v3342 = vpop.f32.mrb[0].mxu0
    %v3343 = vadd.f32 0.0, %v3342
    %3344 = vdwg.mxu0
    %3345 = vmatprep.subr.mxu0 %v171
    %3346 = vmatpush1.msra.mxu0 %v170
    %3347 = vmatprep.subr.mxu0 %v174
    %3348 = vmatpush1.msra.mxu0 %v173
    %3349 = vmatprep.subr.mxu0 %v177
    %3350 = vmatpush1.msra.mxu0 %v176
    %3351 = vmatprep.subr.mxu0 %v180
    %3352 = vmatpush1.msra.mxu0 %v179
    %3353 = vmatprep.subr.mxu0 %v183
    %3354 = vmatpush1.msra.mxu0 %v182
    %3355 = vmatprep.subr.mxu0 %v186
    %3356 = vmatpush1.msra.mxu0 %v185
    %3357 = vmatprep.subr.mxu0 %v189
    %3358 = vmatpush1.msra.mxu0 %v188
    %3359 = vmatprep.subr.mxu0 %v192
    %3360 = vmatpush1.msra.mxu0 %v191
    %3361 = vmatprep.subr.mxu0 0.0
    %3362 = vmatpush1.msra.mxu0 0.0
    %3363 = vmatprep.subr.mxu0 0.0
    %3364 = vmatpush1.msra.mxu0 0.0
    %3365 = vmatprep.subr.mxu0 0.0
    %3366 = vmatpush1.msra.mxu0 0.0
    %3367 = vmatprep.subr.mxu0 0.0
    %3368 = vmatpush1.msra.mxu0 0.0
    %3369 = vmatprep.subr.mxu0 0.0
    %3370 = vmatpush1.msra.mxu0 0.0
    %3371 = vmatprep.subr.mxu0 0.0
    %3372 = vmatpush1.msra.mxu0 0.0
    %3373 = vmatprep.subr.mxu0 0.0
    %3374 = vmatpush1.msra.mxu0 0.0
    %3375 = vmatprep.subr.mxu0 0.0
    %3376 = vmatpush1.msra.mxu0 0.0
    %3377 = vmatprep.subr.mxu0 0.0
    %3378 = vmatpush1.msra.mxu0 0.0
    %3379 = vmatprep.subr.mxu0 0.0
    %3380 = vmatpush1.msra.mxu0 0.0
    %3381 = vmatprep.subr.mxu0 0.0
    %3382 = vmatpush1.msra.mxu0 0.0
    %3383 = vmatprep.subr.mxu0 0.0
    %3384 = vmatpush1.msra.mxu0 0.0
    %3385 = vmatprep.subr.mxu0 0.0
    %3386 = vmatpush1.msra.mxu0 0.0
    %3387 = vmatprep.subr.mxu0 0.0
    %3388 = vmatpush1.msra.mxu0 0.0
    %3389 = vmatprep.subr.mxu0 0.0
    %3390 = vmatpush1.msra.mxu0 0.0
    %3391 = vmatprep.subr.mxu0 0.0
    %3392 = vmatpush1.msra.mxu0 0.0
    %3393 = vmatprep.subr.mxu0 0.0
    %3394 = vmatpush1.msra.mxu0 0.0
    %3395 = vmatprep.subr.mxu0 0.0
    %3396 = vmatpush1.msra.mxu0 0.0
    %3397 = vmatprep.subr.mxu0 0.0
    %3398 = vmatpush1.msra.mxu0 0.0
    %3399 = vmatprep.subr.mxu0 0.0
    %3400 = vmatpush1.msra.mxu0 0.0
    %3401 = vmatprep.subr.mxu0 0.0
    %3402 = vmatpush1.msra.mxu0 0.0
    %3403 = vmatprep.subr.mxu0 0.0
    %3404 = vmatpush1.msra.mxu0 0.0
    %3405 = vmatprep.subr.mxu0 0.0
    %3406 = vmatpush1.msra.mxu0 0.0
    %3407 = vmatprep.subr.mxu0 0.0
    %3408 = vmatpush1.msra.mxu0 0.0
    %3409 = vmatprep.mubr.f32.mxu0 0.0
    %3410 = vmatmul.mubr.f32.gmra.mrb[0].mxu0 %v3272
    %v3411 = vpop.f32.mrb[0].mxu0
    %v3412 = vadd.f32 %v3341, %v3411
    %v3413 = vpop.f32.mrb[0].mxu0
    %v3414 = vadd.f32 %v3343, %v3413
    %3415 = vdwg.mxu0
    %3416 = vmatprep.subr.mxu0 0.0
    %3417 = vmatpush1.msra.mxu0 %v76
    %3418 = vmatprep.subr.mxu0 0.0
    %3419 = vmatpush1.msra.mxu0 %v79
    %3420 = vmatprep.subr.mxu0 0.0
    %3421 = vmatpush1.msra.mxu0 %v82
    %3422 = vmatprep.subr.mxu0 0.0
    %3423 = vmatpush1.msra.mxu0 %v85
    %3424 = vmatprep.subr.mxu0 0.0
    %3425 = vmatpush1.msra.mxu0 %v88
    %3426 = vmatprep.subr.mxu0 0.0
    %3427 = vmatpush1.msra.mxu0 %v91
    %3428 = vmatprep.subr.mxu0 0.0
    %3429 = vmatpush1.msra.mxu0 %v94
    %3430 = vmatprep.subr.mxu0 0.0
    %3431 = vmatpush1.msra.mxu0 %v97
    %3432 = vmatprep.subr.mxu0 0.0
    %3433 = vmatpush1.msra.mxu0 %v100
    %3434 = vmatprep.subr.mxu0 0.0
    %3435 = vmatpush1.msra.mxu0 %v103
    %3436 = vmatprep.subr.mxu0 0.0
    %3437 = vmatpush1.msra.mxu0 %v106
    %3438 = vmatprep.subr.mxu0 0.0
    %3439 = vmatpush1.msra.mxu0 %v109
    %3440 = vmatprep.subr.mxu0 0.0
    %3441 = vmatpush1.msra.mxu0 %v112
    %3442 = vmatprep.subr.mxu0 0.0
    %3443 = vmatpush1.msra.mxu0 %v115
    %3444 = vmatprep.subr.mxu0 0.0
    %3445 = vmatpush1.msra.mxu0 %v118
    %3446 = vmatprep.subr.mxu0 0.0
    %3447 = vmatpush1.msra.mxu0 %v121
    %3448 = vmatprep.subr.mxu0 0.0
    %3449 = vmatpush1.msra.mxu0 %v124
    %3450 = vmatprep.subr.mxu0 0.0
    %3451 = vmatpush1.msra.mxu0 %v127
    %3452 = vmatprep.subr.mxu0 0.0
    %3453 = vmatpush1.msra.mxu0 %v130
    %3454 = vmatprep.subr.mxu0 0.0
    %3455 = vmatpush1.msra.mxu0 %v133
    %3456 = vmatprep.subr.mxu0 0.0
    %3457 = vmatpush1.msra.mxu0 %v136
    %3458 = vmatprep.subr.mxu0 0.0
    %3459 = vmatpush1.msra.mxu0 %v139
    %3460 = vmatprep.subr.mxu0 0.0
    %3461 = vmatpush1.msra.mxu0 %v142
    %3462 = vmatprep.subr.mxu0 0.0
    %3463 = vmatpush1.msra.mxu0 %v145
    %3464 = vmatprep.subr.mxu0 0.0
    %3465 = vmatpush1.msra.mxu0 %v148
    %3466 = vmatprep.subr.mxu0 0.0
    %3467 = vmatpush1.msra.mxu0 %v151
    %3468 = vmatprep.subr.mxu0 0.0
    %3469 = vmatpush1.msra.mxu0 %v154
    %3470 = vmatprep.subr.mxu0 0.0
    %3471 = vmatpush1.msra.mxu0 %v157
    %3472 = vmatprep.subr.mxu0 0.0
    %3473 = vmatpush1.msra.mxu0 %v160
    %3474 = vmatprep.subr.mxu0 0.0
    %3475 = vmatpush1.msra.mxu0 %v163
    %3476 = vmatprep.subr.mxu0 0.0
    %3477 = vmatpush1.msra.mxu0 %v166
    %3478 = vmatprep.subr.mxu0 0.0
    %3479 = vmatpush1.msra.mxu0 %v169
    %3480 = vmatprep.mubr.f32.mxu0 %v3267
    %3481 = vmatmul.mubr.f32.gmra.mrb[0].mxu0 %v3266
    %v3482 = vpop.f32.mrb[0].mxu0
    %v3483 = vadd.f32 0.0, %v3482
    %v3484 = vpop.f32.mrb[0].mxu0
    %3485 = vdwg.mxu0
    %3486 = vmatprep.subr.mxu0 0.0
    %3487 = vmatpush1.msra.mxu0 %v172
    %3488 = vmatprep.subr.mxu0 0.0
    %3489 = vmatpush1.msra.mxu0 %v175
    %3490 = vmatprep.subr.mxu0 0.0
    %3491 = vmatpush1.msra.mxu0 %v178
    %3492 = vmatprep.subr.mxu0 0.0
    %3493 = vmatpush1.msra.mxu0 %v181
    %3494 = vmatprep.subr.mxu0 0.0
    %3495 = vmatpush1.msra.mxu0 %v184
    %3496 = vmatprep.subr.mxu0 0.0
    %3497 = vmatpush1.msra.mxu0 %v187
    %3498 = vmatprep.subr.mxu0 0.0
    %3499 = vmatpush1.msra.mxu0 %v190
    %3500 = vmatprep.subr.mxu0 0.0
    %3501 = vmatpush1.msra.mxu0 %v193
    %3502 = vmatprep.subr.mxu0 0.0
    %3503 = vmatpush1.msra.mxu0 0.0
    %3504 = vmatprep.subr.mxu0 0.0
    %3505 = vmatpush1.msra.mxu0 0.0
    %3506 = vmatprep.subr.mxu0 0.0
    %3507 = vmatpush1.msra.mxu0 0.0
    %3508 = vmatprep.subr.mxu0 0.0
    %3509 = vmatpush1.msra.mxu0 0.0
    %3510 = vmatprep.subr.mxu0 0.0
    %3511 = vmatpush1.msra.mxu0 0.0
    %3512 = vmatprep.subr.mxu0 0.0
    %3513 = vmatpush1.msra.mxu0 0.0
    %3514 = vmatprep.subr.mxu0 0.0
    %3515 = vmatpush1.msra.mxu0 0.0
    %3516 = vmatprep.subr.mxu0 0.0
    %3517 = vmatpush1.msra.mxu0 0.0
    %3518 = vmatprep.subr.mxu0 0.0
    %3519 = vmatpush1.msra.mxu0 0.0
    %3520 = vmatprep.subr.mxu0 0.0
    %3521 = vmatpush1.msra.mxu0 0.0
    %3522 = vmatprep.subr.mxu0 0.0
    %3523 = vmatpush1.msra.mxu0 0.0
    %3524 = vmatprep.subr.mxu0 0.0
    %3525 = vmatpush1.msra.mxu0 0.0
    %3526 = vmatprep.subr.mxu0 0.0
    %3527 = vmatpush1.msra.mxu0 0.0
    %3528 = vmatprep.subr.mxu0 0.0
    %3529 = vmatpush1.msra.mxu0 0.0
    %3530 = vmatprep.subr.mxu0 0.0
    %3531 = vmatpush1.msra.mxu0 0.0
    %3532 = vmatprep.subr.mxu0 0.0
    %3533 = vmatpush1.msra.mxu0 0.0
    %3534 = vmatprep.subr.mxu0 0.0
    %3535 = vmatpush1.msra.mxu0 0.0
    %3536 = vmatprep.subr.mxu0 0.0
    %3537 = vmatpush1.msra.mxu0 0.0
    %3538 = vmatprep.subr.mxu0 0.0
    %3539 = vmatpush1.msra.mxu0 0.0
    %3540 = vmatprep.subr.mxu0 0.0
    %3541 = vmatpush1.msra.mxu0 0.0
    %3542 = vmatprep.subr.mxu0 0.0
    %3543 = vmatpush1.msra.mxu0 0.0
    %3544 = vmatprep.subr.mxu0 0.0
    %3545 = vmatpush1.msra.mxu0 0.0
    %3546 = vmatprep.subr.mxu0 0.0
    %3547 = vmatpush1.msra.mxu0 0.0
    %3548 = vmatprep.subr.mxu0 0.0
    %3549 = vmatpush1.msra.mxu0 0.0
    %3550 = vmatprep.mubr.f32.mxu0 0.0
    %3551 = vmatmul.mubr.f32.gmra.mrb[0].mxu0 %v3272
    %v3552 = vpop.f32.mrb[0].mxu0
    %v3553 = vadd.f32 %v3483, %v3552
    %v3554 = vpop.f32.mrb[0].mxu0
    %3555 = vdwg.mxu0
    %v3557 = vsel %vm480, %v3270, 0
    %3559 = vmatprep.subr.mxu0 %v63
    %3560 = vmatpush1.msra.mxu0 %v62
    %3561 = vmatprep.subr.mxu0 %v66
    %3562 = vmatpush1.msra.mxu0 %v65
    %3563 = vmatprep.subr.mxu0 %v69
    %3564 = vmatpush1.msra.mxu0 %v68
    %3565 = vmatprep.subr.mxu0 %v72
    %3566 = vmatpush1.msra.mxu0 %v71
    %3567 = vmatprep.subr.mxu0 0.0
    %3568 = vmatpush1.msra.mxu0 0.0
    %3569 = vmatprep.subr.mxu0 0.0
    %3570 = vmatpush1.msra.mxu0 0.0
    %3571 = vmatprep.subr.mxu0 0.0
    %3572 = vmatpush1.msra.mxu0 0.0
    %3573 = vmatprep.subr.mxu0 0.0
    %3574 = vmatpush1.msra.mxu0 0.0
    %3575 = vmatprep.subr.mxu0 0.0
    %3576 = vmatpush1.msra.mxu0 0.0
    %3577 = vmatprep.subr.mxu0 0.0
    %3578 = vmatpush1.msra.mxu0 0.0
    %3579 = vmatprep.subr.mxu0 0.0
    %3580 = vmatpush1.msra.mxu0 0.0
    %3581 = vmatprep.subr.mxu0 0.0
    %3582 = vmatpush1.msra.mxu0 0.0
    %3583 = vmatprep.subr.mxu0 0.0
    %3584 = vmatpush1.msra.mxu0 0.0
    %3585 = vmatprep.subr.mxu0 0.0
    %3586 = vmatpush1.msra.mxu0 0.0
    %3587 = vmatprep.subr.mxu0 0.0
    %3588 = vmatpush1.msra.mxu0 0.0
    %3589 = vmatprep.subr.mxu0 0.0
    %3590 = vmatpush1.msra.mxu0 0.0
    %3591 = vmatprep.subr.mxu0 0.0
    %3592 = vmatpush1.msra.mxu0 0.0
    %3593 = vmatprep.subr.mxu0 0.0
    %3594 = vmatpush1.msra.mxu0 0.0
    %3595 = vmatprep.subr.mxu0 0.0
    %3596 = vmatpush1.msra.mxu0 0.0
    %3597 = vmatprep.subr.mxu0 0.0
    %3598 = vmatpush1.msra.mxu0 0.0
    %3599 = vmatprep.subr.mxu0 0.0
    %3600 = vmatpush1.msra.mxu0 0.0
    %3601 = vmatprep.subr.mxu0 0.0
    %3602 = vmatpush1.msra.mxu0 0.0
    %3603 = vmatprep.subr.mxu0 0.0
    %3604 = vmatpush1.msra.mxu0 0.0
    %3605 = vmatprep.subr.mxu0 0.0
    %3606 = vmatpush1.msra.mxu0 0.0
    %3607 = vmatprep.subr.mxu0 0.0
    %3608 = vmatpush1.msra.mxu0 0.0
    %3609 = vmatprep.subr.mxu0 0.0
    %3610 = vmatpush1.msra.mxu0 0.0
    %3611 = vmatprep.subr.mxu0 0.0
    %3612 = vmatpush1.msra.mxu0 0.0
    %3613 = vmatprep.subr.mxu0 0.0
    %3614 = vmatpush1.msra.mxu0 0.0
    %3615 = vmatprep.subr.mxu0 0.0
    %3616 = vmatpush1.msra.mxu0 0.0
    %3617 = vmatprep.subr.mxu0 0.0
    %3618 = vmatpush1.msra.mxu0 0.0
    %3619 = vmatprep.subr.mxu0 0.0
    %3620 = vmatpush1.msra.mxu0 0.0
    %3621 = vmatprep.subr.mxu0 0.0
    %3622 = vmatpush1.msra.mxu0 0.0
    %3623 = vmatprep.mubr.f32.mxu0 0.0
    %3624 = vmatmul.mubr.f32.gmra.mrb[0].mxu0 %v3557
    %v3625 = vpop.f32.mrb[0].mxu0
    %v3626 = vadd.f32 %v3412, %v3625
    %v3627 = vpop.f32.mrb[0].mxu0
    %v3628 = vadd.f32 %v3414, %v3627
    %3629 = vdwg.mxu0
    %3630 = vmatprep.subr.mxu0 0.0
    %3631 = vmatpush1.msra.mxu0 %v64
    %3632 = vmatprep.subr.mxu0 0.0
    %3633 = vmatpush1.msra.mxu0 %v67
    %3634 = vmatprep.subr.mxu0 0.0
    %3635 = vmatpush1.msra.mxu0 %v70
    %3636 = vmatprep.subr.mxu0 0.0
    %3637 = vmatpush1.msra.mxu0 %v73
    %3638 = vmatprep.subr.mxu0 0.0
    %3639 = vmatpush1.msra.mxu0 0.0
    %3640 = vmatprep.subr.mxu0 0.0
    %3641 = vmatpush1.msra.mxu0 0.0
    %3642 = vmatprep.subr.mxu0 0.0
    %3643 = vmatpush1.msra.mxu0 0.0
    %3644 = vmatprep.subr.mxu0 0.0
    %3645 = vmatpush1.msra.mxu0 0.0
    %3646 = vmatprep.subr.mxu0 0.0
    %3647 = vmatpush1.msra.mxu0 0.0
    %3648 = vmatprep.subr.mxu0 0.0
    %3649 = vmatpush1.msra.mxu0 0.0
    %3650 = vmatprep.subr.mxu0 0.0
    %3651 = vmatpush1.msra.mxu0 0.0
    %3652 = vmatprep.subr.mxu0 0.0
    %3653 = vmatpush1.msra.mxu0 0.0
    %3654 = vmatprep.subr.mxu0 0.0
    %3655 = vmatpush1.msra.mxu0 0.0
    %3656 = vmatprep.subr.mxu0 0.0
    %3657 = vmatpush1.msra.mxu0 0.0
    %3658 = vmatprep.subr.mxu0 0.0
    %3659 = vmatpush1.msra.mxu0 0.0
    %3660 = vmatprep.subr.mxu0 0.0
    %3661 = vmatpush1.msra.mxu0 0.0
    %3662 = vmatprep.subr.mxu0 0.0
    %3663 = vmatpush1.msra.mxu0 0.0
    %3664 = vmatprep.subr.mxu0 0.0
    %3665 = vmatpush1.msra.mxu0 0.0
    %3666 = vmatprep.subr.mxu0 0.0
    %3667 = vmatpush1.msra.mxu0 0.0
    %3668 = vmatprep.subr.mxu0 0.0
    %3669 = vmatpush1.msra.mxu0 0.0
    %3670 = vmatprep.subr.mxu0 0.0
    %3671 = vmatpush1.msra.mxu0 0.0
    %3672 = vmatprep.subr.mxu0 0.0
    %3673 = vmatpush1.msra.mxu0 0.0
    %3674 = vmatprep.subr.mxu0 0.0
    %3675 = vmatpush1.msra.mxu0 0.0
    %3676 = vmatprep.subr.mxu0 0.0
    %3677 = vmatpush1.msra.mxu0 0.0
    %3678 = vmatprep.subr.mxu0 0.0
    %3679 = vmatpush1.msra.mxu0 0.0
    %3680 = vmatprep.subr.mxu0 0.0
    %3681 = vmatpush1.msra.mxu0 0.0
    %3682 = vmatprep.subr.mxu0 0.0
    %3683 = vmatpush1.msra.mxu0 0.0
    %3684 = vmatprep.subr.mxu0 0.0
    %3685 = vmatpush1.msra.mxu0 0.0
    %3686 = vmatprep.subr.mxu0 0.0
    %3687 = vmatpush1.msra.mxu0 0.0
    %3688 = vmatprep.subr.mxu0 0.0
    %3689 = vmatpush1.msra.mxu0 0.0
    %3690 = vmatprep.subr.mxu0 0.0
    %3691 = vmatpush1.msra.mxu0 0.0
    %3692 = vmatprep.subr.mxu0 0.0
    %3693 = vmatpush1.msra.mxu0 0.0
    %3694 = vmatprep.mubr.f32.mxu0 0.0
    %3695 = vmatmul.mubr.f32.gmra.mrb[0].mxu0 %v3557
    %v3696 = vpop.f32.mrb[0].mxu0
    %v3697 = vadd.f32 %v3553, %v3696
    %v3698 = vpop.f32.mrb[0].mxu0
    %3699 = vdwg.mxu0
    %v3700 = vadd.f32 %v3626, %v629
    %v3701 = vadd.f32 %v3628, %v633
    %v3702 = vadd.f32 %v3697, %v637
    %v3703 = vtanh.pop %v3700
    %v3704 = vtanh.pop %v3701
    %v3705 = vtanh.pop %v3702
    %3706 = vst [vmem:[#allocation2] sm:$0xff] %v3703
    %3707 = vst [vmem:[#allocation2 + $0x8] sm:$0xff] %v3704
    %3708 = vst.msk [vmem:[#allocation2 + $0x10] sm:$0xff] %vm194, %v3705
    // Predicated region
    $region50: #{_rnn_forward_impl.1} parent=1 // pred_check
      %p3709 = pneg %p49
    $region51: #{_rnn_forward_impl.1} parent=1 // pred_check_branch
      %3711 = sbr.rel (%p3709) target = $region53
    $region52: #{_rnn_forward_impl.1} parent=1 // pred_region
      %v3712 = vld [vmem:[%s4] sm:$0xff]
      %v3713 = vld [vmem:[%s4 + $0x8] sm:$0xff]
      %v3714 = vld [vmem:[%s4 + $0x10] sm:$0xff]
      %v3715 = vld [vmem:[%s4 + $0x18] sm:$0xff]
      %v3716 = vld [vmem:[%s4 + $0x20] sm:$0xff]
      %v3717 = vld [vmem:[%s4 + $0x28] sm:$0xff]
      %v3718 = vld [vmem:[%s4 + $0x30] sm:$0xff]
      %v3719 = vld [vmem:[%s4 + $0x38] sm:$0xff]
      %v3720 = vld [vmem:[%s4 + $0x40] sm:$0xff]
      %v3721 = vld [vmem:[%s4 + $0x48] sm:$0xff]
      %v3722 = vld [vmem:[%s4 + $0x50] sm:$0xff]
      %v3723 = vld [vmem:[%s4 + $0x58] sm:$0xff]
      %v3724 = vld [vmem:[%s4 + $0x60] sm:$0xff]
      %v3725 = vld [vmem:[%s4 + $0x68] sm:$0xff]
      %v3726 = vld [vmem:[%s4 + $0x70] sm:$0xff]
      %v3727 = vld [vmem:[%s4 + $0x78] sm:$0xff]
      %v3728 = vld [vmem:[%s4 + $0x80] sm:$0xff]
      %v3729 = vld [vmem:[%s4 + $0x88] sm:$0xff]
      %v3730 = vld [vmem:[%s4 + $0x90] sm:$0xff]
      %v3731 = vld [vmem:[%s4 + $0x98] sm:$0xff]
      %v3732 = vld [vmem:[%s4 + $0xa0] sm:$0xff]
      %v3733 = vld [vmem:[%s4 + $0xa8] sm:$0xff]
      %v3734 = vld [vmem:[%s4 + $0xb0] sm:$0xff]
      %v3735 = vld [vmem:[%s4 + $0xb8] sm:$0xff]
      %v3736 = vld [vmem:[%s4 + $0xc0] sm:$0xff]
      %v3737 = vld [vmem:[%s4 + $0xc8] sm:$0xff]
      %v3738 = vld [vmem:[%s4 + $0xd0] sm:$0xff]
      %v3739 = vld [vmem:[%s4 + $0xd8] sm:$0xff]
      %v3740 = vld [vmem:[%s4 + $0xe0] sm:$0xff]
      %v3741 = vld [vmem:[%s4 + $0xe8] sm:$0xff]
      %v3742 = vld [vmem:[%s4 + $0xf0] sm:$0xff]
      %v3743 = vld [vmem:[%s4 + $0xf8] sm:$0xff]
      %v3744 = vld [vmem:[%s4 + $0x100] sm:$0xff]
      %v3745 = vld [vmem:[%s4 + $0x108] sm:$0xff]
      %v3746 = vld [vmem:[%s4 + $0x110] sm:$0xff]
      %v3747 = vld [vmem:[%s4 + $0x118] sm:$0xff]
      %v3748 = vld [vmem:[%s4 + $0x120] sm:$0xff]
      %v3749 = vld [vmem:[%s4 + $0x128] sm:$0xff]
      %v3750 = vld [vmem:[%s4 + $0x130] sm:$0xff]
      %v3751 = vld [vmem:[%s4 + $0x138] sm:$0xff]
      %v3752 = vld [vmem:[%s5] sm:$0x1]
      %v3754 = vlaneseq
      %v3755 = vshrl.u32 %v3754, 7
      %v3756 = vsub.s32 0, %v3755
      %v3757 = vrot.slane %v3752, %v3756
      %v3760 = vsel %vm194, %v3705, 0
      %3762 = vmatprep.subr.mxu0 0.0
      %3763 = vmatpush1.msra.mxu0 %v3712
      %3764 = vmatprep.subr.mxu0 0.0
      %3765 = vmatpush1.msra.mxu0 %v3713
      %3766 = vmatprep.subr.mxu0 0.0
      %3767 = vmatpush1.msra.mxu0 %v3714
      %3768 = vmatprep.subr.mxu0 0.0
      %3769 = vmatpush1.msra.mxu0 %v3715
      %3770 = vmatprep.subr.mxu0 0.0
      %3771 = vmatpush1.msra.mxu0 %v3716
      %3772 = vmatprep.subr.mxu0 0.0
      %3773 = vmatpush1.msra.mxu0 %v3717
      %3774 = vmatprep.subr.mxu0 0.0
      %3775 = vmatpush1.msra.mxu0 %v3718
      %3776 = vmatprep.subr.mxu0 0.0
      %3777 = vmatpush1.msra.mxu0 %v3719
      %3778 = vmatprep.subr.mxu0 0.0
      %3779 = vmatpush1.msra.mxu0 %v3720
      %3780 = vmatprep.subr.mxu0 0.0
      %3781 = vmatpush1.msra.mxu0 %v3721
      %3782 = vmatprep.subr.mxu0 0.0
      %3783 = vmatpush1.msra.mxu0 %v3722
      %3784 = vmatprep.subr.mxu0 0.0
      %3785 = vmatpush1.msra.mxu0 %v3723
      %3786 = vmatprep.subr.mxu0 0.0
      %3787 = vmatpush1.msra.mxu0 %v3724
      %3788 = vmatprep.subr.mxu0 0.0
      %3789 = vmatpush1.msra.mxu0 %v3725
      %3790 = vmatprep.subr.mxu0 0.0
      %3791 = vmatpush1.msra.mxu0 %v3726
      %3792 = vmatprep.subr.mxu0 0.0
      %3793 = vmatpush1.msra.mxu0 %v3727
      %3794 = vmatprep.subr.mxu0 0.0
      %3795 = vmatpush1.msra.mxu0 %v3728
      %3796 = vmatprep.subr.mxu0 0.0
      %3797 = vmatpush1.msra.mxu0 %v3729
      %3798 = vmatprep.subr.mxu0 0.0
      %3799 = vmatpush1.msra.mxu0 %v3730
      %3800 = vmatprep.subr.mxu0 0.0
      %3801 = vmatpush1.msra.mxu0 %v3731
      %3802 = vmatprep.subr.mxu0 0.0
      %3803 = vmatpush1.msra.mxu0 %v3732
      %3804 = vmatprep.subr.mxu0 0.0
      %3805 = vmatpush1.msra.mxu0 %v3733
      %3806 = vmatprep.subr.mxu0 0.0
      %3807 = vmatpush1.msra.mxu0 %v3734
      %3808 = vmatprep.subr.mxu0 0.0
      %3809 = vmatpush1.msra.mxu0 %v3735
      %3810 = vmatprep.subr.mxu0 0.0
      %3811 = vmatpush1.msra.mxu0 %v3736
      %3812 = vmatprep.subr.mxu0 0.0
      %3813 = vmatpush1.msra.mxu0 %v3737
      %3814 = vmatprep.subr.mxu0 0.0
      %3815 = vmatpush1.msra.mxu0 %v3738
      %3816 = vmatprep.subr.mxu0 0.0
      %3817 = vmatpush1.msra.mxu0 %v3739
      %3818 = vmatprep.subr.mxu0 0.0
      %3819 = vmatpush1.msra.mxu0 %v3740
      %3820 = vmatprep.subr.mxu0 0.0
      %3821 = vmatpush1.msra.mxu0 %v3741
      %3822 = vmatprep.subr.mxu0 0.0
      %3823 = vmatpush1.msra.mxu0 %v3742
      %3824 = vmatprep.subr.mxu0 0.0
      %3825 = vmatpush1.msra.mxu0 %v3743
      %3826 = vmatprep.mubr.f32.mxu0 %v3704
      %3827 = vmatmul.mubr.f32.gmra.mrb[0].mxu0 %v3703
      %v3828 = vpop.f32.mrb[0].mxu0
      %v3829 = vadd.f32 %v3757, %v3828
      %v3830 = vpop.f32.mrb[0].mxu0
      %3831 = vdwg.mxu0
      %3832 = vmatprep.subr.mxu0 0.0
      %3833 = vmatpush1.msra.mxu0 %v3744
      %3834 = vmatprep.subr.mxu0 0.0
      %3835 = vmatpush1.msra.mxu0 %v3745
      %3836 = vmatprep.subr.mxu0 0.0
      %3837 = vmatpush1.msra.mxu0 %v3746
      %3838 = vmatprep.subr.mxu0 0.0
      %3839 = vmatpush1.msra.mxu0 %v3747
      %3840 = vmatprep.subr.mxu0 0.0
      %3841 = vmatpush1.msra.mxu0 %v3748
      %3842 = vmatprep.subr.mxu0 0.0
      %3843 = vmatpush1.msra.mxu0 %v3749
      %3844 = vmatprep.subr.mxu0 0.0
      %3845 = vmatpush1.msra.mxu0 %v3750
      %3846 = vmatprep.subr.mxu0 0.0
      %3847 = vmatpush1.msra.mxu0 %v3751
      %3848 = vmatprep.subr.mxu0 0.0
      %3849 = vmatpush1.msra.mxu0 0.0
      %3850 = vmatprep.subr.mxu0 0.0
      %3851 = vmatpush1.msra.mxu0 0.0
      %3852 = vmatprep.subr.mxu0 0.0
      %3853 = vmatpush1.msra.mxu0 0.0
      %3854 = vmatprep.subr.mxu0 0.0
      %3855 = vmatpush1.msra.mxu0 0.0
      %3856 = vmatprep.subr.mxu0 0.0
      %3857 = vmatpush1.msra.mxu0 0.0
      %3858 = vmatprep.subr.mxu0 0.0
      %3859 = vmatpush1.msra.mxu0 0.0
      %3860 = vmatprep.subr.mxu0 0.0
      %3861 = vmatpush1.msra.mxu0 0.0
      %3862 = vmatprep.subr.mxu0 0.0
      %3863 = vmatpush1.msra.mxu0 0.0
      %3864 = vmatprep.subr.mxu0 0.0
      %3865 = vmatpush1.msra.mxu0 0.0
      %3866 = vmatprep.subr.mxu0 0.0
      %3867 = vmatpush1.msra.mxu0 0.0
      %3868 = vmatprep.subr.mxu0 0.0
      %3869 = vmatpush1.msra.mxu0 0.0
      %3870 = vmatprep.subr.mxu0 0.0
      %3871 = vmatpush1.msra.mxu0 0.0
      %3872 = vmatprep.subr.mxu0 0.0
      %3873 = vmatpush1.msra.mxu0 0.0
      %3874 = vmatprep.subr.mxu0 0.0
      %3875 = vmatpush1.msra.mxu0 0.0
      %3876 = vmatprep.subr.mxu0 0.0
      %3877 = vmatpush1.msra.mxu0 0.0
      %3878 = vmatprep.subr.mxu0 0.0
      %3879 = vmatpush1.msra.mxu0 0.0
      %3880 = vmatprep.subr.mxu0 0.0
      %3881 = vmatpush1.msra.mxu0 0.0
      %3882 = vmatprep.subr.mxu0 0.0
      %3883 = vmatpush1.msra.mxu0 0.0
      %3884 = vmatprep.subr.mxu0 0.0
      %3885 = vmatpush1.msra.mxu0 0.0
      %3886 = vmatprep.subr.mxu0 0.0
      %3887 = vmatpush1.msra.mxu0 0.0
      %3888 = vmatprep.subr.mxu0 0.0
      %3889 = vmatpush1.msra.mxu0 0.0
      %3890 = vmatprep.subr.mxu0 0.0
      %3891 = vmatpush1.msra.mxu0 0.0
      %3892 = vmatprep.subr.mxu0 0.0
      %3893 = vmatpush1.msra.mxu0 0.0
      %3894 = vmatprep.subr.mxu0 0.0
      %3895 = vmatpush1.msra.mxu0 0.0
      %3896 = vmatprep.mubr.f32.mxu0 0.0
      %3897 = vmatmul.mubr.f32.gmra.mrb[0].mxu0 %v3760
      %v3898 = vpop.f32.mrb[0].mxu0
      %v3899 = vadd.f32 %v3829, %v3898
      %v3900 = vpop.f32.mrb[0].mxu0
      %3901 = vdwg.mxu0
      %v3902 = vld [vmem:[%s6] sm:$0xff]
      %v3903 = vld [vmem:[%s6 + $0x8] sm:$0xff]
      %v3904 = vld [vmem:[%s6 + $0x10] sm:$0xff]
      %v3905 = vld [vmem:[%s6 + $0x18] sm:$0xff]
      %v3906 = vld [vmem:[%s6 + $0x20] sm:$0xff]
      %v3907 = vld [vmem:[%s6 + $0x28] sm:$0xff]
      %v3908 = vld [vmem:[%s6 + $0x30] sm:$0xff]
      %v3909 = vld [vmem:[%s6 + $0x38] sm:$0xff]
      %v3910 = vld [vmem:[%s6 + $0x40] sm:$0xff]
      %v3911 = vld [vmem:[%s6 + $0x48] sm:$0xff]
      %v3912 = vld [vmem:[%s7] sm:$0x1]
      %v3914 = vlaneseq
      %v3915 = vshrl.u32 %v3914, 7
      %v3916 = vsub.s32 0, %v3915
      %v3917 = vrot.slane %v3912, %v3916
      %vm3919 = vcmask 654336
      %v3921 = vsel %vm3919, %v3899, 0
      %3923 = vmatprep.subr.mxu0 0.0
      %3924 = vmatpush1.msra.mxu0 %v3902
      %3925 = vmatprep.subr.mxu0 0.0
      %3926 = vmatpush1.msra.mxu0 %v3903
      %3927 = vmatprep.subr.mxu0 0.0
      %3928 = vmatpush1.msra.mxu0 %v3904
      %3929 = vmatprep.subr.mxu0 0.0
      %3930 = vmatpush1.msra.mxu0 %v3905
      %3931 = vmatprep.subr.mxu0 0.0
      %3932 = vmatpush1.msra.mxu0 %v3906
      %3933 = vmatprep.subr.mxu0 0.0
      %3934 = vmatpush1.msra.mxu0 %v3907
      %3935 = vmatprep.subr.mxu0 0.0
      %3936 = vmatpush1.msra.mxu0 %v3908
      %3937 = vmatprep.subr.mxu0 0.0
      %3938 = vmatpush1.msra.mxu0 %v3909
      %3939 = vmatprep.subr.mxu0 0.0
      %3940 = vmatpush1.msra.mxu0 %v3910
      %3941 = vmatprep.subr.mxu0 0.0
      %3942 = vmatpush1.msra.mxu0 %v3911
      %3943 = vmatprep.subr.mxu0 0.0
      %3944 = vmatpush1.msra.mxu0 0.0
      %3945 = vmatprep.subr.mxu0 0.0
      %3946 = vmatpush1.msra.mxu0 0.0
      %3947 = vmatprep.subr.mxu0 0.0
      %3948 = vmatpush1.msra.mxu0 0.0
      %3949 = vmatprep.subr.mxu0 0.0
      %3950 = vmatpush1.msra.mxu0 0.0
      %3951 = vmatprep.subr.mxu0 0.0
      %3952 = vmatpush1.msra.mxu0 0.0
      %3953 = vmatprep.subr.mxu0 0.0
      %3954 = vmatpush1.msra.mxu0 0.0
      %3955 = vmatprep.subr.mxu0 0.0
      %3956 = vmatpush1.msra.mxu0 0.0
      %3957 = vmatprep.subr.mxu0 0.0
      %3958 = vmatpush1.msra.mxu0 0.0
      %3959 = vmatprep.subr.mxu0 0.0
      %3960 = vmatpush1.msra.mxu0 0.0
      %3961 = vmatprep.subr.mxu0 0.0
      %3962 = vmatpush1.msra.mxu0 0.0
      %3963 = vmatprep.subr.mxu0 0.0
      %3964 = vmatpush1.msra.mxu0 0.0
      %3965 = vmatprep.subr.mxu0 0.0
      %3966 = vmatpush1.msra.mxu0 0.0
      %3967 = vmatprep.subr.mxu0 0.0
      %3968 = vmatpush1.msra.mxu0 0.0
      %3969 = vmatprep.subr.mxu0 0.0
      %3970 = vmatpush1.msra.mxu0 0.0
      %3971 = vmatprep.subr.mxu0 0.0
      %3972 = vmatpush1.msra.mxu0 0.0
      %3973 = vmatprep.subr.mxu0 0.0
      %3974 = vmatpush1.msra.mxu0 0.0
      %3975 = vmatprep.subr.mxu0 0.0
      %3976 = vmatpush1.msra.mxu0 0.0
      %3977 = vmatprep.subr.mxu0 0.0
      %3978 = vmatpush1.msra.mxu0 0.0
      %3979 = vmatprep.subr.mxu0 0.0
      %3980 = vmatpush1.msra.mxu0 0.0
      %3981 = vmatprep.subr.mxu0 0.0
      %3982 = vmatpush1.msra.mxu0 0.0
      %3983 = vmatprep.subr.mxu0 0.0
      %3984 = vmatpush1.msra.mxu0 0.0
      %3985 = vmatprep.subr.mxu0 0.0
      %3986 = vmatpush1.msra.mxu0 0.0
      %3987 = vmatprep.mubr.f32.mxu0 0.0
      %3988 = vmatmul.mubr.f32.gmra.mrb[0].mxu0 %v3921
      %v3989 = vpop.f32.mrb[0].mxu0
      %v3990 = vadd.f32 %v3917, %v3989
      %v3991 = vpop.f32.mrb[0].mxu0
      %3992 = vdwg.mxu0
      %v3993 = vld [vmem:[%s8] sm:$0xff]
      %v3994 = vld [vmem:[%s8 + $0x8] sm:$0xff]
      %v3995 = vld [vmem:[%s8 + $0x10] sm:$0xf]
      %v3996 = vld [vmem:[%s9] sm:$0x1]
      %v3998 = vlaneseq
      %v3999 = vshrl.u32 %v3998, 7
      %v4000 = vsub.s32 0, %v3999
      %v4001 = vrot.slane %v3996, %v4000
      %vm4003 = vcmask 162816
      %v4005 = vsel %vm4003, %v3990, 0
      %vm4007 = vcmask 1043456
      %v4009 = vsel %vm4007, %v3995, 0
      %4011 = vmatprep.subr.mxu0 0.0
      %4012 = vmatpush1.msra.mxu0 %v3993
      %4013 = vmatprep.subr.mxu0 0.0
      %4014 = vmatpush1.msra.mxu0 %v3994
      %4015 = vmatprep.subr.mxu0 0.0
      %4016 = vmatpush1.msra.mxu0 %v4009
      %4017 = vmatprep.subr.mxu0 0.0
      %4018 = vmatpush1.msra.mxu0 0.0
      %4019 = vmatprep.subr.mxu0 0.0
      %4020 = vmatpush1.msra.mxu0 0.0
      %4021 = vmatprep.subr.mxu0 0.0
      %4022 = vmatpush1.msra.mxu0 0.0
      %4023 = vmatprep.subr.mxu0 0.0
      %4024 = vmatpush1.msra.mxu0 0.0
      %4025 = vmatprep.subr.mxu0 0.0
      %4026 = vmatpush1.msra.mxu0 0.0
      %4027 = vmatprep.subr.mxu0 0.0
      %4028 = vmatpush1.msra.mxu0 0.0
      %4029 = vmatprep.subr.mxu0 0.0
      %4030 = vmatpush1.msra.mxu0 0.0
      %4031 = vmatprep.subr.mxu0 0.0
      %4032 = vmatpush1.msra.mxu0 0.0
      %4033 = vmatprep.subr.mxu0 0.0
      %4034 = vmatpush1.msra.mxu0 0.0
      %4035 = vmatprep.subr.mxu0 0.0
      %4036 = vmatpush1.msra.mxu0 0.0
      %4037 = vmatprep.subr.mxu0 0.0
      %4038 = vmatpush1.msra.mxu0 0.0
      %4039 = vmatprep.subr.mxu0 0.0
      %4040 = vmatpush1.msra.mxu0 0.0
      %4041 = vmatprep.subr.mxu0 0.0
      %4042 = vmatpush1.msra.mxu0 0.0
      %4043 = vmatprep.subr.mxu0 0.0
      %4044 = vmatpush1.msra.mxu0 0.0
      %4045 = vmatprep.subr.mxu0 0.0
      %4046 = vmatpush1.msra.mxu0 0.0
      %4047 = vmatprep.subr.mxu0 0.0
      %4048 = vmatpush1.msra.mxu0 0.0
      %4049 = vmatprep.subr.mxu0 0.0
      %4050 = vmatpush1.msra.mxu0 0.0
      %4051 = vmatprep.subr.mxu0 0.0
      %4052 = vmatpush1.msra.mxu0 0.0
      %4053 = vmatprep.subr.mxu0 0.0
      %4054 = vmatpush1.msra.mxu0 0.0
      %4055 = vmatprep.subr.mxu0 0.0
      %4056 = vmatpush1.msra.mxu0 0.0
      %4057 = vmatprep.subr.mxu0 0.0
      %4058 = vmatpush1.msra.mxu0 0.0
      %4059 = vmatprep.subr.mxu0 0.0
      %4060 = vmatpush1.msra.mxu0 0.0
      %4061 = vmatprep.subr.mxu0 0.0
      %4062 = vmatpush1.msra.mxu0 0.0
      %4063 = vmatprep.subr.mxu0 0.0
      %4064 = vmatpush1.msra.mxu0 0.0
      %4065 = vmatprep.subr.mxu0 0.0
      %4066 = vmatpush1.msra.mxu0 0.0
      %4067 = vmatprep.subr.mxu0 0.0
      %4068 = vmatpush1.msra.mxu0 0.0
      %4069 = vmatprep.subr.mxu0 0.0
      %4070 = vmatpush1.msra.mxu0 0.0
      %4071 = vmatprep.subr.mxu0 0.0
      %4072 = vmatpush1.msra.mxu0 0.0
      %4073 = vmatprep.subr.mxu0 0.0
      %4074 = vmatpush1.msra.mxu0 0.0
      %4075 = vmatprep.mubr.f32.mxu0 0.0
      %4076 = vmatmul.mubr.f32.gmra.mrb[0].mxu0 %v4005
      %v4077 = vpop.f32.mrb[0].mxu0
      %v4078 = vadd.f32 %v4001, %v4077
      %v4079 = vpop.f32.mrb[0].mxu0
      %4080 = vdwg.mxu0
      %vm4081 = vcmask 15360
      %v4082 = vsel %vm4081, %v4078, -inf
      %4083 = vmax.xlane.f32.xlu0 %v4082
      %v4084 = vpop.xlane.xlu0 %4083
      %v4085 = vsub.f32 %v4078, %v4084
      %v4086 = vmul.f32 %v4085, 1.442695
      %v4087 = vpow.pop %v4086
      %v4088 = vsel %vm4081, %v4087, 0.0
      %4089 = vadd.xlane.f32.xlu0 %v4088
      %v4090 = vpop.xlane.xlu0 %4089
      %v4091 = vrcp.pop %v4090
      %v4092 = vmul.f32 %v4090, %v4091
      %v4093 = vsub.f32 2.0, %v4092
      %v4094 = vmul.f32 %v4091, %v4093
      %v4095 = vmul.f32 %v4087, %v4094
      %4096 = vst.msk [vmem:[%s10] sm:$0xff] %vm4081, %v4095
    $region53: #{_rnn_forward_impl.1} parent=1 // pred_fallthru
      _
    // Predicated region
    $region54: #{_rnn_forward_impl.1} parent=1 // pred_check
      _
    $region55: #{_rnn_forward_impl.1} parent=1 // pred_check_branch
      %4098 = sbr.rel (0) target = $region57
    $region56: #{_rnn_forward_impl.1} parent=1 // pred_region
      _
    $region57: #{_rnn_forward_impl.1} parent=1 // pred_fallthru
      _
    // Predicated region
    $region58: #{_rnn_forward_impl.1} parent=1 // pred_check
      _
    $region59: #{_rnn_forward_impl.1} parent=1 // pred_check_branch
      %4100 = sbr.rel (0) target = $region61
    $region60: #{_rnn_forward_impl.1} parent=1 // pred_region
      _
    $region61: #{_rnn_forward_impl.1} parent=1 // pred_fallthru
      _
    %4101 = vsyncpa [#allocation4], 1

</llo_original>
